<compile_context>
chip_gen: v6e
topology: v6e:2x2x1
jax: 0.10.0
libtpu: 0.0.40
codegen_flags: <defaults>
</compile_context>

<pallas_src>
import functools
import math

import jax
import jax.numpy as jnp
from jax import lax
from jax.experimental import pallas as pl
from jax.experimental.pallas import tpu as pltpu

NEG_INF = -1000000000.0
LN_EPS = 1e-5


def _block_m(M):
    """Pick a row-tile size: large divisor of M, else fall back to whole M."""
    for bm in (512, 256, 128):
        if M % bm == 0:
            return bm
    return M


# ----------------------------- Pallas kernels ------------------------------

def _matmul_bias_kernel(x_ref, w_ref, b_ref, o_ref):
    # o = x @ W + b   (bf16 MXU operands, f32 accumulation)
    acc = jnp.dot(x_ref[...].astype(jnp.bfloat16), w_ref[...],
                  preferred_element_type=jnp.float32)
    o_ref[...] = (acc + b_ref[...]).astype(o_ref.dtype)


def _proj_res_ln_kernel(y_ref, w_ref, b_ref, res_ref, g_ref, bt_ref, o_ref, *, eps):
    # o = LayerNorm(res + y @ W + b)
    z = jnp.dot(y_ref[...].astype(jnp.bfloat16), w_ref[...],
                preferred_element_type=jnp.float32)
    z = z + b_ref[...] + res_ref[...].astype(jnp.float32)
    mean = jnp.mean(z, axis=-1, keepdims=True)
    var = jnp.mean(jnp.square(z - mean), axis=-1, keepdims=True)
    out = (z - mean) * lax.rsqrt(var + eps) * g_ref[...] + bt_ref[...]
    o_ref[...] = out.astype(o_ref.dtype)


def _ffn_res_ln_kernel(x_ref, w1_ref, b1_ref, w2_ref, b2_ref, g_ref, bt_ref,
                       o_ref, *, eps):
    # o = LayerNorm(x + relu(x @ W1 + b1) @ W2 + b2)
    # NOTE: weights are kept block-resident; for very large d_ff on v7x the F
    # dimension should additionally be tiled with an accumulator scratch.
    x = x_ref[...]
    h = jnp.dot(x.astype(jnp.bfloat16), w1_ref[...],
                preferred_element_type=jnp.float32)
    h = jnp.maximum(h + b1_ref[...], 0.0)
    z = jnp.dot(h.astype(jnp.bfloat16), w2_ref[...],
                preferred_element_type=jnp.float32)
    z = z + b2_ref[...] + x.astype(jnp.float32)
    mean = jnp.mean(z, axis=-1, keepdims=True)
    var = jnp.mean(jnp.square(z - mean), axis=-1, keepdims=True)
    out = (z - mean) * lax.rsqrt(var + eps) * g_ref[...] + bt_ref[...]
    o_ref[...] = out.astype(o_ref.dtype)


def _attention_core(q, k, v, bias, num_heads, scale):
    # q: (Sq, D) bf16, k/v: (Sk, D) bf16, bias: broadcastable to (Sq, Sk) f32.
    D = q.shape[-1]
    dh = D // num_heads
    outs = []
    for h in range(num_heads):
        lo, hi = h * dh, (h + 1) * dh
        qh, kh, vh = q[:, lo:hi], k[:, lo:hi], v[:, lo:hi]
        s = lax.dot_general(qh, kh, (((1,), (1,)), ((), ())),
                            preferred_element_type=jnp.float32) * scale
        s = s + bias
        m = jnp.max(s, axis=-1, keepdims=True)
        e = jnp.exp(s - m)
        p = e * pl.reciprocal(jnp.sum(e, axis=-1, keepdims=True), approx=True)
        outs.append(jnp.dot(p.astype(v.dtype), vh,
                            preferred_element_type=jnp.float32))
    return jnp.concatenate(outs, axis=-1)  # (Sq, D) f32, lane-dense store


def _self_attn_kernel(qkv_ref, qb_ref, kb_ref, o_ref, *, num_heads, scale, causal):
    qkv = qkv_ref[0]                       # (S, 3D) bf16
    S = qkv.shape[0]
    D = qkv.shape[1] // 3
    q, k, v = qkv[:, :D], qkv[:, D:2 * D], qkv[:, 2 * D:]
    bias = qb_ref[0] + kb_ref[0]           # (S,1) + (1,S) -> (S,S) f32
    if causal:
        row = lax.broadcasted_iota(jnp.int32, (S, S), 0)
        col = lax.broadcasted_iota(jnp.int32, (S, S), 1)
        bias = bias + jnp.where(col > row, jnp.float32(NEG_INF), jnp.float32(0.0))
    o_ref[0] = _attention_core(q, k, v, bias, num_heads, scale).astype(o_ref.dtype)


def _cross_attn_kernel(q_ref, kv_ref, kb_ref, o_ref, *, num_heads, scale):
    q = q_ref[0]                           # (Sq, D)  bf16
    kv = kv_ref[0]                         # (Sk, 2D) bf16
    D = q.shape[-1]
    k, v = kv[:, :D], kv[:, D:]
    bias = kb_ref[0]                       # (1, Sk) f32, broadcasts over Sq
    o_ref[0] = _attention_core(q, k, v, bias, num_heads, scale).astype(o_ref.dtype)


# --------------------------- kernel call wrappers ---------------------------

_PARALLEL_1D = pltpu.CompilerParams(dimension_semantics=("parallel",))


def linear(x2d, w, b, out_dtype=jnp.bfloat16):
    M, K = x2d.shape
    N = w.shape[1]
    bm = _block_m(M)
    return pl.pallas_call(
        _matmul_bias_kernel,
        out_shape=jax.ShapeDtypeStruct((M, N), out_dtype),
        grid=(M // bm,),
        in_specs=[
            pl.BlockSpec((bm, K), lambda i: (i, 0)),
            pl.BlockSpec((K, N), lambda i: (0, 0)),
            pl.BlockSpec((1, N), lambda i: (0, 0)),
        ],
        out_specs=pl.BlockSpec((bm, N), lambda i: (i, 0)),
        compiler_params=_PARALLEL_1D,
    )(x2d, w, b)


def proj_residual_layernorm(y2d, w, b, res2d, g, bt, out_dtype=jnp.bfloat16):
    M, K = y2d.shape
    N = w.shape[1]
    bm = _block_m(M)
    return pl.pallas_call(
        functools.partial(_proj_res_ln_kernel, eps=LN_EPS),
        out_shape=jax.ShapeDtypeStruct((M, N), out_dtype),
        grid=(M // bm,),
        in_specs=[
            pl.BlockSpec((bm, K), lambda i: (i, 0)),
            pl.BlockSpec((K, N), lambda i: (0, 0)),
            pl.BlockSpec((1, N), lambda i: (0, 0)),
            pl.BlockSpec((bm, N), lambda i: (i, 0)),
            pl.BlockSpec((1, N), lambda i: (0, 0)),
            pl.BlockSpec((1, N), lambda i: (0, 0)),
        ],
        out_specs=pl.BlockSpec((bm, N), lambda i: (i, 0)),
        compiler_params=_PARALLEL_1D,
    )(y2d, w, b, res2d, g, bt)


def ffn_residual_layernorm(x2d, w1, b1, w2, b2, g, bt, out_dtype=jnp.bfloat16):
    M, D = x2d.shape
    F = w1.shape[1]
    bm = _block_m(M)
    return pl.pallas_call(
        functools.partial(_ffn_res_ln_kernel, eps=LN_EPS),
        out_shape=jax.ShapeDtypeStruct((M, D), out_dtype),
        grid=(M // bm,),
        in_specs=[
            pl.BlockSpec((bm, D), lambda i: (i, 0)),
            pl.BlockSpec((D, F), lambda i: (0, 0)),
            pl.BlockSpec((1, F), lambda i: (0, 0)),
            pl.BlockSpec((F, D), lambda i: (0, 0)),
            pl.BlockSpec((1, D), lambda i: (0, 0)),
            pl.BlockSpec((1, D), lambda i: (0, 0)),
            pl.BlockSpec((1, D), lambda i: (0, 0)),
        ],
        out_specs=pl.BlockSpec((bm, D), lambda i: (i, 0)),
        compiler_params=_PARALLEL_1D,
    )(x2d, w1, b1, w2, b2, g, bt)


def self_attention(qkv, qbias, kbias, num_heads, causal):
    B, S, D3 = qkv.shape
    D = D3 // 3
    scale = 1.0 / math.sqrt(D // num_heads)
    return pl.pallas_call(
        functools.partial(_self_attn_kernel, num_heads=num_heads, scale=scale,
                          causal=causal),
        out_shape=jax.ShapeDtypeStruct((B, S, D), qkv.dtype),
        grid=(B,),
        in_specs=[
            pl.BlockSpec((1, S, D3), lambda b: (b, 0, 0)),
            pl.BlockSpec((1, S, 1), lambda b: (b, 0, 0)),
            pl.BlockSpec((1, 1, S), lambda b: (b, 0, 0)),
        ],
        out_specs=pl.BlockSpec((1, S, D), lambda b: (b, 0, 0)),
        compiler_params=_PARALLEL_1D,
    )(qkv, qbias, kbias)


def cross_attention(q, kv, kbias, num_heads):
    B, Sq, D = q.shape
    Sk = kv.shape[1]
    scale = 1.0 / math.sqrt(D // num_heads)
    return pl.pallas_call(
        functools.partial(_cross_attn_kernel, num_heads=num_heads, scale=scale),
        out_shape=jax.ShapeDtypeStruct((B, Sq, D), q.dtype),
        grid=(B,),
        in_specs=[
            pl.BlockSpec((1, Sq, D), lambda b: (b, 0, 0)),
            pl.BlockSpec((1, Sk, 2 * D), lambda b: (b, 0, 0)),
            pl.BlockSpec((1, 1, Sk), lambda b: (b, 0, 0)),
        ],
        out_specs=pl.BlockSpec((1, Sq, D), lambda b: (b, 0, 0)),
        compiler_params=_PARALLEL_1D,
    )(q, kv, kbias)


# ----------------------------- model components -----------------------------

def self_mha_block(p, x, qbias, kbias, num_heads, causal, ln_g, ln_b):
    B, S, D = x.shape
    x2d = x.reshape(B * S, D)
    qkv = linear(x2d, p["wqkv"], p["bqkv"]).reshape(B, S, 3 * D)
    attn = self_attention(qkv, qbias, kbias, num_heads, causal)        # (B,S,D)
    out = proj_residual_layernorm(attn.reshape(B * S, D), p["wo"], p["bo"],
                                  x2d, ln_g, ln_b)
    return out.reshape(B, S, D)


def cross_mha_block(p, x, enc_kv, kbias, num_heads, ln_g, ln_b):
    B, St, D = x.shape
    x2d = x.reshape(B * St, D)
    q = linear(x2d, p["wq"], p["bq"]).reshape(B, St, D)
    attn = cross_attention(q, enc_kv, kbias, num_heads)                # (B,St,D)
    out = proj_residual_layernorm(attn.reshape(B * St, D), p["wo"], p["bo"],
                                  x2d, ln_g, ln_b)
    return out.reshape(B, St, D)


def encoder_layer(p, x, enc_qbias, src_kbias, num_heads):
    x = self_mha_block(p["self_attn"], x, enc_qbias, src_kbias, num_heads,
                       False, p["g1"], p["b1"])
    B, S, D = x.shape
    x = ffn_residual_layernorm(x.reshape(B * S, D), p["w1"], p["bb1"],
                               p["w2"], p["bb2"], p["g2"], p["b2"])
    return x.reshape(B, S, D)


def decoder_layer(p, x, enc_out, tgt_qbias, dec_kbias, src_kbias, num_heads):
    # masked self-attention (causal + target padding on query rows)
    x = self_mha_block(p["self_attn"], x, tgt_qbias, dec_kbias, num_heads,
                       True, p["g1"], p["b1"])
    # cross-attention over encoder output (source padding on key columns)
    B, Ss, D = enc_out.shape
    enc_kv = linear(enc_out.reshape(B * Ss, D),
                    p["cross_attn"]["wkv"], p["cross_attn"]["bkv"]).reshape(B, Ss, 2 * D)
    x = cross_mha_block(p["cross_attn"], x, enc_kv, src_kbias, num_heads,
                        p["g2"], p["b2"])
    # feed-forward
    B, St, D = x.shape
    x = ffn_residual_layernorm(x.reshape(B * St, D), p["w1"], p["bb1"],
                               p["w2"], p["bb2"], p["g3"], p["b3"])
    return x.reshape(B, St, D)


def positional_encoding_table(d_model, max_seq_length):
    position = jnp.arange(max_seq_length, dtype=jnp.float32)[:, None]
    div_term = jnp.exp(
        jnp.arange(0, d_model, 2, dtype=jnp.float32) * (-math.log(10000.0) / d_model))
    pe = jnp.zeros((max_seq_length, d_model), jnp.float32)
    pe = pe.at[:, 0::2].set(jnp.sin(position * div_term))
    pe = pe.at[:, 1::2].set(jnp.cos(position * div_term))
    return pe[None]


def make_bias_masks(src, tgt):
    # Additive biases (0 = keep, -1e9 = mask); causal part is built in-kernel.
    # NOTE: for fully-masked (padded) query rows an additive bias yields a
    # softmax over allowed scores rather than PyTorch's uniform weights; those
    # rows correspond to padding positions and are semantically irrelevant.
    B, Ss = src.shape
    St = tgt.shape[1]
    src_kbias = jnp.where(src == 0, NEG_INF, 0.0).astype(jnp.float32)[:, None, :]  # (B,1,Ss)
    tgt_qbias = jnp.where(tgt == 0, NEG_INF, 0.0).astype(jnp.float32)[:, :, None]  # (B,St,1)
    enc_qbias = jnp.zeros((B, Ss, 1), jnp.float32)
    dec_kbias = jnp.zeros((B, 1, St), jnp.float32)
    return src_kbias, tgt_qbias, enc_qbias, dec_kbias


def transformer_forward(params, src, tgt, *, num_heads, tgt_vocab):
    src_kbias, tgt_qbias, enc_qbias, dec_kbias = make_bias_masks(src, tgt)
    pe = params["pe"]

    # TODO(synk): embedding gather + positional-encoding add stay in plain JAX
    # (token gather has no clean / profitable Pallas equivalent at these sizes).
    enc = (jnp.take(params["enc_emb"], src, axis=0)
           + pe[:, :src.shape[1]]).astype(jnp.bfloat16)
    for lp in params["enc_layers"]:
        enc = encoder_layer(lp, enc, enc_qbias, src_kbias, num_heads)

    dec = (jnp.take(params["dec_emb"], tgt, axis=0)
           + pe[:, :tgt.shape[1]]).astype(jnp.bfloat16)
    for lp in params["dec_layers"]:
        dec = decoder_layer(lp, dec, enc, tgt_qbias, dec_kbias, src_kbias, num_heads)

    B, St, D = dec.shape
    logits = linear(dec.reshape(B * St, D), params["fc_w"], params["fc_b"],
                    out_dtype=jnp.float32)
    # un-pad the lane-padded vocabulary dimension
    return logits.reshape(B, St, -1)[:, :, :tgt_vocab]


# ----------------------------- parameter init -------------------------------

def _init_linear(key, d_in, d_out, scale=0.02, w_dtype=jnp.bfloat16):
    k1, k2 = jax.random.split(key)
    w = (scale * jax.random.normal(k1, (d_in, d_out), jnp.float32)).astype(w_dtype)
    b = (scale * jax.random.normal(k2, (1, d_out), jnp.float32))
    return w, b


def _init_self_mha(key, d_model):
    ks = jax.random.split(key, 4)
    wq, bq = _init_linear(ks[0], d_model, d_model)
    wk, bk = _init_linear(ks[1], d_model, d_model)
    wv, bv = _init_linear(ks[2], d_model, d_model)
    wo, bo = _init_linear(ks[3], d_model, d_model)
    return dict(wqkv=jnp.concatenate([wq, wk, wv], axis=1),
                bqkv=jnp.concatenate([bq, bk, bv], axis=1),
                wo=wo, bo=bo)


def _init_cross_mha(key, d_model):
    ks = jax.random.split(key, 4)
    wq, bq = _init_linear(ks[0], d_model, d_model)
    wk, bk = _init_linear(ks[1], d_model, d_model)
    wv, bv = _init_linear(ks[2], d_model, d_model)
    wo, bo = _init_linear(ks[3], d_model, d_model)
    return dict(wq=wq, bq=bq,
                wkv=jnp.concatenate([wk, wv], axis=1),
                bkv=jnp.concatenate([bk, bv], axis=1),
                wo=wo, bo=bo)


def _ln_params(d_model):
    return jnp.ones((1, d_model), jnp.float32), jnp.zeros((1, d_model), jnp.float32)


def _init_enc_layer(key, d_model, d_ff):
    ks = jax.random.split(key, 3)
    w1, bb1 = _init_linear(ks[1], d_model, d_ff)
    w2, bb2 = _init_linear(ks[2], d_ff, d_model)
    g1, b1 = _ln_params(d_model)
    g2, b2 = _ln_params(d_model)
    return dict(self_attn=_init_self_mha(ks[0], d_model),
                w1=w1, bb1=bb1, w2=w2, bb2=bb2,
                g1=g1, b1=b1, g2=g2, b2=b2)


def _init_dec_layer(key, d_model, d_ff):
    ks = jax.random.split(key, 4)
    w1, bb1 = _init_linear(ks[2], d_model, d_ff)
    w2, bb2 = _init_linear(ks[3], d_ff, d_model)
    g1, b1 = _ln_params(d_model)
    g2, b2 = _ln_params(d_model)
    g3, b3 = _ln_params(d_model)
    return dict(self_attn=_init_self_mha(ks[0], d_model),
                cross_attn=_init_cross_mha(ks[1], d_model),
                w1=w1, bb1=bb1, w2=w2, bb2=bb2,
                g1=g1, b1=b1, g2=g2, b2=b2, g3=g3, b3=b3)


def init_transformer(key, src_vocab, tgt_vocab, d_model, num_layers, d_ff, max_seq):
    ks = jax.random.split(key, 3 + 2 * num_layers)
    enc_emb = 0.02 * jax.random.normal(ks[0], (src_vocab, d_model), jnp.float32)
    dec_emb = 0.02 * jax.random.normal(ks[1], (tgt_vocab, d_model), jnp.float32)
    fc_w, fc_b = _init_linear(ks[2], d_model, tgt_vocab)
    # pad classifier lane dim to a multiple of 128 for lane-dense stores
    vp = ((tgt_vocab + 127) // 128) * 128
    fc_w = jnp.pad(fc_w, ((0, 0), (0, vp - tgt_vocab)))
    fc_b = jnp.pad(fc_b, ((0, 0), (0, vp - tgt_vocab)))
    enc_layers = [_init_enc_layer(ks[3 + i], d_model, d_ff) for i in range(num_layers)]
    dec_layers = [_init_dec_layer(ks[3 + num_layers + i], d_model, d_ff)
                  for i in range(num_layers)]
    return dict(enc_emb=enc_emb, dec_emb=dec_emb,
                pe=positional_encoding_table(d_model, max_seq),
                enc_layers=enc_layers, dec_layers=dec_layers,
                fc_w=fc_w, fc_b=fc_b)


# ---------------------------------- main ------------------------------------

if __name__ == "__main__":
    src_vocab = 16
    tgt_vocab = 16
    d_model = 32
    num_heads = 4
    num_layers = 2
    d_ff = 64
    max_seq = 32
    batch = 2
    src_len = 8
    tgt_len = 8

    root = jax.random.PRNGKey(0)
    k_params, k_src, k_tgt = jax.random.split(root, 3)

    params = init_transformer(k_params, src_vocab, tgt_vocab, d_model,
                              num_layers, d_ff, max_seq)

    src = jax.random.randint(k_src, (batch, src_len), 0, src_vocab, dtype=jnp.int32)
    tgt = jax.random.randint(k_tgt, (batch, tgt_len), 0, tgt_vocab, dtype=jnp.int32)

    fwd = jax.jit(functools.partial(transformer_forward,
                                    num_heads=num_heads, tgt_vocab=tgt_vocab))
    logits = fwd(params, src, tgt)
    jax.block_until_ready(logits)

    assert logits.shape == (batch, tgt_len, tgt_vocab)
    assert bool(jnp.all(jnp.isfinite(logits)))
    print("KERNEL_OK")
</pallas_src>

<mosaic_0001>
module attributes {stable_mosaic.version = 11 : i64} {
  func.func @_matmul_bias_kernel(%arg0: i32, %arg1: memref<16x32xbf16, #tpu.memory_space<vmem>>, %arg2: memref<32x96xbf16, #tpu.memory_space<vmem>>, %arg3: memref<1x96xf32, #tpu.memory_space<vmem>>, %arg4: memref<16x96xbf16, #tpu.memory_space<vmem>>) attributes {dimension_semantics = [#tpu.dimension_semantics<parallel>], iteration_bounds = array<i64: 1>, scalar_prefetch = 0 : i64, scratch_operands = 0 : i64, tpu.core_type = #tpu.core_type<tc>, window_params = [{transform_indices = @transform_0, window_bounds = array<i64: 16, 32>}, {pipeline_mode = #tpu.pipeline_mode<synchronous>, transform_indices = @transform_1, window_bounds = array<i64: 32, 96>}, {pipeline_mode = #tpu.pipeline_mode<synchronous>, transform_indices = @transform_2, window_bounds = array<i64: 1, 96>}, {transform_indices = @transform_3, window_bounds = array<i64: 16, 96>}]} {
    %c0 = arith.constant 0 : index
    %c0_0 = arith.constant 0 : index
    %0 = vector.load %arg1[%c0, %c0_0] : memref<16x32xbf16, #tpu.memory_space<vmem>>, vector<16x32xbf16>
    %c0_1 = arith.constant 0 : index
    %c0_2 = arith.constant 0 : index
    %1 = vector.load %arg2[%c0_1, %c0_2] : memref<32x96xbf16, #tpu.memory_space<vmem>>, vector<32x96xbf16>
    %cst = arith.constant dense<0.000000e+00> : vector<16x96xf32>
    %2 = tpu.matmul %0, %1, %cst {dimension_numbers = #tpu.dot_dimension_numbers<[1], [0], [0], [1], [0, 0, 1, 1], [], []>} : vector<16x32xbf16>, vector<32x96xbf16>, vector<16x96xf32> -> vector<16x96xf32>
    %c0_3 = arith.constant 0 : index
    %c0_4 = arith.constant 0 : index
    %3 = vector.load %arg3[%c0_3, %c0_4] : memref<1x96xf32, #tpu.memory_space<vmem>>, vector<1x96xf32>
    %4 = vector.broadcast %3 : vector<1x96xf32> to vector<16x96xf32>
    %5 = arith.addf %2, %4 : vector<16x96xf32>
    %6 = arith.truncf %5 : vector<16x96xf32> to vector<16x96xbf16>
    %c0_5 = arith.constant 0 : index
    %c0_6 = arith.constant 0 : index
    %7 = vector.load %arg4[%c0_5, %c0_6] : memref<16x96xbf16, #tpu.memory_space<vmem>>, vector<16x96xbf16>
    tpu.vector_store %arg4[%c0_5, %c0_6], %6 {strides = array<i32>} : memref<16x96xbf16, #tpu.memory_space<vmem>>, vector<16x96xbf16>,
    return
  }
  func.func @transform_0(%arg0: i32) -> (i32, i32) {
    %c0_i32 = arith.constant 0 : i32
    %c0_i32_0 = arith.constant 0 : i32
    return %arg0, %c0_i32 : i32, i32
  }
  func.func @transform_1(%arg0: i32) -> (i32, i32) {
    %c0_i32 = arith.constant 0 : i32
    %c0_i32_0 = arith.constant 0 : i32
    %c0_i32_1 = arith.constant 0 : i32
    return %c0_i32, %c0_i32_0 : i32, i32
  }
  func.func @transform_2(%arg0: i32) -> (i32, i32) {
    %c0_i32 = arith.constant 0 : i32
    %c0_i32_0 = arith.constant 0 : i32
    %c0_i32_1 = arith.constant 0 : i32
    return %c0_i32, %c0_i32_0 : i32, i32
  }
  func.func @transform_3(%arg0: i32) -> (i32, i32) {
    %c0_i32 = arith.constant 0 : i32
    %c0_i32_0 = arith.constant 0 : i32
    return %arg0, %c0_i32 : i32, i32
  }
}

module attributes {stable_mosaic.version = 11 : i64} {
  func.func @_self_attn_kernel(%arg0: i32, %arg1: memref<1x8x96xbf16, #tpu.memory_space<vmem>>, %arg2: memref<1x8x1xf32, #tpu.memory_space<vmem>>, %arg3: memref<1x1x8xf32, #tpu.memory_space<vmem>>, %arg4: memref<1x8x32xbf16, #tpu.memory_space<vmem>>) attributes {dimension_semantics = [#tpu.dimension_semantics<parallel>], iteration_bounds = array<i64: 2>, scalar_prefetch = 0 : i64, scratch_operands = 0 : i64, tpu.core_type = #tpu.core_type<tc>, window_params = [{transform_indices = @transform_0, window_bounds = array<i64: 1, 8, 96>}, {transform_indices = @transform_1, window_bounds = array<i64: 1, 8, 1>}, {transform_indices = @transform_2, window_bounds = array<i64: 1, 1, 8>}, {transform_indices = @transform_3, window_bounds = array<i64: 1, 8, 32>}]} {
    %c0 = arith.constant 0 : index
    %c0_0 = arith.constant 0 : index
    %c0_1 = arith.constant 0 : index
    %0 = vector.load %arg1[%c0, %c0_0, %c0_1] : memref<1x8x96xbf16, #tpu.memory_space<vmem>>, vector<1x8x96xbf16>
    %1 = vector.shape_cast %0 : vector<1x8x96xbf16> to vector<8x96xbf16>
    %2 = vector.extract_strided_slice %1 {offsets = [0, 0], sizes = [8, 32], strides = [1, 1]} : vector<8x96xbf16> to vector<8x32xbf16>
    %3 = vector.extract_strided_slice %1 {offsets = [0, 32], sizes = [8, 32], strides = [1, 1]} : vector<8x96xbf16> to vector<8x32xbf16>
    %4 = vector.extract_strided_slice %1 {offsets = [0, 64], sizes = [8, 32], strides = [1, 1]} : vector<8x96xbf16> to vector<8x32xbf16>
    %c0_2 = arith.constant 0 : index
    %c0_3 = arith.constant 0 : index
    %c0_4 = arith.constant 0 : index
    %5 = vector.load %arg2[%c0_2, %c0_3, %c0_4] : memref<1x8x1xf32, #tpu.memory_space<vmem>>, vector<1x8x1xf32>
    %6 = vector.shape_cast %5 : vector<1x8x1xf32> to vector<8x1xf32>
    %c0_5 = arith.constant 0 : index
    %c0_6 = arith.constant 0 : index
    %c0_7 = arith.constant 0 : index
    %7 = vector.load %arg3[%c0_5, %c0_6, %c0_7] : memref<1x1x8xf32, #tpu.memory_space<vmem>>, vector<1x1x8xf32>
    %8 = vector.shape_cast %7 : vector<1x1x8xf32> to vector<1x8xf32>
    %9 = vector.broadcast %6 : vector<8x1xf32> to vector<8x8xf32>
    %10 = vector.broadcast %8 : vector<1x8xf32> to vector<8x8xf32>
    %11 = arith.addf %9, %10 : vector<8x8xf32>
    %12 = vector.extract_strided_slice %2 {offsets = [0, 0], sizes = [8, 8], strides = [1, 1]} : vector<8x32xbf16> to vector<8x8xbf16>
    %13 = vector.extract_strided_slice %3 {offsets = [0, 0], sizes = [8, 8], strides = [1, 1]} : vector<8x32xbf16> to vector<8x8xbf16>
    %14 = vector.extract_strided_slice %4 {offsets = [0, 0], sizes = [8, 8], strides = [1, 1]} : vector<8x32xbf16> to vector<8x8xbf16>
    %cst = arith.constant dense<0.000000e+00> : vector<8x8xf32>
    %15 = tpu.matmul %12, %13, %cst {dimension_numbers = #tpu.dot_dimension_numbers<[1], [1], [0], [0], [0, 0, 1, 0], [], []>} : vector<8x8xbf16>, vector<8x8xbf16>, vector<8x8xf32> -> vector<8x8xf32>
    %cst_8 = arith.constant 0.353553385 : f32
    %16 = vector.broadcast %cst_8 : f32 to vector<8x8xf32>
    %17 = arith.mulf %15, %16 : vector<8x8xf32>
    %18 = arith.addf %17, %11 : vector<8x8xf32>
    %cst_9 = arith.constant dense<0xFF800000> : vector<8xf32>
    %19 = vector.multi_reduction <maximumf>, %18, %cst_9 [1] : vector<8x8xf32> to vector<8xf32>
    %20 = vector.shape_cast %19 : vector<8xf32> to vector<8x1xf32>
    %21 = vector.broadcast %20 : vector<8x1xf32> to vector<8x8xf32>
    %22 = arith.subf %18, %21 : vector<8x8xf32>
    %23 = math.exp %22 : vector<8x8xf32>
    %cst_10 = arith.constant dense<0.000000e+00> : vector<8xf32>
    %24 = vector.multi_reduction <add>, %23, %cst_10 [1] : vector<8x8xf32> to vector<8xf32>
    %25 = vector.shape_cast %24 : vector<8xf32> to vector<8x1xf32>
    %26 = tpu.reciprocal %25 {approx = true} : vector<8x1xf32> -> vector<8x1xf32>
    %27 = vector.broadcast %26 : vector<8x1xf32> to vector<8x8xf32>
    %28 = arith.mulf %23, %27 : vector<8x8xf32>
    %29 = arith.truncf %28 : vector<8x8xf32> to vector<8x8xbf16>
    %cst_11 = arith.constant dense<0.000000e+00> : vector<8x8xf32>
    %30 = tpu.matmul %29, %14, %cst_11 {dimension_numbers = #tpu.dot_dimension_numbers<[1], [0], [0], [1], [0, 0, 1, 1], [], []>} : vector<8x8xbf16>, vector<8x8xbf16>, vector<8x8xf32> -> vector<8x8xf32>
    %31 = vector.extract_strided_slice %2 {offsets = [0, 8], sizes = [8, 8], strides = [1, 1]} : vector<8x32xbf16> to vector<8x8xbf16>
    %32 = vector.extract_strided_slice %3 {offsets = [0, 8], sizes = [8, 8], strides = [1, 1]} : vector<8x32xbf16> to vector<8x8xbf16>
    %33 = vector.extract_strided_slice %4 {offsets = [0, 8], sizes = [8, 8], strides = [1, 1]} : vector<8x32xbf16> to vector<8x8xbf16>
    %cst_12 = arith.constant dense<0.000000e+00> : vector<8x8xf32>
    %34 = tpu.matmul %31, %32, %cst_12 {dimension_numbers = #tpu.dot_dimension_numbers<[1], [1], [0], [0], [0, 0, 1, 0], [], []>} : vector<8x8xbf16>, vector<8x8xbf16>, vector<8x8xf32> -> vector<8x8xf32>
    %cst_13 = arith.constant 0.353553385 : f32
    %35 = vector.broadcast %cst_13 : f32 to vector<8x8xf32>
    %36 = arith.mulf %34, %35 : vector<8x8xf32>
    %37 = arith.addf %36, %11 : vector<8x8xf32>
    %cst_14 = arith.constant dense<0xFF800000> : vector<8xf32>
    %38 = vector.multi_reduction <maximumf>, %37, %cst_14 [1] : vector<8x8xf32> to vector<8xf32>
    %39 = vector.shape_cast %38 : vector<8xf32> to vector<8x1xf32>
    %40 = vector.broadcast %39 : vector<8x1xf32> to vector<8x8xf32>
    %41 = arith.subf %37, %40 : vector<8x8xf32>
    %42 = math.exp %41 : vector<8x8xf32>
    %cst_15 = arith.constant dense<0.000000e+00> : vector<8xf32>
    %43 = vector.multi_reduction <add>, %42, %cst_15 [1] : vector<8x8xf32> to vector<8xf32>
    %44 = vector.shape_cast %43 : vector<8xf32> to vector<8x1xf32>
    %45 = tpu.reciprocal %44 {approx = true} : vector<8x1xf32> -> vector<8x1xf32>
    %46 = vector.broadcast %45 : vector<8x1xf32> to vector<8x8xf32>
    %47 = arith.mulf %42, %46 : vector<8x8xf32>
    %48 = arith.truncf %47 : vector<8x8xf32> to vector<8x8xbf16>
    %cst_16 = arith.constant dense<0.000000e+00> : vector<8x8xf32>
    %49 = tpu.matmul %48, %33, %cst_16 {dimension_numbers = #tpu.dot_dimension_numbers<[1], [0], [0], [1], [0, 0, 1, 1], [], []>} : vector<8x8xbf16>, vector<8x8xbf16>, vector<8x8xf32> -> vector<8x8xf32>
    %50 = vector.extract_strided_slice %2 {offsets = [0, 16], sizes = [8, 8], strides = [1, 1]} : vector<8x32xbf16> to vector<8x8xbf16>
    %51 = vector.extract_strided_slice %3 {offsets = [0, 16], sizes = [8, 8], strides = [1, 1]} : vector<8x32xbf16> to vector<8x8xbf16>
    %52 = vector.extract_strided_slice %4 {offsets = [0, 16], sizes = [8, 8], strides = [1, 1]} : vector<8x32xbf16> to vector<8x8xbf16>
    %cst_17 = arith.constant dense<0.000000e+00> : vector<8x8xf32>
    %53 = tpu.matmul %50, %51, %cst_17 {dimension_numbers = #tpu.dot_dimension_numbers<[1], [1], [0], [0], [0, 0, 1, 0], [], []>} : vector<8x8xbf16>, vector<8x8xbf16>, vector<8x8xf32> -> vector<8x8xf32>
    %cst_18 = arith.constant 0.353553385 : f32
    %54 = vector.broadcast %cst_18 : f32 to vector<8x8xf32>
    %55 = arith.mulf %53, %54 : vector<8x8xf32>
    %56 = arith.addf %55, %11 : vector<8x8xf32>
    %cst_19 = arith.constant dense<0xFF800000> : vector<8xf32>
    %57 = vector.multi_reduction <maximumf>, %56, %cst_19 [1] : vector<8x8xf32> to vector<8xf32>
    %58 = vector.shape_cast %57 : vector<8xf32> to vector<8x1xf32>
    %59 = vector.broadcast %58 : vector<8x1xf32> to vector<8x8xf32>
    %60 = arith.subf %56, %59 : vector<8x8xf32>
    %61 = math.exp %60 : vector<8x8xf32>
    %cst_20 = arith.constant dense<0.000000e+00> : vector<8xf32>
    %62 = vector.multi_reduction <add>, %61, %cst_20 [1] : vector<8x8xf32> to vector<8xf32>
    %63 = vector.shape_cast %62 : vector<8xf32> to vector<8x1xf32>
    %64 = tpu.reciprocal %63 {approx = true} : vector<8x1xf32> -> vector<8x1xf32>
    %65 = vector.broadcast %64 : vector<8x1xf32> to vector<8x8xf32>
    %66 = arith.mulf %61, %65 : vector<8x8xf32>
    %67 = arith.truncf %66 : vector<8x8xf32> to vector<8x8xbf16>
    %cst_21 = arith.constant dense<0.000000e+00> : vector<8x8xf32>
    %68 = tpu.matmul %67, %52, %cst_21 {dimension_numbers = #tpu.dot_dimension_numbers<[1], [0], [0], [1], [0, 0, 1, 1], [], []>} : vector<8x8xbf16>, vector<8x8xbf16>, vector<8x8xf32> -> vector<8x8xf32>
    %69 = vector.extract_strided_slice %2 {offsets = [0, 24], sizes = [8, 8], strides = [1, 1]} : vector<8x32xbf16> to vector<8x8xbf16>
    %70 = vector.extract_strided_slice %3 {offsets = [0, 24], sizes = [8, 8], strides = [1, 1]} : vector<8x32xbf16> to vector<8x8xbf16>
    %71 = vector.extract_strided_slice %4 {offsets = [0, 24], sizes = [8, 8], strides = [1, 1]} : vector<8x32xbf16> to vector<8x8xbf16>
    %cst_22 = arith.constant dense<0.000000e+00> : vector<8x8xf32>
    %72 = tpu.matmul %69, %70, %cst_22 {dimension_numbers = #tpu.dot_dimension_numbers<[1], [1], [0], [0], [0, 0, 1, 0], [], []>} : vector<8x8xbf16>, vector<8x8xbf16>, vector<8x8xf32> -> vector<8x8xf32>
    %cst_23 = arith.constant 0.353553385 : f32
    %73 = vector.broadcast %cst_23 : f32 to vector<8x8xf32>
    %74 = arith.mulf %72, %73 : vector<8x8xf32>
    %75 = arith.addf %74, %11 : vector<8x8xf32>
    %cst_24 = arith.constant dense<0xFF800000> : vector<8xf32>
    %76 = vector.multi_reduction <maximumf>, %75, %cst_24 [1] : vector<8x8xf32> to vector<8xf32>
    %77 = vector.shape_cast %76 : vector<8xf32> to vector<8x1xf32>
    %78 = vector.broadcast %77 : vector<8x1xf32> to vector<8x8xf32>
    %79 = arith.subf %75, %78 : vector<8x8xf32>
    %80 = math.exp %79 : vector<8x8xf32>
    %cst_25 = arith.constant dense<0.000000e+00> : vector<8xf32>
    %81 = vector.multi_reduction <add>, %80, %cst_25 [1] : vector<8x8xf32> to vector<8xf32>
    %82 = vector.shape_cast %81 : vector<8xf32> to vector<8x1xf32>
    %83 = tpu.reciprocal %82 {approx = true} : vector<8x1xf32> -> vector<8x1xf32>
    %84 = vector.broadcast %83 : vector<8x1xf32> to vector<8x8xf32>
    %85 = arith.mulf %80, %84 : vector<8x8xf32>
    %86 = arith.truncf %85 : vector<8x8xf32> to vector<8x8xbf16>
    %cst_26 = arith.constant dense<0.000000e+00> : vector<8x8xf32>
    %87 = tpu.matmul %86, %71, %cst_26 {dimension_numbers = #tpu.dot_dimension_numbers<[1], [0], [0], [1], [0, 0, 1, 1], [], []>} : vector<8x8xbf16>, vector<8x8xbf16>, vector<8x8xf32> -> vector<8x8xf32>
    %88 = tpu.concatenate %30, %49, %68, %87 in 1 : vector<8x8xf32>, vector<8x8xf32>, vector<8x8xf32>, vector<8x8xf32> -> vector<8x32xf32>
    %89 = arith.truncf %88 : vector<8x32xf32> to vector<8x32xbf16>
    %c0_27 = arith.constant 0 : index
    %c0_28 = arith.constant 0 : index
    %c0_29 = arith.constant 0 : index
    %90 = vector.load %arg4[%c0_27, %c0_28, %c0_29] : memref<1x8x32xbf16, #tpu.memory_space<vmem>>, vector<1x8x32xbf16>
    %91 = vector.shape_cast %90 : vector<1x8x32xbf16> to vector<8x32xbf16>
    %92 = vector.shape_cast %89 : vector<8x32xbf16> to vector<1x8x32xbf16>
    tpu.vector_store %arg4[%c0_27, %c0_28, %c0_29], %92 {strides = array<i32>} : memref<1x8x32xbf16, #tpu.memory_space<vmem>>, vector<1x8x32xbf16>,
    return
  }
  func.func @transform_0(%arg0: i32) -> (i32, i32, i32) {
    %c0_i32 = arith.constant 0 : i32
    %c0_i32_0 = arith.constant 0 : i32
    %c0_i32_1 = arith.constant 0 : i32
    return %arg0, %c0_i32, %c0_i32_0 : i32, i32, i32
  }
  func.func @transform_1(%arg0: i32) -> (i32, i32, i32) {
    %c0_i32 = arith.constant 0 : i32
    %c0_i32_0 = arith.constant 0 : i32
    %c0_i32_1 = arith.constant 0 : i32
    return %arg0, %c0_i32, %c0_i32_0 : i32, i32, i32
  }
  func.func @transform_2(%arg0: i32) -> (i32, i32, i32) {
    %c0_i32 = arith.constant 0 : i32
    %c0_i32_0 = arith.constant 0 : i32
    %c0_i32_1 = arith.constant 0 : i32
    return %arg0, %c0_i32, %c0_i32_0 : i32, i32, i32
  }
  func.func @transform_3(%arg0: i32) -> (i32, i32, i32) {
    %c0_i32 = arith.constant 0 : i32
    %c0_i32_0 = arith.constant 0 : i32
    %c0_i32_1 = arith.constant 0 : i32
    return %arg0, %c0_i32, %c0_i32_0 : i32, i32, i32
  }
}

module attributes {stable_mosaic.version = 11 : i64} {
  func.func @_proj_res_ln_kernel(%arg0: i32, %arg1: memref<16x32xbf16, #tpu.memory_space<vmem>>, %arg2: memref<32x32xbf16, #tpu.memory_space<vmem>>, %arg3: memref<1x32xf32, #tpu.memory_space<vmem>>, %arg4: memref<16x32xbf16, #tpu.memory_space<vmem>>, %arg5: memref<1x32xf32, #tpu.memory_space<vmem>>, %arg6: memref<1x32xf32, #tpu.memory_space<vmem>>, %arg7: memref<16x32xbf16, #tpu.memory_space<vmem>>) attributes {dimension_semantics = [#tpu.dimension_semantics<parallel>], iteration_bounds = array<i64: 1>, scalar_prefetch = 0 : i64, scratch_operands = 0 : i64, tpu.core_type = #tpu.core_type<tc>, window_params = [{transform_indices = @transform_0, window_bounds = array<i64: 16, 32>}, {pipeline_mode = #tpu.pipeline_mode<synchronous>, transform_indices = @transform_1, window_bounds = array<i64: 32, 32>}, {pipeline_mode = #tpu.pipeline_mode<synchronous>, transform_indices = @transform_2, window_bounds = array<i64: 1, 32>}, {transform_indices = @transform_3, window_bounds = array<i64: 16, 32>}, {pipeline_mode = #tpu.pipeline_mode<synchronous>, transform_indices = @transform_4, window_bounds = array<i64: 1, 32>}, {pipeline_mode = #tpu.pipeline_mode<synchronous>, transform_indices = @transform_5, window_bounds = array<i64: 1, 32>}, {transform_indices = @transform_6, window_bounds = array<i64: 16, 32>}]} {
    %c0 = arith.constant 0 : index
    %c0_0 = arith.constant 0 : index
    %0 = vector.load %arg1[%c0, %c0_0] : memref<16x32xbf16, #tpu.memory_space<vmem>>, vector<16x32xbf16>
    %c0_1 = arith.constant 0 : index
    %c0_2 = arith.constant 0 : index
    %1 = vector.load %arg2[%c0_1, %c0_2] : memref<32x32xbf16, #tpu.memory_space<vmem>>, vector<32x32xbf16>
    %cst = arith.constant dense<0.000000e+00> : vector<16x32xf32>
    %2 = tpu.matmul %0, %1, %cst {dimension_numbers = #tpu.dot_dimension_numbers<[1], [0], [0], [1], [0, 0, 1, 1], [], []>} : vector<16x32xbf16>, vector<32x32xbf16>, vector<16x32xf32> -> vector<16x32xf32>
    %c0_3 = arith.constant 0 : index
    %c0_4 = arith.constant 0 : index
    %3 = vector.load %arg3[%c0_3, %c0_4] : memref<1x32xf32, #tpu.memory_space<vmem>>, vector<1x32xf32>
    %4 = vector.broadcast %3 : vector<1x32xf32> to vector<16x32xf32>
    %5 = arith.addf %2, %4 : vector<16x32xf32>
    %c0_5 = arith.constant 0 : index
    %c0_6 = arith.constant 0 : index
    %6 = vector.load %arg4[%c0_5, %c0_6] : memref<16x32xbf16, #tpu.memory_space<vmem>>, vector<16x32xbf16>
    %7 = arith.extf %6 : vector<16x32xbf16> to vector<16x32xf32>
    %8 = arith.addf %5, %7 : vector<16x32xf32>
    %cst_7 = arith.constant dense<0.000000e+00> : vector<16xf32>
    %9 = vector.multi_reduction <add>, %8, %cst_7 [1] : vector<16x32xf32> to vector<16xf32>
    %10 = vector.shape_cast %9 : vector<16xf32> to vector<16x1xf32>
    %cst_8 = arith.constant 3.200000e+01 : f32
    %11 = vector.broadcast %cst_8 : f32 to vector<16x1xf32>
    %12 = arith.divf %10, %11 : vector<16x1xf32>
    %13 = vector.broadcast %12 : vector<16x1xf32> to vector<16x32xf32>
    %14 = arith.subf %8, %13 : vector<16x32xf32>
    %15 = arith.mulf %14, %14 : vector<16x32xf32>
    %cst_9 = arith.constant dense<0.000000e+00> : vector<16xf32>
    %16 = vector.multi_reduction <add>, %15, %cst_9 [1] : vector<16x32xf32> to vector<16xf32>
    %17 = vector.shape_cast %16 : vector<16xf32> to vector<16x1xf32>
    %cst_10 = arith.constant 3.200000e+01 : f32
    %18 = vector.broadcast %cst_10 : f32 to vector<16x1xf32>
    %19 = arith.divf %17, %18 : vector<16x1xf32>
    %20 = vector.broadcast %12 : vector<16x1xf32> to vector<16x32xf32>
    %21 = arith.subf %8, %20 : vector<16x32xf32>
    %cst_11 = arith.constant 9.99999974E-6 : f32
    %22 = vector.broadcast %cst_11 : f32 to vector<16x1xf32>
    %23 = arith.addf %19, %22 : vector<16x1xf32>
    %24 = math.rsqrt %23 : vector<16x1xf32>
    %25 = vector.broadcast %24 : vector<16x1xf32> to vector<16x32xf32>
    %26 = arith.mulf %21, %25 : vector<16x32xf32>
    %c0_12 = arith.constant 0 : index
    %c0_13 = arith.constant 0 : index
    %27 = vector.load %arg5[%c0_12, %c0_13] : memref<1x32xf32, #tpu.memory_space<vmem>>, vector<1x32xf32>
    %28 = vector.broadcast %27 : vector<1x32xf32> to vector<16x32xf32>
    %29 = arith.mulf %26, %28 : vector<16x32xf32>
    %c0_14 = arith.constant 0 : index
    %c0_15 = arith.constant 0 : index
    %30 = vector.load %arg6[%c0_14, %c0_15] : memref<1x32xf32, #tpu.memory_space<vmem>>, vector<1x32xf32>
    %31 = vector.broadcast %30 : vector<1x32xf32> to vector<16x32xf32>
    %32 = arith.addf %29, %31 : vector<16x32xf32>
    %33 = arith.truncf %32 : vector<16x32xf32> to vector<16x32xbf16>
    %c0_16 = arith.constant 0 : index
    %c0_17 = arith.constant 0 : index
    %34 = vector.load %arg7[%c0_16, %c0_17] : memref<16x32xbf16, #tpu.memory_space<vmem>>, vector<16x32xbf16>
    tpu.vector_store %arg7[%c0_16, %c0_17], %33 {strides = array<i32>} : memref<16x32xbf16, #tpu.memory_space<vmem>>, vector<16x32xbf16>,
    return
  }
  func.func @transform_0(%arg0: i32) -> (i32, i32) {
    %c0_i32 = arith.constant 0 : i32
    %c0_i32_0 = arith.constant 0 : i32
    return %arg0, %c0_i32 : i32, i32
  }
  func.func @transform_1(%arg0: i32) -> (i32, i32) {
    %c0_i32 = arith.constant 0 : i32
    %c0_i32_0 = arith.constant 0 : i32
    %c0_i32_1 = arith.constant 0 : i32
    return %c0_i32, %c0_i32_0 : i32, i32
  }
  func.func @transform_2(%arg0: i32) -> (i32, i32) {
    %c0_i32 = arith.constant 0 : i32
    %c0_i32_0 = arith.constant 0 : i32
    %c0_i32_1 = arith.constant 0 : i32
    return %c0_i32, %c0_i32_0 : i32, i32
  }
  func.func @transform_3(%arg0: i32) -> (i32, i32) {
    %c0_i32 = arith.constant 0 : i32
    %c0_i32_0 = arith.constant 0 : i32
    return %arg0, %c0_i32 : i32, i32
  }
  func.func @transform_4(%arg0: i32) -> (i32, i32) {
    %c0_i32 = arith.constant 0 : i32
    %c0_i32_0 = arith.constant 0 : i32
    %c0_i32_1 = arith.constant 0 : i32
    return %c0_i32, %c0_i32_0 : i32, i32
  }
  func.func @transform_5(%arg0: i32) -> (i32, i32) {
    %c0_i32 = arith.constant 0 : i32
    %c0_i32_0 = arith.constant 0 : i32
    %c0_i32_1 = arith.constant 0 : i32
    return %c0_i32, %c0_i32_0 : i32, i32
  }
  func.func @transform_6(%arg0: i32) -> (i32, i32) {
    %c0_i32 = arith.constant 0 : i32
    %c0_i32_0 = arith.constant 0 : i32
    return %arg0, %c0_i32 : i32, i32
  }
}

module attributes {stable_mosaic.version = 11 : i64} {
  func.func @_ffn_res_ln_kernel(%arg0: i32, %arg1: memref<16x32xbf16, #tpu.memory_space<vmem>>, %arg2: memref<32x64xbf16, #tpu.memory_space<vmem>>, %arg3: memref<1x64xf32, #tpu.memory_space<vmem>>, %arg4: memref<64x32xbf16, #tpu.memory_space<vmem>>, %arg5: memref<1x32xf32, #tpu.memory_space<vmem>>, %arg6: memref<1x32xf32, #tpu.memory_space<vmem>>, %arg7: memref<1x32xf32, #tpu.memory_space<vmem>>, %arg8: memref<16x32xbf16, #tpu.memory_space<vmem>>) attributes {dimension_semantics = [#tpu.dimension_semantics<parallel>], iteration_bounds = array<i64: 1>, scalar_prefetch = 0 : i64, scratch_operands = 0 : i64, tpu.core_type = #tpu.core_type<tc>, window_params = [{transform_indices = @transform_0, window_bounds = array<i64: 16, 32>}, {pipeline_mode = #tpu.pipeline_mode<synchronous>, transform_indices = @transform_1, window_bounds = array<i64: 32, 64>}, {pipeline_mode = #tpu.pipeline_mode<synchronous>, transform_indices = @transform_2, window_bounds = array<i64: 1, 64>}, {pipeline_mode = #tpu.pipeline_mode<synchronous>, transform_indices = @transform_3, window_bounds = array<i64: 64, 32>}, {pipeline_mode = #tpu.pipeline_mode<synchronous>, transform_indices = @transform_4, window_bounds = array<i64: 1, 32>}, {pipeline_mode = #tpu.pipeline_mode<synchronous>, transform_indices = @transform_5, window_bounds = array<i64: 1, 32>}, {pipeline_mode = #tpu.pipeline_mode<synchronous>, transform_indices = @transform_6, window_bounds = array<i64: 1, 32>}, {transform_indices = @transform_7, window_bounds = array<i64: 16, 32>}]} {
    %c0 = arith.constant 0 : index
    %c0_0 = arith.constant 0 : index
    %0 = vector.load %arg1[%c0, %c0_0] : memref<16x32xbf16, #tpu.memory_space<vmem>>, vector<16x32xbf16>
    %c0_1 = arith.constant 0 : index
    %c0_2 = arith.constant 0 : index
    %1 = vector.load %arg2[%c0_1, %c0_2] : memref<32x64xbf16, #tpu.memory_space<vmem>>, vector<32x64xbf16>
    %cst = arith.constant dense<0.000000e+00> : vector<16x64xf32>
    %2 = tpu.matmul %0, %1, %cst {dimension_numbers = #tpu.dot_dimension_numbers<[1], [0], [0], [1], [0, 0, 1, 1], [], []>} : vector<16x32xbf16>, vector<32x64xbf16>, vector<16x64xf32> -> vector<16x64xf32>
    %c0_3 = arith.constant 0 : index
    %c0_4 = arith.constant 0 : index
    %3 = vector.load %arg3[%c0_3, %c0_4] : memref<1x64xf32, #tpu.memory_space<vmem>>, vector<1x64xf32>
    %4 = vector.broadcast %3 : vector<1x64xf32> to vector<16x64xf32>
    %5 = arith.addf %2, %4 : vector<16x64xf32>
    %cst_5 = arith.constant 0.000000e+00 : f32
    %6 = vector.broadcast %cst_5 : f32 to vector<16x64xf32>
    %7 = arith.maximumf %5, %6 : vector<16x64xf32>
    %8 = arith.truncf %7 : vector<16x64xf32> to vector<16x64xbf16>
    %c0_6 = arith.constant 0 : index
    %c0_7 = arith.constant 0 : index
    %9 = vector.load %arg4[%c0_6, %c0_7] : memref<64x32xbf16, #tpu.memory_space<vmem>>, vector<64x32xbf16>
    %cst_8 = arith.constant dense<0.000000e+00> : vector<16x32xf32>
    %10 = tpu.matmul %8, %9, %cst_8 {dimension_numbers = #tpu.dot_dimension_numbers<[1], [0], [0], [1], [0, 0, 1, 1], [], []>} : vector<16x64xbf16>, vector<64x32xbf16>, vector<16x32xf32> -> vector<16x32xf32>
    %c0_9 = arith.constant 0 : index
    %c0_10 = arith.constant 0 : index
    %11 = vector.load %arg5[%c0_9, %c0_10] : memref<1x32xf32, #tpu.memory_space<vmem>>, vector<1x32xf32>
    %12 = vector.broadcast %11 : vector<1x32xf32> to vector<16x32xf32>
    %13 = arith.addf %10, %12 : vector<16x32xf32>
    %14 = arith.extf %0 : vector<16x32xbf16> to vector<16x32xf32>
    %15 = arith.addf %13, %14 : vector<16x32xf32>
    %cst_11 = arith.constant dense<0.000000e+00> : vector<16xf32>
    %16 = vector.multi_reduction <add>, %15, %cst_11 [1] : vector<16x32xf32> to vector<16xf32>
    %17 = vector.shape_cast %16 : vector<16xf32> to vector<16x1xf32>
    %cst_12 = arith.constant 3.200000e+01 : f32
    %18 = vector.broadcast %cst_12 : f32 to vector<16x1xf32>
    %19 = arith.divf %17, %18 : vector<16x1xf32>
    %20 = vector.broadcast %19 : vector<16x1xf32> to vector<16x32xf32>
    %21 = arith.subf %15, %20 : vector<16x32xf32>
    %22 = arith.mulf %21, %21 : vector<16x32xf32>
    %cst_13 = arith.constant dense<0.000000e+00> : vector<16xf32>
    %23 = vector.multi_reduction <add>, %22, %cst_13 [1] : vector<16x32xf32> to vector<16xf32>
    %24 = vector.shape_cast %23 : vector<16xf32> to vector<16x1xf32>
    %cst_14 = arith.constant 3.200000e+01 : f32
    %25 = vector.broadcast %cst_14 : f32 to vector<16x1xf32>
    %26 = arith.divf %24, %25 : vector<16x1xf32>
    %27 = vector.broadcast %19 : vector<16x1xf32> to vector<16x32xf32>
    %28 = arith.subf %15, %27 : vector<16x32xf32>
    %cst_15 = arith.constant 9.99999974E-6 : f32
    %29 = vector.broadcast %cst_15 : f32 to vector<16x1xf32>
    %30 = arith.addf %26, %29 : vector<16x1xf32>
    %31 = math.rsqrt %30 : vector<16x1xf32>
    %32 = vector.broadcast %31 : vector<16x1xf32> to vector<16x32xf32>
    %33 = arith.mulf %28, %32 : vector<16x32xf32>
    %c0_16 = arith.constant 0 : index
    %c0_17 = arith.constant 0 : index
    %34 = vector.load %arg6[%c0_16, %c0_17] : memref<1x32xf32, #tpu.memory_space<vmem>>, vector<1x32xf32>
    %35 = vector.broadcast %34 : vector<1x32xf32> to vector<16x32xf32>
    %36 = arith.mulf %33, %35 : vector<16x32xf32>
    %c0_18 = arith.constant 0 : index
    %c0_19 = arith.constant 0 : index
    %37 = vector.load %arg7[%c0_18, %c0_19] : memref<1x32xf32, #tpu.memory_space<vmem>>, vector<1x32xf32>
    %38 = vector.broadcast %37 : vector<1x32xf32> to vector<16x32xf32>
    %39 = arith.addf %36, %38 : vector<16x32xf32>
    %40 = arith.truncf %39 : vector<16x32xf32> to vector<16x32xbf16>
    %c0_20 = arith.constant 0 : index
    %c0_21 = arith.constant 0 : index
    %41 = vector.load %arg8[%c0_20, %c0_21] : memref<16x32xbf16, #tpu.memory_space<vmem>>, vector<16x32xbf16>
    tpu.vector_store %arg8[%c0_20, %c0_21], %40 {strides = array<i32>} : memref<16x32xbf16, #tpu.memory_space<vmem>>, vector<16x32xbf16>,
    return
  }
  func.func @transform_0(%arg0: i32) -> (i32, i32) {
    %c0_i32 = arith.constant 0 : i32
    %c0_i32_0 = arith.constant 0 : i32
    return %arg0, %c0_i32 : i32, i32
  }
  func.func @transform_1(%arg0: i32) -> (i32, i32) {
    %c0_i32 = arith.constant 0 : i32
    %c0_i32_0 = arith.constant 0 : i32
    %c0_i32_1 = arith.constant 0 : i32
    return %c0_i32, %c0_i32_0 : i32, i32
  }
  func.func @transform_2(%arg0: i32) -> (i32, i32) {
    %c0_i32 = arith.constant 0 : i32
    %c0_i32_0 = arith.constant 0 : i32
    %c0_i32_1 = arith.constant 0 : i32
    return %c0_i32, %c0_i32_0 : i32, i32
  }
  func.func @transform_3(%arg0: i32) -> (i32, i32) {
    %c0_i32 = arith.constant 0 : i32
    %c0_i32_0 = arith.constant 0 : i32
    %c0_i32_1 = arith.constant 0 : i32
    return %c0_i32, %c0_i32_0 : i32, i32
  }
  func.func @transform_4(%arg0: i32) -> (i32, i32) {
    %c0_i32 = arith.constant 0 : i32
    %c0_i32_0 = arith.constant 0 : i32
    %c0_i32_1 = arith.constant 0 : i32
    return %c0_i32, %c0_i32_0 : i32, i32
  }
  func.func @transform_5(%arg0: i32) -> (i32, i32) {
    %c0_i32 = arith.constant 0 : i32
    %c0_i32_0 = arith.constant 0 : i32
    %c0_i32_1 = arith.constant 0 : i32
    return %c0_i32, %c0_i32_0 : i32, i32
  }
  func.func @transform_6(%arg0: i32) -> (i32, i32) {
    %c0_i32 = arith.constant 0 : i32
    %c0_i32_0 = arith.constant 0 : i32
    %c0_i32_1 = arith.constant 0 : i32
    return %c0_i32, %c0_i32_0 : i32, i32
  }
  func.func @transform_7(%arg0: i32) -> (i32, i32) {
    %c0_i32 = arith.constant 0 : i32
    %c0_i32_0 = arith.constant 0 : i32
    return %arg0, %c0_i32 : i32, i32
  }
}

module attributes {stable_mosaic.version = 11 : i64} {
  func.func @_matmul_bias_kernel(%arg0: i32, %arg1: memref<16x32xbf16, #tpu.memory_space<vmem>>, %arg2: memref<32x64xbf16, #tpu.memory_space<vmem>>, %arg3: memref<1x64xf32, #tpu.memory_space<vmem>>, %arg4: memref<16x64xbf16, #tpu.memory_space<vmem>>) attributes {dimension_semantics = [#tpu.dimension_semantics<parallel>], iteration_bounds = array<i64: 1>, scalar_prefetch = 0 : i64, scratch_operands = 0 : i64, tpu.core_type = #tpu.core_type<tc>, window_params = [{transform_indices = @transform_0, window_bounds = array<i64: 16, 32>}, {pipeline_mode = #tpu.pipeline_mode<synchronous>, transform_indices = @transform_1, window_bounds = array<i64: 32, 64>}, {pipeline_mode = #tpu.pipeline_mode<synchronous>, transform_indices = @transform_2, window_bounds = array<i64: 1, 64>}, {transform_indices = @transform_3, window_bounds = array<i64: 16, 64>}]} {
    %c0 = arith.constant 0 : index
    %c0_0 = arith.constant 0 : index
    %0 = vector.load %arg1[%c0, %c0_0] : memref<16x32xbf16, #tpu.memory_space<vmem>>, vector<16x32xbf16>
    %c0_1 = arith.constant 0 : index
    %c0_2 = arith.constant 0 : index
    %1 = vector.load %arg2[%c0_1, %c0_2] : memref<32x64xbf16, #tpu.memory_space<vmem>>, vector<32x64xbf16>
    %cst = arith.constant dense<0.000000e+00> : vector<16x64xf32>
    %2 = tpu.matmul %0, %1, %cst {dimension_numbers = #tpu.dot_dimension_numbers<[1], [0], [0], [1], [0, 0, 1, 1], [], []>} : vector<16x32xbf16>, vector<32x64xbf16>, vector<16x64xf32> -> vector<16x64xf32>
    %c0_3 = arith.constant 0 : index
    %c0_4 = arith.constant 0 : index
    %3 = vector.load %arg3[%c0_3, %c0_4] : memref<1x64xf32, #tpu.memory_space<vmem>>, vector<1x64xf32>
    %4 = vector.broadcast %3 : vector<1x64xf32> to vector<16x64xf32>
    %5 = arith.addf %2, %4 : vector<16x64xf32>
    %6 = arith.truncf %5 : vector<16x64xf32> to vector<16x64xbf16>
    %c0_5 = arith.constant 0 : index
    %c0_6 = arith.constant 0 : index
    %7 = vector.load %arg4[%c0_5, %c0_6] : memref<16x64xbf16, #tpu.memory_space<vmem>>, vector<16x64xbf16>
    tpu.vector_store %arg4[%c0_5, %c0_6], %6 {strides = array<i32>} : memref<16x64xbf16, #tpu.memory_space<vmem>>, vector<16x64xbf16>,
    return
  }
  func.func @transform_0(%arg0: i32) -> (i32, i32) {
    %c0_i32 = arith.constant 0 : i32
    %c0_i32_0 = arith.constant 0 : i32
    return %arg0, %c0_i32 : i32, i32
  }
  func.func @transform_1(%arg0: i32) -> (i32, i32) {
    %c0_i32 = arith.constant 0 : i32
    %c0_i32_0 = arith.constant 0 : i32
    %c0_i32_1 = arith.constant 0 : i32
    return %c0_i32, %c0_i32_0 : i32, i32
  }
  func.func @transform_2(%arg0: i32) -> (i32, i32) {
    %c0_i32 = arith.constant 0 : i32
    %c0_i32_0 = arith.constant 0 : i32
    %c0_i32_1 = arith.constant 0 : i32
    return %c0_i32, %c0_i32_0 : i32, i32
  }
  func.func @transform_3(%arg0: i32) -> (i32, i32) {
    %c0_i32 = arith.constant 0 : i32
    %c0_i32_0 = arith.constant 0 : i32
    return %arg0, %c0_i32 : i32, i32
  }
}

module attributes {stable_mosaic.version = 11 : i64} {
  func.func @_self_attn_kernel(%arg0: i32, %arg1: memref<1x8x96xbf16, #tpu.memory_space<vmem>>, %arg2: memref<1x8x1xf32, #tpu.memory_space<vmem>>, %arg3: memref<1x1x8xf32, #tpu.memory_space<vmem>>, %arg4: memref<1x8x32xbf16, #tpu.memory_space<vmem>>) attributes {dimension_semantics = [#tpu.dimension_semantics<parallel>], iteration_bounds = array<i64: 2>, scalar_prefetch = 0 : i64, scratch_operands = 0 : i64, tpu.core_type = #tpu.core_type<tc>, window_params = [{transform_indices = @transform_0, window_bounds = array<i64: 1, 8, 96>}, {transform_indices = @transform_1, window_bounds = array<i64: 1, 8, 1>}, {transform_indices = @transform_2, window_bounds = array<i64: 1, 1, 8>}, {transform_indices = @transform_3, window_bounds = array<i64: 1, 8, 32>}]} {
    %c0 = arith.constant 0 : index
    %c0_0 = arith.constant 0 : index
    %c0_1 = arith.constant 0 : index
    %0 = vector.load %arg1[%c0, %c0_0, %c0_1] : memref<1x8x96xbf16, #tpu.memory_space<vmem>>, vector<1x8x96xbf16>
    %1 = vector.shape_cast %0 : vector<1x8x96xbf16> to vector<8x96xbf16>
    %2 = vector.extract_strided_slice %1 {offsets = [0, 0], sizes = [8, 32], strides = [1, 1]} : vector<8x96xbf16> to vector<8x32xbf16>
    %3 = vector.extract_strided_slice %1 {offsets = [0, 32], sizes = [8, 32], strides = [1, 1]} : vector<8x96xbf16> to vector<8x32xbf16>
    %4 = vector.extract_strided_slice %1 {offsets = [0, 64], sizes = [8, 32], strides = [1, 1]} : vector<8x96xbf16> to vector<8x32xbf16>
    %c0_2 = arith.constant 0 : index
    %c0_3 = arith.constant 0 : index
    %c0_4 = arith.constant 0 : index
    %5 = vector.load %arg2[%c0_2, %c0_3, %c0_4] : memref<1x8x1xf32, #tpu.memory_space<vmem>>, vector<1x8x1xf32>
    %6 = vector.shape_cast %5 : vector<1x8x1xf32> to vector<8x1xf32>
    %c0_5 = arith.constant 0 : index
    %c0_6 = arith.constant 0 : index
    %c0_7 = arith.constant 0 : index
    %7 = vector.load %arg3[%c0_5, %c0_6, %c0_7] : memref<1x1x8xf32, #tpu.memory_space<vmem>>, vector<1x1x8xf32>
    %8 = vector.shape_cast %7 : vector<1x1x8xf32> to vector<1x8xf32>
    %9 = vector.broadcast %6 : vector<8x1xf32> to vector<8x8xf32>
    %10 = vector.broadcast %8 : vector<1x8xf32> to vector<8x8xf32>
    %11 = arith.addf %9, %10 : vector<8x8xf32>
    %12 = tpu.iota {dimensions = array<i32: 0>} : vector<8x8xi32>
    %13 = tpu.iota {dimensions = array<i32: 1>} : vector<8x8xi32>
    %14 = arith.cmpi sgt, %13, %12 : vector<8x8xi32>
    %cst = arith.constant -1.000000e+09 : f32
    %cst_8 = arith.constant 0.000000e+00 : f32
    %15 = vector.broadcast %cst : f32 to vector<8x8xf32>
    %16 = vector.broadcast %cst_8 : f32 to vector<8x8xf32>
    %17 = arith.select %14, %15, %16 : vector<8x8xi1>, vector<8x8xf32>
    %18 = arith.addf %11, %17 : vector<8x8xf32>
    %19 = vector.extract_strided_slice %2 {offsets = [0, 0], sizes = [8, 8], strides = [1, 1]} : vector<8x32xbf16> to vector<8x8xbf16>
    %20 = vector.extract_strided_slice %3 {offsets = [0, 0], sizes = [8, 8], strides = [1, 1]} : vector<8x32xbf16> to vector<8x8xbf16>
    %21 = vector.extract_strided_slice %4 {offsets = [0, 0], sizes = [8, 8], strides = [1, 1]} : vector<8x32xbf16> to vector<8x8xbf16>
    %cst_9 = arith.constant dense<0.000000e+00> : vector<8x8xf32>
    %22 = tpu.matmul %19, %20, %cst_9 {dimension_numbers = #tpu.dot_dimension_numbers<[1], [1], [0], [0], [0, 0, 1, 0], [], []>} : vector<8x8xbf16>, vector<8x8xbf16>, vector<8x8xf32> -> vector<8x8xf32>
    %cst_10 = arith.constant 0.353553385 : f32
    %23 = vector.broadcast %cst_10 : f32 to vector<8x8xf32>
    %24 = arith.mulf %22, %23 : vector<8x8xf32>
    %25 = arith.addf %24, %18 : vector<8x8xf32>
    %cst_11 = arith.constant dense<0xFF800000> : vector<8xf32>
    %26 = vector.multi_reduction <maximumf>, %25, %cst_11 [1] : vector<8x8xf32> to vector<8xf32>
    %27 = vector.shape_cast %26 : vector<8xf32> to vector<8x1xf32>
    %28 = vector.broadcast %27 : vector<8x1xf32> to vector<8x8xf32>
    %29 = arith.subf %25, %28 : vector<8x8xf32>
    %30 = math.exp %29 : vector<8x8xf32>
    %cst_12 = arith.constant dense<0.000000e+00> : vector<8xf32>
    %31 = vector.multi_reduction <add>, %30, %cst_12 [1] : vector<8x8xf32> to vector<8xf32>
    %32 = vector.shape_cast %31 : vector<8xf32> to vector<8x1xf32>
    %33 = tpu.reciprocal %32 {approx = true} : vector<8x1xf32> -> vector<8x1xf32>
    %34 = vector.broadcast %33 : vector<8x1xf32> to vector<8x8xf32>
    %35 = arith.mulf %30, %34 : vector<8x8xf32>
    %36 = arith.truncf %35 : vector<8x8xf32> to vector<8x8xbf16>
    %cst_13 = arith.constant dense<0.000000e+00> : vector<8x8xf32>
    %37 = tpu.matmul %36, %21, %cst_13 {dimension_numbers = #tpu.dot_dimension_numbers<[1], [0], [0], [1], [0, 0, 1, 1], [], []>} : vector<8x8xbf16>, vector<8x8xbf16>, vector<8x8xf32> -> vector<8x8xf32>
    %38 = vector.extract_strided_slice %2 {offsets = [0, 8], sizes = [8, 8], strides = [1, 1]} : vector<8x32xbf16> to vector<8x8xbf16>
    %39 = vector.extract_strided_slice %3 {offsets = [0, 8], sizes = [8, 8], strides = [1, 1]} : vector<8x32xbf16> to vector<8x8xbf16>
    %40 = vector.extract_strided_slice %4 {offsets = [0, 8], sizes = [8, 8], strides = [1, 1]} : vector<8x32xbf16> to vector<8x8xbf16>
    %cst_14 = arith.constant dense<0.000000e+00> : vector<8x8xf32>
    %41 = tpu.matmul %38, %39, %cst_14 {dimension_numbers = #tpu.dot_dimension_numbers<[1], [1], [0], [0], [0, 0, 1, 0], [], []>} : vector<8x8xbf16>, vector<8x8xbf16>, vector<8x8xf32> -> vector<8x8xf32>
    %cst_15 = arith.constant 0.353553385 : f32
    %42 = vector.broadcast %cst_15 : f32 to vector<8x8xf32>
    %43 = arith.mulf %41, %42 : vector<8x8xf32>
    %44 = arith.addf %43, %18 : vector<8x8xf32>
    %cst_16 = arith.constant dense<0xFF800000> : vector<8xf32>
    %45 = vector.multi_reduction <maximumf>, %44, %cst_16 [1] : vector<8x8xf32> to vector<8xf32>
    %46 = vector.shape_cast %45 : vector<8xf32> to vector<8x1xf32>
    %47 = vector.broadcast %46 : vector<8x1xf32> to vector<8x8xf32>
    %48 = arith.subf %44, %47 : vector<8x8xf32>
    %49 = math.exp %48 : vector<8x8xf32>
    %cst_17 = arith.constant dense<0.000000e+00> : vector<8xf32>
    %50 = vector.multi_reduction <add>, %49, %cst_17 [1] : vector<8x8xf32> to vector<8xf32>
    %51 = vector.shape_cast %50 : vector<8xf32> to vector<8x1xf32>
    %52 = tpu.reciprocal %51 {approx = true} : vector<8x1xf32> -> vector<8x1xf32>
    %53 = vector.broadcast %52 : vector<8x1xf32> to vector<8x8xf32>
    %54 = arith.mulf %49, %53 : vector<8x8xf32>
    %55 = arith.truncf %54 : vector<8x8xf32> to vector<8x8xbf16>
    %cst_18 = arith.constant dense<0.000000e+00> : vector<8x8xf32>
    %56 = tpu.matmul %55, %40, %cst_18 {dimension_numbers = #tpu.dot_dimension_numbers<[1], [0], [0], [1], [0, 0, 1, 1], [], []>} : vector<8x8xbf16>, vector<8x8xbf16>, vector<8x8xf32> -> vector<8x8xf32>
    %57 = vector.extract_strided_slice %2 {offsets = [0, 16], sizes = [8, 8], strides = [1, 1]} : vector<8x32xbf16> to vector<8x8xbf16>
    %58 = vector.extract_strided_slice %3 {offsets = [0, 16], sizes = [8, 8], strides = [1, 1]} : vector<8x32xbf16> to vector<8x8xbf16>
    %59 = vector.extract_strided_slice %4 {offsets = [0, 16], sizes = [8, 8], strides = [1, 1]} : vector<8x32xbf16> to vector<8x8xbf16>
    %cst_19 = arith.constant dense<0.000000e+00> : vector<8x8xf32>
    %60 = tpu.matmul %57, %58, %cst_19 {dimension_numbers = #tpu.dot_dimension_numbers<[1], [1], [0], [0], [0, 0, 1, 0], [], []>} : vector<8x8xbf16>, vector<8x8xbf16>, vector<8x8xf32> -> vector<8x8xf32>
    %cst_20 = arith.constant 0.353553385 : f32
    %61 = vector.broadcast %cst_20 : f32 to vector<8x8xf32>
    %62 = arith.mulf %60, %61 : vector<8x8xf32>
    %63 = arith.addf %62, %18 : vector<8x8xf32>
    %cst_21 = arith.constant dense<0xFF800000> : vector<8xf32>
    %64 = vector.multi_reduction <maximumf>, %63, %cst_21 [1] : vector<8x8xf32> to vector<8xf32>
    %65 = vector.shape_cast %64 : vector<8xf32> to vector<8x1xf32>
    %66 = vector.broadcast %65 : vector<8x1xf32> to vector<8x8xf32>
    %67 = arith.subf %63, %66 : vector<8x8xf32>
    %68 = math.exp %67 : vector<8x8xf32>
    %cst_22 = arith.constant dense<0.000000e+00> : vector<8xf32>
    %69 = vector.multi_reduction <add>, %68, %cst_22 [1] : vector<8x8xf32> to vector<8xf32>
    %70 = vector.shape_cast %69 : vector<8xf32> to vector<8x1xf32>
    %71 = tpu.reciprocal %70 {approx = true} : vector<8x1xf32> -> vector<8x1xf32>
    %72 = vector.broadcast %71 : vector<8x1xf32> to vector<8x8xf32>
    %73 = arith.mulf %68, %72 : vector<8x8xf32>
    %74 = arith.truncf %73 : vector<8x8xf32> to vector<8x8xbf16>
    %cst_23 = arith.constant dense<0.000000e+00> : vector<8x8xf32>
    %75 = tpu.matmul %74, %59, %cst_23 {dimension_numbers = #tpu.dot_dimension_numbers<[1], [0], [0], [1], [0, 0, 1, 1], [], []>} : vector<8x8xbf16>, vector<8x8xbf16>, vector<8x8xf32> -> vector<8x8xf32>
    %76 = vector.extract_strided_slice %2 {offsets = [0, 24], sizes = [8, 8], strides = [1, 1]} : vector<8x32xbf16> to vector<8x8xbf16>
    %77 = vector.extract_strided_slice %3 {offsets = [0, 24], sizes = [8, 8], strides = [1, 1]} : vector<8x32xbf16> to vector<8x8xbf16>
    %78 = vector.extract_strided_slice %4 {offsets = [0, 24], sizes = [8, 8], strides = [1, 1]} : vector<8x32xbf16> to vector<8x8xbf16>
    %cst_24 = arith.constant dense<0.000000e+00> : vector<8x8xf32>
    %79 = tpu.matmul %76, %77, %cst_24 {dimension_numbers = #tpu.dot_dimension_numbers<[1], [1], [0], [0], [0, 0, 1, 0], [], []>} : vector<8x8xbf16>, vector<8x8xbf16>, vector<8x8xf32> -> vector<8x8xf32>
    %cst_25 = arith.constant 0.353553385 : f32
    %80 = vector.broadcast %cst_25 : f32 to vector<8x8xf32>
    %81 = arith.mulf %79, %80 : vector<8x8xf32>
    %82 = arith.addf %81, %18 : vector<8x8xf32>
    %cst_26 = arith.constant dense<0xFF800000> : vector<8xf32>
    %83 = vector.multi_reduction <maximumf>, %82, %cst_26 [1] : vector<8x8xf32> to vector<8xf32>
    %84 = vector.shape_cast %83 : vector<8xf32> to vector<8x1xf32>
    %85 = vector.broadcast %84 : vector<8x1xf32> to vector<8x8xf32>
    %86 = arith.subf %82, %85 : vector<8x8xf32>
    %87 = math.exp %86 : vector<8x8xf32>
    %cst_27 = arith.constant dense<0.000000e+00> : vector<8xf32>
    %88 = vector.multi_reduction <add>, %87, %cst_27 [1] : vector<8x8xf32> to vector<8xf32>
    %89 = vector.shape_cast %88 : vector<8xf32> to vector<8x1xf32>
    %90 = tpu.reciprocal %89 {approx = true} : vector<8x1xf32> -> vector<8x1xf32>
    %91 = vector.broadcast %90 : vector<8x1xf32> to vector<8x8xf32>
    %92 = arith.mulf %87, %91 : vector<8x8xf32>
    %93 = arith.truncf %92 : vector<8x8xf32> to vector<8x8xbf16>
    %cst_28 = arith.constant dense<0.000000e+00> : vector<8x8xf32>
    %94 = tpu.matmul %93, %78, %cst_28 {dimension_numbers = #tpu.dot_dimension_numbers<[1], [0], [0], [1], [0, 0, 1, 1], [], []>} : vector<8x8xbf16>, vector<8x8xbf16>, vector<8x8xf32> -> vector<8x8xf32>
    %95 = tpu.concatenate %37, %56, %75, %94 in 1 : vector<8x8xf32>, vector<8x8xf32>, vector<8x8xf32>, vector<8x8xf32> -> vector<8x32xf32>
    %96 = arith.truncf %95 : vector<8x32xf32> to vector<8x32xbf16>
    %c0_29 = arith.constant 0 : index
    %c0_30 = arith.constant 0 : index
    %c0_31 = arith.constant 0 : index
    %97 = vector.load %arg4[%c0_29, %c0_30, %c0_31] : memref<1x8x32xbf16, #tpu.memory_space<vmem>>, vector<1x8x32xbf16>
    %98 = vector.shape_cast %97 : vector<1x8x32xbf16> to vector<8x32xbf16>
    %99 = vector.shape_cast %96 : vector<8x32xbf16> to vector<1x8x32xbf16>
    tpu.vector_store %arg4[%c0_29, %c0_30, %c0_31], %99 {strides = array<i32>} : memref<1x8x32xbf16, #tpu.memory_space<vmem>>, vector<1x8x32xbf16>,
    return
  }
  func.func @transform_0(%arg0: i32) -> (i32, i32, i32) {
    %c0_i32 = arith.constant 0 : i32
    %c0_i32_0 = arith.constant 0 : i32
    %c0_i32_1 = arith.constant 0 : i32
    return %arg0, %c0_i32, %c0_i32_0 : i32, i32, i32
  }
  func.func @transform_1(%arg0: i32) -> (i32, i32, i32) {
    %c0_i32 = arith.constant 0 : i32
    %c0_i32_0 = arith.constant 0 : i32
    %c0_i32_1 = arith.constant 0 : i32
    return %arg0, %c0_i32, %c0_i32_0 : i32, i32, i32
  }
  func.func @transform_2(%arg0: i32) -> (i32, i32, i32) {
    %c0_i32 = arith.constant 0 : i32
    %c0_i32_0 = arith.constant 0 : i32
    %c0_i32_1 = arith.constant 0 : i32
    return %arg0, %c0_i32, %c0_i32_0 : i32, i32, i32
  }
  func.func @transform_3(%arg0: i32) -> (i32, i32, i32) {
    %c0_i32 = arith.constant 0 : i32
    %c0_i32_0 = arith.constant 0 : i32
    %c0_i32_1 = arith.constant 0 : i32
    return %arg0, %c0_i32, %c0_i32_0 : i32, i32, i32
  }
}

module attributes {stable_mosaic.version = 11 : i64} {
  func.func @_matmul_bias_kernel(%arg0: i32, %arg1: memref<16x32xbf16, #tpu.memory_space<vmem>>, %arg2: memref<32x32xbf16, #tpu.memory_space<vmem>>, %arg3: memref<1x32xf32, #tpu.memory_space<vmem>>, %arg4: memref<16x32xbf16, #tpu.memory_space<vmem>>) attributes {dimension_semantics = [#tpu.dimension_semantics<parallel>], iteration_bounds = array<i64: 1>, scalar_prefetch = 0 : i64, scratch_operands = 0 : i64, tpu.core_type = #tpu.core_type<tc>, window_params = [{transform_indices = @transform_0, window_bounds = array<i64: 16, 32>}, {pipeline_mode = #tpu.pipeline_mode<synchronous>, transform_indices = @transform_1, window_bounds = array<i64: 32, 32>}, {pipeline_mode = #tpu.pipeline_mode<synchronous>, transform_indices = @transform_2, window_bounds = array<i64: 1, 32>}, {transform_indices = @transform_3, window_bounds = array<i64: 16, 32>}]} {
    %c0 = arith.constant 0 : index
    %c0_0 = arith.constant 0 : index
    %0 = vector.load %arg1[%c0, %c0_0] : memref<16x32xbf16, #tpu.memory_space<vmem>>, vector<16x32xbf16>
    %c0_1 = arith.constant 0 : index
    %c0_2 = arith.constant 0 : index
    %1 = vector.load %arg2[%c0_1, %c0_2] : memref<32x32xbf16, #tpu.memory_space<vmem>>, vector<32x32xbf16>
    %cst = arith.constant dense<0.000000e+00> : vector<16x32xf32>
    %2 = tpu.matmul %0, %1, %cst {dimension_numbers = #tpu.dot_dimension_numbers<[1], [0], [0], [1], [0, 0, 1, 1], [], []>} : vector<16x32xbf16>, vector<32x32xbf16>, vector<16x32xf32> -> vector<16x32xf32>
    %c0_3 = arith.constant 0 : index
    %c0_4 = arith.constant 0 : index
    %3 = vector.load %arg3[%c0_3, %c0_4] : memref<1x32xf32, #tpu.memory_space<vmem>>, vector<1x32xf32>
    %4 = vector.broadcast %3 : vector<1x32xf32> to vector<16x32xf32>
    %5 = arith.addf %2, %4 : vector<16x32xf32>
    %6 = arith.truncf %5 : vector<16x32xf32> to vector<16x32xbf16>
    %c0_5 = arith.constant 0 : index
    %c0_6 = arith.constant 0 : index
    %7 = vector.load %arg4[%c0_5, %c0_6] : memref<16x32xbf16, #tpu.memory_space<vmem>>, vector<16x32xbf16>
    tpu.vector_store %arg4[%c0_5, %c0_6], %6 {strides = array<i32>} : memref<16x32xbf16, #tpu.memory_space<vmem>>, vector<16x32xbf16>,
    return
  }
  func.func @transform_0(%arg0: i32) -> (i32, i32) {
    %c0_i32 = arith.constant 0 : i32
    %c0_i32_0 = arith.constant 0 : i32
    return %arg0, %c0_i32 : i32, i32
  }
  func.func @transform_1(%arg0: i32) -> (i32, i32) {
    %c0_i32 = arith.constant 0 : i32
    %c0_i32_0 = arith.constant 0 : i32
    %c0_i32_1 = arith.constant 0 : i32
    return %c0_i32, %c0_i32_0 : i32, i32
  }
  func.func @transform_2(%arg0: i32) -> (i32, i32) {
    %c0_i32 = arith.constant 0 : i32
    %c0_i32_0 = arith.constant 0 : i32
    %c0_i32_1 = arith.constant 0 : i32
    return %c0_i32, %c0_i32_0 : i32, i32
  }
  func.func @transform_3(%arg0: i32) -> (i32, i32) {
    %c0_i32 = arith.constant 0 : i32
    %c0_i32_0 = arith.constant 0 : i32
    return %arg0, %c0_i32 : i32, i32
  }
}

module attributes {stable_mosaic.version = 11 : i64} {
  func.func @_matmul_bias_kernel(%arg0: i32, %arg1: memref<16x32xbf16, #tpu.memory_space<vmem>>, %arg2: memref<32x128xbf16, #tpu.memory_space<vmem>>, %arg3: memref<1x128xf32, #tpu.memory_space<vmem>>, %arg4: memref<16x128xf32, #tpu.memory_space<vmem>>) attributes {dimension_semantics = [#tpu.dimension_semantics<parallel>], iteration_bounds = array<i64: 1>, scalar_prefetch = 0 : i64, scratch_operands = 0 : i64, tpu.core_type = #tpu.core_type<tc>, window_params = [{transform_indices = @transform_0, window_bounds = array<i64: 16, 32>}, {pipeline_mode = #tpu.pipeline_mode<synchronous>, transform_indices = @transform_1, window_bounds = array<i64: 32, 128>}, {pipeline_mode = #tpu.pipeline_mode<synchronous>, transform_indices = @transform_2, window_bounds = array<i64: 1, 128>}, {transform_indices = @transform_3, window_bounds = array<i64: 16, 128>}]} {
    %c0 = arith.constant 0 : index
    %c0_0 = arith.constant 0 : index
    %0 = vector.load %arg1[%c0, %c0_0] : memref<16x32xbf16, #tpu.memory_space<vmem>>, vector<16x32xbf16>
    %c0_1 = arith.constant 0 : index
    %c0_2 = arith.constant 0 : index
    %1 = vector.load %arg2[%c0_1, %c0_2] : memref<32x128xbf16, #tpu.memory_space<vmem>>, vector<32x128xbf16>
    %cst = arith.constant dense<0.000000e+00> : vector<16x128xf32>
    %2 = tpu.matmul %0, %1, %cst {dimension_numbers = #tpu.dot_dimension_numbers<[1], [0], [0], [1], [0, 0, 1, 1], [], []>} : vector<16x32xbf16>, vector<32x128xbf16>, vector<16x128xf32> -> vector<16x128xf32>
    %c0_3 = arith.constant 0 : index
    %c0_4 = arith.constant 0 : index
    %3 = vector.load %arg3[%c0_3, %c0_4] : memref<1x128xf32, #tpu.memory_space<vmem>>, vector<1x128xf32>
    %4 = vector.broadcast %3 : vector<1x128xf32> to vector<16x128xf32>
    %5 = arith.addf %2, %4 : vector<16x128xf32>
    %c0_5 = arith.constant 0 : index
    %c0_6 = arith.constant 0 : index
    %6 = vector.load %arg4[%c0_5, %c0_6] : memref<16x128xf32, #tpu.memory_space<vmem>>, vector<16x128xf32>
    tpu.vector_store %arg4[%c0_5, %c0_6], %5 {strides = array<i32>} : memref<16x128xf32, #tpu.memory_space<vmem>>, vector<16x128xf32>,
    return
  }
  func.func @transform_0(%arg0: i32) -> (i32, i32) {
    %c0_i32 = arith.constant 0 : i32
    %c0_i32_0 = arith.constant 0 : i32
    return %arg0, %c0_i32 : i32, i32
  }
  func.func @transform_1(%arg0: i32) -> (i32, i32) {
    %c0_i32 = arith.constant 0 : i32
    %c0_i32_0 = arith.constant 0 : i32
    %c0_i32_1 = arith.constant 0 : i32
    return %c0_i32, %c0_i32_0 : i32, i32
  }
  func.func @transform_2(%arg0: i32) -> (i32, i32) {
    %c0_i32 = arith.constant 0 : i32
    %c0_i32_0 = arith.constant 0 : i32
    %c0_i32_1 = arith.constant 0 : i32
    return %c0_i32, %c0_i32_0 : i32, i32
  }
  func.func @transform_3(%arg0: i32) -> (i32, i32) {
    %c0_i32 = arith.constant 0 : i32
    %c0_i32_0 = arith.constant 0 : i32
    return %arg0, %c0_i32 : i32, i32
  }
}

module attributes {stable_mosaic.version = 11 : i64} {
  func.func @_cross_attn_kernel(%arg0: i32, %arg1: memref<1x8x32xbf16, #tpu.memory_space<vmem>>, %arg2: memref<1x8x64xbf16, #tpu.memory_space<vmem>>, %arg3: memref<1x1x8xf32, #tpu.memory_space<vmem>>, %arg4: memref<1x8x32xbf16, #tpu.memory_space<vmem>>) attributes {dimension_semantics = [#tpu.dimension_semantics<parallel>], iteration_bounds = array<i64: 2>, scalar_prefetch = 0 : i64, scratch_operands = 0 : i64, tpu.core_type = #tpu.core_type<tc>, window_params = [{transform_indices = @transform_0, window_bounds = array<i64: 1, 8, 32>}, {transform_indices = @transform_1, window_bounds = array<i64: 1, 8, 64>}, {transform_indices = @transform_2, window_bounds = array<i64: 1, 1, 8>}, {transform_indices = @transform_3, window_bounds = array<i64: 1, 8, 32>}]} {
    %c0 = arith.constant 0 : index
    %c0_0 = arith.constant 0 : index
    %c0_1 = arith.constant 0 : index
    %0 = vector.load %arg1[%c0, %c0_0, %c0_1] : memref<1x8x32xbf16, #tpu.memory_space<vmem>>, vector<1x8x32xbf16>
    %1 = vector.shape_cast %0 : vector<1x8x32xbf16> to vector<8x32xbf16>
    %c0_2 = arith.constant 0 : index
    %c0_3 = arith.constant 0 : index
    %c0_4 = arith.constant 0 : index
    %2 = vector.load %arg2[%c0_2, %c0_3, %c0_4] : memref<1x8x64xbf16, #tpu.memory_space<vmem>>, vector<1x8x64xbf16>
    %3 = vector.shape_cast %2 : vector<1x8x64xbf16> to vector<8x64xbf16>
    %4 = vector.extract_strided_slice %3 {offsets = [0, 0], sizes = [8, 32], strides = [1, 1]} : vector<8x64xbf16> to vector<8x32xbf16>
    %5 = vector.extract_strided_slice %3 {offsets = [0, 32], sizes = [8, 32], strides = [1, 1]} : vector<8x64xbf16> to vector<8x32xbf16>
    %c0_5 = arith.constant 0 : index
    %c0_6 = arith.constant 0 : index
    %c0_7 = arith.constant 0 : index
    %6 = vector.load %arg3[%c0_5, %c0_6, %c0_7] : memref<1x1x8xf32, #tpu.memory_space<vmem>>, vector<1x1x8xf32>
    %7 = vector.shape_cast %6 : vector<1x1x8xf32> to vector<1x8xf32>
    %8 = vector.extract_strided_slice %1 {offsets = [0, 0], sizes = [8, 8], strides = [1, 1]} : vector<8x32xbf16> to vector<8x8xbf16>
    %9 = vector.extract_strided_slice %4 {offsets = [0, 0], sizes = [8, 8], strides = [1, 1]} : vector<8x32xbf16> to vector<8x8xbf16>
    %10 = vector.extract_strided_slice %5 {offsets = [0, 0], sizes = [8, 8], strides = [1, 1]} : vector<8x32xbf16> to vector<8x8xbf16>
    %cst = arith.constant dense<0.000000e+00> : vector<8x8xf32>
    %11 = tpu.matmul %8, %9, %cst {dimension_numbers = #tpu.dot_dimension_numbers<[1], [1], [0], [0], [0, 0, 1, 0], [], []>} : vector<8x8xbf16>, vector<8x8xbf16>, vector<8x8xf32> -> vector<8x8xf32>
    %cst_8 = arith.constant 0.353553385 : f32
    %12 = vector.broadcast %cst_8 : f32 to vector<8x8xf32>
    %13 = arith.mulf %11, %12 : vector<8x8xf32>
    %14 = vector.broadcast %7 : vector<1x8xf32> to vector<8x8xf32>
    %15 = arith.addf %13, %14 : vector<8x8xf32>
    %cst_9 = arith.constant dense<0xFF800000> : vector<8xf32>
    %16 = vector.multi_reduction <maximumf>, %15, %cst_9 [1] : vector<8x8xf32> to vector<8xf32>
    %17 = vector.shape_cast %16 : vector<8xf32> to vector<8x1xf32>
    %18 = vector.broadcast %17 : vector<8x1xf32> to vector<8x8xf32>
    %19 = arith.subf %15, %18 : vector<8x8xf32>
    %20 = math.exp %19 : vector<8x8xf32>
    %cst_10 = arith.constant dense<0.000000e+00> : vector<8xf32>
    %21 = vector.multi_reduction <add>, %20, %cst_10 [1] : vector<8x8xf32> to vector<8xf32>
    %22 = vector.shape_cast %21 : vector<8xf32> to vector<8x1xf32>
    %23 = tpu.reciprocal %22 {approx = true} : vector<8x1xf32> -> vector<8x1xf32>
    %24 = vector.broadcast %23 : vector<8x1xf32> to vector<8x8xf32>
    %25 = arith.mulf %20, %24 : vector<8x8xf32>
    %26 = arith.truncf %25 : vector<8x8xf32> to vector<8x8xbf16>
    %cst_11 = arith.constant dense<0.000000e+00> : vector<8x8xf32>
    %27 = tpu.matmul %26, %10, %cst_11 {dimension_numbers = #tpu.dot_dimension_numbers<[1], [0], [0], [1], [0, 0, 1, 1], [], []>} : vector<8x8xbf16>, vector<8x8xbf16>, vector<8x8xf32> -> vector<8x8xf32>
    %28 = vector.extract_strided_slice %1 {offsets = [0, 8], sizes = [8, 8], strides = [1, 1]} : vector<8x32xbf16> to vector<8x8xbf16>
    %29 = vector.extract_strided_slice %4 {offsets = [0, 8], sizes = [8, 8], strides = [1, 1]} : vector<8x32xbf16> to vector<8x8xbf16>
    %30 = vector.extract_strided_slice %5 {offsets = [0, 8], sizes = [8, 8], strides = [1, 1]} : vector<8x32xbf16> to vector<8x8xbf16>
    %cst_12 = arith.constant dense<0.000000e+00> : vector<8x8xf32>
    %31 = tpu.matmul %28, %29, %cst_12 {dimension_numbers = #tpu.dot_dimension_numbers<[1], [1], [0], [0], [0, 0, 1, 0], [], []>} : vector<8x8xbf16>, vector<8x8xbf16>, vector<8x8xf32> -> vector<8x8xf32>
    %cst_13 = arith.constant 0.353553385 : f32
    %32 = vector.broadcast %cst_13 : f32 to vector<8x8xf32>
    %33 = arith.mulf %31, %32 : vector<8x8xf32>
    %34 = vector.broadcast %7 : vector<1x8xf32> to vector<8x8xf32>
    %35 = arith.addf %33, %34 : vector<8x8xf32>
    %cst_14 = arith.constant dense<0xFF800000> : vector<8xf32>
    %36 = vector.multi_reduction <maximumf>, %35, %cst_14 [1] : vector<8x8xf32> to vector<8xf32>
    %37 = vector.shape_cast %36 : vector<8xf32> to vector<8x1xf32>
    %38 = vector.broadcast %37 : vector<8x1xf32> to vector<8x8xf32>
    %39 = arith.subf %35, %38 : vector<8x8xf32>
    %40 = math.exp %39 : vector<8x8xf32>
    %cst_15 = arith.constant dense<0.000000e+00> : vector<8xf32>
    %41 = vector.multi_reduction <add>, %40, %cst_15 [1] : vector<8x8xf32> to vector<8xf32>
    %42 = vector.shape_cast %41 : vector<8xf32> to vector<8x1xf32>
    %43 = tpu.reciprocal %42 {approx = true} : vector<8x1xf32> -> vector<8x1xf32>
    %44 = vector.broadcast %43 : vector<8x1xf32> to vector<8x8xf32>
    %45 = arith.mulf %40, %44 : vector<8x8xf32>
    %46 = arith.truncf %45 : vector<8x8xf32> to vector<8x8xbf16>
    %cst_16 = arith.constant dense<0.000000e+00> : vector<8x8xf32>
    %47 = tpu.matmul %46, %30, %cst_16 {dimension_numbers = #tpu.dot_dimension_numbers<[1], [0], [0], [1], [0, 0, 1, 1], [], []>} : vector<8x8xbf16>, vector<8x8xbf16>, vector<8x8xf32> -> vector<8x8xf32>
    %48 = vector.extract_strided_slice %1 {offsets = [0, 16], sizes = [8, 8], strides = [1, 1]} : vector<8x32xbf16> to vector<8x8xbf16>
    %49 = vector.extract_strided_slice %4 {offsets = [0, 16], sizes = [8, 8], strides = [1, 1]} : vector<8x32xbf16> to vector<8x8xbf16>
    %50 = vector.extract_strided_slice %5 {offsets = [0, 16], sizes = [8, 8], strides = [1, 1]} : vector<8x32xbf16> to vector<8x8xbf16>
    %cst_17 = arith.constant dense<0.000000e+00> : vector<8x8xf32>
    %51 = tpu.matmul %48, %49, %cst_17 {dimension_numbers = #tpu.dot_dimension_numbers<[1], [1], [0], [0], [0, 0, 1, 0], [], []>} : vector<8x8xbf16>, vector<8x8xbf16>, vector<8x8xf32> -> vector<8x8xf32>
    %cst_18 = arith.constant 0.353553385 : f32
    %52 = vector.broadcast %cst_18 : f32 to vector<8x8xf32>
    %53 = arith.mulf %51, %52 : vector<8x8xf32>
    %54 = vector.broadcast %7 : vector<1x8xf32> to vector<8x8xf32>
    %55 = arith.addf %53, %54 : vector<8x8xf32>
    %cst_19 = arith.constant dense<0xFF800000> : vector<8xf32>
    %56 = vector.multi_reduction <maximumf>, %55, %cst_19 [1] : vector<8x8xf32> to vector<8xf32>
    %57 = vector.shape_cast %56 : vector<8xf32> to vector<8x1xf32>
    %58 = vector.broadcast %57 : vector<8x1xf32> to vector<8x8xf32>
    %59 = arith.subf %55, %58 : vector<8x8xf32>
    %60 = math.exp %59 : vector<8x8xf32>
    %cst_20 = arith.constant dense<0.000000e+00> : vector<8xf32>
    %61 = vector.multi_reduction <add>, %60, %cst_20 [1] : vector<8x8xf32> to vector<8xf32>
    %62 = vector.shape_cast %61 : vector<8xf32> to vector<8x1xf32>
    %63 = tpu.reciprocal %62 {approx = true} : vector<8x1xf32> -> vector<8x1xf32>
    %64 = vector.broadcast %63 : vector<8x1xf32> to vector<8x8xf32>
    %65 = arith.mulf %60, %64 : vector<8x8xf32>
    %66 = arith.truncf %65 : vector<8x8xf32> to vector<8x8xbf16>
    %cst_21 = arith.constant dense<0.000000e+00> : vector<8x8xf32>
    %67 = tpu.matmul %66, %50, %cst_21 {dimension_numbers = #tpu.dot_dimension_numbers<[1], [0], [0], [1], [0, 0, 1, 1], [], []>} : vector<8x8xbf16>, vector<8x8xbf16>, vector<8x8xf32> -> vector<8x8xf32>
    %68 = vector.extract_strided_slice %1 {offsets = [0, 24], sizes = [8, 8], strides = [1, 1]} : vector<8x32xbf16> to vector<8x8xbf16>
    %69 = vector.extract_strided_slice %4 {offsets = [0, 24], sizes = [8, 8], strides = [1, 1]} : vector<8x32xbf16> to vector<8x8xbf16>
    %70 = vector.extract_strided_slice %5 {offsets = [0, 24], sizes = [8, 8], strides = [1, 1]} : vector<8x32xbf16> to vector<8x8xbf16>
    %cst_22 = arith.constant dense<0.000000e+00> : vector<8x8xf32>
    %71 = tpu.matmul %68, %69, %cst_22 {dimension_numbers = #tpu.dot_dimension_numbers<[1], [1], [0], [0], [0, 0, 1, 0], [], []>} : vector<8x8xbf16>, vector<8x8xbf16>, vector<8x8xf32> -> vector<8x8xf32>
    %cst_23 = arith.constant 0.353553385 : f32
    %72 = vector.broadcast %cst_23 : f32 to vector<8x8xf32>
    %73 = arith.mulf %71, %72 : vector<8x8xf32>
    %74 = vector.broadcast %7 : vector<1x8xf32> to vector<8x8xf32>
    %75 = arith.addf %73, %74 : vector<8x8xf32>
    %cst_24 = arith.constant dense<0xFF800000> : vector<8xf32>
    %76 = vector.multi_reduction <maximumf>, %75, %cst_24 [1] : vector<8x8xf32> to vector<8xf32>
    %77 = vector.shape_cast %76 : vector<8xf32> to vector<8x1xf32>
    %78 = vector.broadcast %77 : vector<8x1xf32> to vector<8x8xf32>
    %79 = arith.subf %75, %78 : vector<8x8xf32>
    %80 = math.exp %79 : vector<8x8xf32>
    %cst_25 = arith.constant dense<0.000000e+00> : vector<8xf32>
    %81 = vector.multi_reduction <add>, %80, %cst_25 [1] : vector<8x8xf32> to vector<8xf32>
    %82 = vector.shape_cast %81 : vector<8xf32> to vector<8x1xf32>
    %83 = tpu.reciprocal %82 {approx = true} : vector<8x1xf32> -> vector<8x1xf32>
    %84 = vector.broadcast %83 : vector<8x1xf32> to vector<8x8xf32>
    %85 = arith.mulf %80, %84 : vector<8x8xf32>
    %86 = arith.truncf %85 : vector<8x8xf32> to vector<8x8xbf16>
    %cst_26 = arith.constant dense<0.000000e+00> : vector<8x8xf32>
    %87 = tpu.matmul %86, %70, %cst_26 {dimension_numbers = #tpu.dot_dimension_numbers<[1], [0], [0], [1], [0, 0, 1, 1], [], []>} : vector<8x8xbf16>, vector<8x8xbf16>, vector<8x8xf32> -> vector<8x8xf32>
    %88 = tpu.concatenate %27, %47, %67, %87 in 1 : vector<8x8xf32>, vector<8x8xf32>, vector<8x8xf32>, vector<8x8xf32> -> vector<8x32xf32>
    %89 = arith.truncf %88 : vector<8x32xf32> to vector<8x32xbf16>
    %c0_27 = arith.constant 0 : index
    %c0_28 = arith.constant 0 : index
    %c0_29 = arith.constant 0 : index
    %90 = vector.load %arg4[%c0_27, %c0_28, %c0_29] : memref<1x8x32xbf16, #tpu.memory_space<vmem>>, vector<1x8x32xbf16>
    %91 = vector.shape_cast %90 : vector<1x8x32xbf16> to vector<8x32xbf16>
    %92 = vector.shape_cast %89 : vector<8x32xbf16> to vector<1x8x32xbf16>
    tpu.vector_store %arg4[%c0_27, %c0_28, %c0_29], %92 {strides = array<i32>} : memref<1x8x32xbf16, #tpu.memory_space<vmem>>, vector<1x8x32xbf16>,
    return
  }
  func.func @transform_0(%arg0: i32) -> (i32, i32, i32) {
    %c0_i32 = arith.constant 0 : i32
    %c0_i32_0 = arith.constant 0 : i32
    %c0_i32_1 = arith.constant 0 : i32
    return %arg0, %c0_i32, %c0_i32_0 : i32, i32, i32
  }
  func.func @transform_1(%arg0: i32) -> (i32, i32, i32) {
    %c0_i32 = arith.constant 0 : i32
    %c0_i32_0 = arith.constant 0 : i32
    %c0_i32_1 = arith.constant 0 : i32
    return %arg0, %c0_i32, %c0_i32_0 : i32, i32, i32
  }
  func.func @transform_2(%arg0: i32) -> (i32, i32, i32) {
    %c0_i32 = arith.constant 0 : i32
    %c0_i32_0 = arith.constant 0 : i32
    %c0_i32_1 = arith.constant 0 : i32
    return %arg0, %c0_i32, %c0_i32_0 : i32, i32, i32
  }
  func.func @transform_3(%arg0: i32) -> (i32, i32, i32) {
    %c0_i32 = arith.constant 0 : i32
    %c0_i32_0 = arith.constant 0 : i32
    %c0_i32_1 = arith.constant 0 : i32
    return %arg0, %c0_i32, %c0_i32_0 : i32, i32, i32
  }
}

</mosaic_0001>

<llo_original>
// kernel: transformer_forward.25
$region0: #{transformer_forward.25}
  #allocation0 [shape = 'u32[]', space=smem, size = 0x4, offset = 0x4, fixed_abs, tag = 'smem constant byte address 0x4 - core index']
  #allocation1 [shape = 'u32[144,128]{1,0:T(1,128)}', space=vmem, size = 0x12000, scoped, tag = 'internal scratch']
  %s0 = inlined_call_operand.vmem [shape: bf16[16,32], index: 0, kind: input, shape index: {}]
  %s1 = inlined_call_operand.vmem [shape: bf16[32,96], index: 1, kind: input, shape index: {}]
  %s2 = inlined_call_operand.vmem [shape: f32[1,96], index: 2, kind: input, shape index: {}]
  %s3 = inlined_call_operand.vmem [shape: bf16[16,96], index: 3, kind: output, shape index: {}]
  %s4 = sld [smem:[#allocation0]]
  $region22: #{transformer_forward.25} parent=0
    _
  %s6 = ssub.s32 1, %s4
  %s7 = scalar_select 0, %s6, %s4
  // Predicated region
  $region2: #{transformer_forward.25} parent=0 // pred_check
    _
  $region3: #{transformer_forward.25} parent=0 // pred_check_branch
    %9 = sbr.rel (0) target = $region5
  $region4: #{transformer_forward.25} parent=0 // pred_region
    _
  $region5: #{transformer_forward.25} parent=0 // pred_fallthru
    _
  // Predicated region
  $region6: #{transformer_forward.25} parent=0 // pred_check
    _
  $region7: #{transformer_forward.25} parent=0 // pred_check_branch
    %11 = sbr.rel (0) target = $region9
  $region8: #{transformer_forward.25} parent=0 // pred_region
    _
  $region9: #{transformer_forward.25} parent=0 // pred_fallthru
    _
  // Predicated region
  $region10: #{transformer_forward.25} parent=0 // pred_check
    _
  $region11: #{transformer_forward.25} parent=0 // pred_check_branch
    %13 = sbr.rel (0) target = $region13
  $region12: #{transformer_forward.25} parent=0 // pred_region
    _
  $region13: #{transformer_forward.25} parent=0 // pred_fallthru
    _
  %v15 = vld [vmem:[%s0] sm:$0xf]
  %v16 = vld [vmem:[%s0 + $0x4] sm:$0xf]
  %v17 = vld [vmem:[%s1] sm:$0xf]
  %v18 = vld [vmem:[%s1 + $0x4] sm:$0xf]
  %v19 = vld [vmem:[%s1 + $0x8] sm:$0xf]
  %v20 = vld [vmem:[%s1 + $0xc] sm:$0xf]
  %v21 = vld [vmem:[%s2] sm:$0x1]
  %v23 = vlaneseq
  %v24 = vshrl.u32 %v23, 7
  %v25 = vsub.s32 0, %v24
  %v26 = vrot.slane %v21, %v25
  %v30 = vunpack.c.l.b16 %v15
  %v31 = vunpack.c.l.b16 %v16
  %v32 = vpack.c.b16 %v31, %v30
  %v37 = vunpack.c.l.b16 %v17
  %v38 = vunpack.c.l.b16 %v18
  %v39 = vunpack.c.l.b16 %v19
  %v40 = vunpack.c.l.b16 %v20
  %v41 = vpack.c.b16 %v38, %v37
  %v42 = vpack.c.b16 %v40, %v39
  %vm45 = vcmask 261120
  %v47 = vsel %vm45, %v32, 0
  %49 = vmatprep.subr.bf16.mxu0 0
  %50 = vmatpush1.bf16.msra.mxu0 0
  %51 = vmatprep.subr.bf16.mxu0 0
  %52 = vmatpush1.bf16.msra.mxu0 0
  %53 = vmatprep.subr.bf16.mxu0 0
  %54 = vmatpush1.bf16.msra.mxu0 0
  %55 = vmatprep.subr.bf16.mxu0 0
  %56 = vmatpush1.bf16.msra.mxu0 0
  %57 = vmatprep.subr.bf16.mxu0 0
  %58 = vmatpush1.bf16.msra.mxu0 0
  %59 = vmatprep.subr.bf16.mxu0 0
  %60 = vmatpush1.bf16.msra.mxu0 0
  %61 = vmatprep.subr.bf16.mxu0 0
  %62 = vmatpush1.bf16.msra.mxu0 %v42
  %63 = vmatprep.subr.bf16.mxu0 0
  %64 = vmatpush1.bf16.msra.mxu0 %v41
  %65 = vmatprep.subr.bf16.mxu0 0
  %66 = vmatpush2.bf16.msra.mxu0 0
  %67 = vmatprep.subr.bf16.mxu0 0
  %68 = vmatpush2.bf16.msra.mxu0 0
  %69 = vmatprep.subr.bf16.mxu0 0
  %70 = vmatpush2.bf16.msra.mxu0 0
  %71 = vmatprep.subr.bf16.mxu0 0
  %72 = vmatpush2.bf16.msra.mxu0 0
  %73 = vmatprep.subr.bf16.mxu0 0
  %74 = vmatpush2.bf16.msra.mxu0 0
  %75 = vmatprep.subr.bf16.mxu0 0
  %76 = vmatpush2.bf16.msra.mxu0 0
  %77 = vmatprep.subr.bf16.mxu0 0
  %78 = vmatpush2.bf16.msra.mxu0 0
  %79 = vmatprep.subr.bf16.mxu0 0
  %80 = vmatpush2.bf16.msra.mxu0 0
  %81 = vmatprep.mubr.bf16.mxu0 0
  %82 = vmatmul.mubr.bf16.gmra.mxu0 %v47
  %v83 = vpop.f32.mrf.mxu0
  %v84 = vadd.f32 %v26, %v83
  %v85 = vpop.f32.mrf.mxu0
  %v86 = vpop.f32.mrf.mxu0
  %v87 = vadd.f32 %v26, %v86
  %v88 = vpop.f32.mrf.mxu0
  %89 = vdwg.mxu0
  %v90 = vpack.c.bf16 %v87, %v84
  %v92 = vunpack.c.l.b16 %v90
  %v93 = vunpack.c.h.b16 %v90
  %v94 = vpack.c.b16 %v92, %v92
  %v95 = vpack.c.b16 %v93, %v93
  %vm98 = vcmask 781312
  %99 = vst.msk [vmem:[%s3] sm:$0xf] %vm98, %v94
  %100 = vst.msk [vmem:[%s3 + $0x4] sm:$0xf] %vm98, %v95
  // Predicated region
  $region14: #{transformer_forward.25} parent=0 // pred_check
    _
  $region15: #{transformer_forward.25} parent=0 // pred_check_branch
    %102 = sbr.rel (0) target = $region17
  $region16: #{transformer_forward.25} parent=0 // pred_region
    _
  $region17: #{transformer_forward.25} parent=0 // pred_fallthru
    _
  // Predicated region
  $region18: #{transformer_forward.25} parent=0 // pred_check
    _
  $region19: #{transformer_forward.25} parent=0 // pred_check_branch
    %104 = sbr.rel (0) target = $region21
  $region20: #{transformer_forward.25} parent=0 // pred_region
    _
  $region21: #{transformer_forward.25} parent=0 // pred_fallthru
    _

// kernel: transformer_forward.27
$region0: #{transformer_forward.27}
  #allocation0 [shape = 'u32[]', space=smem, size = 0x4, offset = 0x4, fixed_abs, tag = 'smem constant byte address 0x4 - core index']
  #allocation1 [shape = 'u32[144,128]{1,0:T(1,128)}', space=vmem, size = 0x12000, scoped, tag = 'internal scratch']
  %s0 = inlined_call_operand.vmem [shape: bf16[16,32], index: 0, kind: input, shape index: {}]
  %s1 = inlined_call_operand.vmem [shape: bf16[32,32], index: 1, kind: input, shape index: {}]
  %s2 = inlined_call_operand.vmem [shape: f32[1,32], index: 2, kind: input, shape index: {}]
  %s3 = inlined_call_operand.vmem [shape: bf16[16,32], index: 3, kind: input, shape index: {}]
  %s4 = inlined_call_operand.vmem [shape: f32[1,32], index: 4, kind: input, shape index: {}]
  %s5 = inlined_call_operand.vmem [shape: f32[1,32], index: 5, kind: input, shape index: {}]
  %s6 = inlined_call_operand.vmem [shape: bf16[16,32], index: 6, kind: output, shape index: {}]
  %s7 = sld [smem:[#allocation0]]
  $region34: #{transformer_forward.27} parent=0
    _
  %s9 = ssub.s32 1, %s7
  %s10 = scalar_select 0, %s9, %s7
  // Predicated region
  $region2: #{transformer_forward.27} parent=0 // pred_check
    _
  $region3: #{transformer_forward.27} parent=0 // pred_check_branch
    %12 = sbr.rel (0) target = $region5
  $region4: #{transformer_forward.27} parent=0 // pred_region
    _
  $region5: #{transformer_forward.27} parent=0 // pred_fallthru
    _
  // Predicated region
  $region6: #{transformer_forward.27} parent=0 // pred_check
    _
  $region7: #{transformer_forward.27} parent=0 // pred_check_branch
    %14 = sbr.rel (0) target = $region9
  $region8: #{transformer_forward.27} parent=0 // pred_region
    _
  $region9: #{transformer_forward.27} parent=0 // pred_fallthru
    _
  // Predicated region
  $region10: #{transformer_forward.27} parent=0 // pred_check
    _
  $region11: #{transformer_forward.27} parent=0 // pred_check_branch
    %16 = sbr.rel (0) target = $region13
  $region12: #{transformer_forward.27} parent=0 // pred_region
    _
  $region13: #{transformer_forward.27} parent=0 // pred_fallthru
    _
  // Predicated region
  $region14: #{transformer_forward.27} parent=0 // pred_check
    _
  $region15: #{transformer_forward.27} parent=0 // pred_check_branch
    %18 = sbr.rel (0) target = $region17
  $region16: #{transformer_forward.27} parent=0 // pred_region
    _
  $region17: #{transformer_forward.27} parent=0 // pred_fallthru
    _
  // Predicated region
  $region18: #{transformer_forward.27} parent=0 // pred_check
    _
  $region19: #{transformer_forward.27} parent=0 // pred_check_branch
    %20 = sbr.rel (0) target = $region21
  $region20: #{transformer_forward.27} parent=0 // pred_region
    _
  $region21: #{transformer_forward.27} parent=0 // pred_fallthru
    _
  // Predicated region
  $region22: #{transformer_forward.27} parent=0 // pred_check
    _
  $region23: #{transformer_forward.27} parent=0 // pred_check_branch
    %22 = sbr.rel (0) target = $region25
  $region24: #{transformer_forward.27} parent=0 // pred_region
    _
  $region25: #{transformer_forward.27} parent=0 // pred_fallthru
    _
  %v24 = vld [vmem:[%s0] sm:$0xf]
  %v25 = vld [vmem:[%s0 + $0x4] sm:$0xf]
  %v26 = vld [vmem:[%s1] sm:$0xf]
  %v27 = vld [vmem:[%s1 + $0x4] sm:$0xf]
  %v28 = vld [vmem:[%s1 + $0x8] sm:$0xf]
  %v29 = vld [vmem:[%s1 + $0xc] sm:$0xf]
  %v30 = vld [vmem:[%s2] sm:$0x1]
  %v32 = vlaneseq
  %v33 = vshrl.u32 %v32, 7
  %v34 = vsub.s32 0, %v33
  %v35 = vrot.slane %v30, %v34
  %v39 = vunpack.c.l.b16 %v24
  %v40 = vunpack.c.l.b16 %v25
  %v41 = vpack.c.b16 %v40, %v39
  %v46 = vunpack.c.l.b16 %v26
  %v47 = vunpack.c.l.b16 %v27
  %v48 = vunpack.c.l.b16 %v28
  %v49 = vunpack.c.l.b16 %v29
  %v50 = vpack.c.b16 %v47, %v46
  %v51 = vpack.c.b16 %v49, %v48
  %vm54 = vcmask 261120
  %v56 = vsel %vm54, %v41, 0
  %58 = vmatprep.subr.bf16.mxu0 0
  %59 = vmatpush1.bf16.msra.mxu0 0
  %60 = vmatprep.subr.bf16.mxu0 0
  %61 = vmatpush1.bf16.msra.mxu0 0
  %62 = vmatprep.subr.bf16.mxu0 0
  %63 = vmatpush1.bf16.msra.mxu0 0
  %64 = vmatprep.subr.bf16.mxu0 0
  %65 = vmatpush1.bf16.msra.mxu0 0
  %66 = vmatprep.subr.bf16.mxu0 0
  %67 = vmatpush1.bf16.msra.mxu0 0
  %68 = vmatprep.subr.bf16.mxu0 0
  %69 = vmatpush1.bf16.msra.mxu0 0
  %70 = vmatprep.subr.bf16.mxu0 0
  %71 = vmatpush1.bf16.msra.mxu0 %v51
  %72 = vmatprep.subr.bf16.mxu0 0
  %73 = vmatpush1.bf16.msra.mxu0 %v50
  %74 = vmatprep.subr.bf16.mxu0 0
  %75 = vmatpush2.bf16.msra.mxu0 0
  %76 = vmatprep.subr.bf16.mxu0 0
  %77 = vmatpush2.bf16.msra.mxu0 0
  %78 = vmatprep.subr.bf16.mxu0 0
  %79 = vmatpush2.bf16.msra.mxu0 0
  %80 = vmatprep.subr.bf16.mxu0 0
  %81 = vmatpush2.bf16.msra.mxu0 0
  %82 = vmatprep.subr.bf16.mxu0 0
  %83 = vmatpush2.bf16.msra.mxu0 0
  %84 = vmatprep.subr.bf16.mxu0 0
  %85 = vmatpush2.bf16.msra.mxu0 0
  %86 = vmatprep.subr.bf16.mxu0 0
  %87 = vmatpush2.bf16.msra.mxu0 0
  %88 = vmatprep.subr.bf16.mxu0 0
  %89 = vmatpush2.bf16.msra.mxu0 0
  %90 = vmatprep.mubr.bf16.mxu0 0
  %91 = vmatmul.mubr.bf16.gmra.mxu0 %v56
  %v92 = vpop.f32.mrf.mxu0
  %v93 = vadd.f32 %v35, %v92
  %v94 = vpop.f32.mrf.mxu0
  %v95 = vpop.f32.mrf.mxu0
  %v96 = vadd.f32 %v35, %v95
  %v97 = vpop.f32.mrf.mxu0
  %98 = vdwg.mxu0
  %v99 = vld [vmem:[%s3] sm:$0xf]
  %v100 = vld [vmem:[%s3 + $0x4] sm:$0xf]
  %v101 = vunpack.c.l.bf16 %v99
  %v102 = vunpack.c.l.bf16 %v100
  %v103 = vadd.f32 %v93, %v101
  %v104 = vadd.f32 %v96, %v102
  %v105 = vsel %vm54, %v103, 0.0
  %106 = vadd.xlane.f32.xlu0 %v105
  %v107 = vpop.xlane.xlu0 %106
  %v108 = vsel %vm54, %v104, 0.0
  %109 = vadd.xlane.f32.xlu0 %v108
  %v110 = vpop.xlane.xlu0 %109
  %v111 = vrcp.pop 32.0
  %v112 = vmul.f32 %v107, %v111
  %v113 = vmul.f32 %v110, %v111
  %v114 = vsub.f32 %v103, %v112
  %v115 = vsub.f32 %v104, %v113
  %v116 = vmul.f32 %v114, %v114
  %v117 = vmul.f32 %v115, %v115
  %v118 = vsel %vm54, %v116, 0.0
  %119 = vadd.xlane.f32.xlu0 %v118
  %v120 = vpop.xlane.xlu0 %119
  %v121 = vsel %vm54, %v117, 0.0
  %122 = vadd.xlane.f32.xlu0 %v121
  %v123 = vpop.xlane.xlu0 %122
  %v124 = vmul.f32 %v120, %v111
  %v125 = vmul.f32 %v123, %v111
  %v126 = vadd.f32 %v124, 1e-05
  %v127 = vadd.f32 %v125, 1e-05
  %v128 = vrsqrt.pop %v126
  %v129 = vrsqrt.pop %v127
  %v130 = vmul.f32 %v114, %v128
  %v131 = vmul.f32 %v115, %v129
  %v132 = vld [vmem:[%s4] sm:$0x1]
  %v134 = vlaneseq
  %v135 = vshrl.u32 %v134, 7
  %v136 = vsub.s32 0, %v135
  %v137 = vrot.slane %v132, %v136
  %v139 = vmul.f32 %v130, %v137
  %v140 = vmul.f32 %v131, %v137
  %v141 = vld [vmem:[%s5] sm:$0x1]
  %v143 = vlaneseq
  %v144 = vshrl.u32 %v143, 7
  %v145 = vsub.s32 0, %v144
  %v146 = vrot.slane %v141, %v145
  %v148 = vadd.f32 %v139, %v146
  %v149 = vadd.f32 %v140, %v146
  %v150 = vpack.c.bf16 %v149, %v148
  %v152 = vunpack.c.l.b16 %v150
  %v153 = vunpack.c.h.b16 %v150
  %v154 = vpack.c.b16 %v152, %v152
  %v155 = vpack.c.b16 %v153, %v153
  %vm158 = vcmask 257024
  %159 = vst.msk [vmem:[%s6] sm:$0xf] %vm158, %v154
  %160 = vst.msk [vmem:[%s6 + $0x4] sm:$0xf] %vm158, %v155
  // Predicated region
  $region26: #{transformer_forward.27} parent=0 // pred_check
    _
  $region27: #{transformer_forward.27} parent=0 // pred_check_branch
    %162 = sbr.rel (0) target = $region29
  $region28: #{transformer_forward.27} parent=0 // pred_region
    _
  $region29: #{transformer_forward.27} parent=0 // pred_fallthru
    _
  // Predicated region
  $region30: #{transformer_forward.27} parent=0 // pred_check
    _
  $region31: #{transformer_forward.27} parent=0 // pred_check_branch
    %164 = sbr.rel (0) target = $region33
  $region32: #{transformer_forward.27} parent=0 // pred_region
    _
  $region33: #{transformer_forward.27} parent=0 // pred_fallthru
    _

// kernel: transformer_forward.26
$region0: #{transformer_forward.26}
  #allocation0 [shape = 'u32[]', space=smem, size = 0x4, offset = 0x4, fixed_abs, tag = 'smem constant byte address 0x4 - core index']
  #allocation1 [shape = 'u32[144,128]{1,0:T(1,128)}', space=vmem, size = 0x12000, scoped, tag = 'internal scratch']
  %s0 = inlined_call_operand.vmem [shape: bf16[2,8,96], index: 0, kind: input, shape index: {}]
  %s1 = inlined_call_operand.vmem [shape: f32[2,8,1], index: 1, kind: input, shape index: {}]
  %s2 = inlined_call_operand.vmem [shape: f32[2,1,8], index: 2, kind: input, shape index: {}]
  %s3 = inlined_call_operand.vmem [shape: bf16[2,8,32], index: 3, kind: output, shape index: {}]
  %s4 = sld [smem:[#allocation0]]
  $region45: #{transformer_forward.26} parent=0
    _
  %s6 = ssub.s32 1, %s4
  %s7 = scalar_select 0, %s6, %s4
  loop: start=0, step=1, limit=4
  $region2: #{transformer_forward.26} parent=0 // loop_pre_header
    _
  $region3: #{transformer_forward.26} parent=0 // loop_header
    %s9 = sphi 0, %s13
    %p10 = scmp.ge.s32.totalorder %s9, 4
    %s19 = sphi 0, %s21
    %s22 = sphi 0, %s19
    %s23 = sphi 0, %s22
    %s39 = sphi 0, %s23
    %s45 = sphi 0, %s47
    %s48 = sphi 0, %s45
    %s49 = sphi 0, %s48
    %s65 = sphi 0, %s49
    %s71 = sphi 0, %s73
    %s74 = sphi 0, %s71
    %s75 = sphi 0, %s74
    %s91 = sphi 0, %s75
    %s97 = sphi 0, %s99
    %s100 = sphi 0, %s97
    %s101 = sphi 0, %s100
    %s117 = sphi 0, %s101
  $region4: #{transformer_forward.26} parent=0 // loop_header_branch
    %12 = sbr.rel (%p10) target = $region8
  $region5: #{transformer_forward.26} parent=0 // loop_body
    %s14 = ssub.s32 %s9, 1
    %s15 = ssub.s32 %s9, 2
    %s16 = sadd.s32 %s9, 1
    %s17 = ssub.s32 %s9, %s16
    %p18 = scmp.eq.s32.totalorder %s17, 0
    %s20 = sadd.s32 %s19, 1
    %s21 = scalar_select %p18, %s19, %s20
    %p24 = pneg %p18
    %p25 = scmp.eq.s32.totalorder %s9, 1
    %p26 = por %p24, %p25
    %p27 = scmp.ne.s32.totalorder %s19, %s22
    %p28 = scmp.eq.s32.totalorder %s9, 0
    %p29 = por %p27, %p28
    %p30 = scmp.ne.s32.totalorder %s19, %s22
    %p31 = scmp.eq.s32.totalorder %s14, 1
    %p32 = por %p30, %p31
    %p33 = scmp.ne.s32.totalorder %s22, %s23
    %p34 = scmp.eq.s32.totalorder %s14, 0
    %p35 = por %p33, %p34
    %p36 = scmp.ne.s32.totalorder %s22, %s23
    %p37 = scmp.eq.s32.totalorder %s15, 1
    %p38 = por %p36, %p37
    %p40 = scmp.ne.s32.totalorder %s23, %s39
    %p41 = scmp.eq.s32.totalorder %s15, 0
    %p42 = por %p40, %p41
    %s43 = ssub.s32 %s9, %s16
    %p44 = scmp.eq.s32.totalorder %s43, 0
    %s46 = sadd.s32 %s45, 1
    %s47 = scalar_select %p44, %s45, %s46
    %p50 = pneg %p44
    %p51 = scmp.eq.s32.totalorder %s9, 1
    %p52 = por %p50, %p51
    %p53 = scmp.ne.s32.totalorder %s45, %s48
    %p54 = scmp.eq.s32.totalorder %s9, 0
    %p55 = por %p53, %p54
    %p56 = scmp.ne.s32.totalorder %s45, %s48
    %p57 = scmp.eq.s32.totalorder %s14, 1
    %p58 = por %p56, %p57
    %p59 = scmp.ne.s32.totalorder %s48, %s49
    %p60 = scmp.eq.s32.totalorder %s14, 0
    %p61 = por %p59, %p60
    %p62 = scmp.ne.s32.totalorder %s48, %s49
    %p63 = scmp.eq.s32.totalorder %s15, 1
    %p64 = por %p62, %p63
    %p66 = scmp.ne.s32.totalorder %s49, %s65
    %p67 = scmp.eq.s32.totalorder %s15, 0
    %p68 = por %p66, %p67
    %s69 = ssub.s32 %s9, %s16
    %p70 = scmp.eq.s32.totalorder %s69, 0
    %s72 = sadd.s32 %s71, 1
    %s73 = scalar_select %p70, %s71, %s72
    %p76 = pneg %p70
    %p77 = scmp.eq.s32.totalorder %s9, 1
    %p78 = por %p76, %p77
    %p79 = scmp.ne.s32.totalorder %s71, %s74
    %p80 = scmp.eq.s32.totalorder %s9, 0
    %p81 = por %p79, %p80
    %p82 = scmp.ne.s32.totalorder %s71, %s74
    %p83 = scmp.eq.s32.totalorder %s14, 1
    %p84 = por %p82, %p83
    %p85 = scmp.ne.s32.totalorder %s74, %s75
    %p86 = scmp.eq.s32.totalorder %s14, 0
    %p87 = por %p85, %p86
    %p88 = scmp.ne.s32.totalorder %s74, %s75
    %p89 = scmp.eq.s32.totalorder %s15, 1
    %p90 = por %p88, %p89
    %p92 = scmp.ne.s32.totalorder %s75, %s91
    %p93 = scmp.eq.s32.totalorder %s15, 0
    %p94 = por %p92, %p93
    %s95 = ssub.s32 %s9, %s16
    %p96 = scmp.eq.s32.totalorder %s95, 0
    %s98 = sadd.s32 %s97, 1
    %s99 = scalar_select %p96, %s97, %s98
    %p102 = pneg %p96
    %p103 = scmp.eq.s32.totalorder %s9, 1
    %p104 = por %p102, %p103
    %p105 = scmp.ne.s32.totalorder %s97, %s100
    %p106 = scmp.eq.s32.totalorder %s9, 0
    %p107 = por %p105, %p106
    %p108 = scmp.ne.s32.totalorder %s97, %s100
    %p109 = scmp.eq.s32.totalorder %s14, 1
    %p110 = por %p108, %p109
    %p111 = scmp.ne.s32.totalorder %s100, %s101
    %p112 = scmp.eq.s32.totalorder %s14, 0
    %p113 = por %p111, %p112
    %p114 = scmp.ne.s32.totalorder %s100, %s101
    %p115 = scmp.eq.s32.totalorder %s15, 1
    %p116 = por %p114, %p115
    %p118 = scmp.ne.s32.totalorder %s101, %s117
    %p119 = scmp.eq.s32.totalorder %s15, 0
    %p120 = por %p118, %p119
    %p121 = scmp.le.s32.totalorder 1, %s9
    %p122 = scmp.lt.s32.totalorder %s9, 3
    %p123 = pnand %p121, %p122
    %p124 = pneg %p123
    // Predicated region
    $region9: #{transformer_forward.26} parent=5 // pred_check
      _
    $region10: #{transformer_forward.26} parent=5 // pred_check_branch
      %126 = sbr.rel (%p123) target = $region12
    $region11: #{transformer_forward.26} parent=5 // pred_region
      %s127 = ssub.s32 %s9, 1
    $region12: #{transformer_forward.26} parent=5 // pred_fallthru
      _
    %p128 = scmp.lt.s32.totalorder %s9, 2
    // Predicated region
    $region13: #{transformer_forward.26} parent=5 // pred_check
      %p129 = pneg %p128
    $region14: #{transformer_forward.26} parent=5 // pred_check_branch
      %131 = sbr.rel (%p129) target = $region16
    $region15: #{transformer_forward.26} parent=5 // pred_region
      // Predicated region
      $region17: #{transformer_forward.26} parent=15 // pred_check
        %p132 = pneg %p29
      $region18: #{transformer_forward.26} parent=15 // pred_check_branch
        %134 = sbr.rel (%p132) target = $region20
      $region19: #{transformer_forward.26} parent=15 // pred_region
        %p135 = scmp.lt.s32.totalorder %s9, 1
        %s136 = scalar_select %p135, %s9, 1
        %s137 = smul.addr %s136, 4
        %s138 = scalar_lea.vmem %s0, %s137
      $region20: #{transformer_forward.26} parent=15 // pred_fallthru
        _
      // Predicated region
      $region21: #{transformer_forward.26} parent=15 // pred_check
        %p139 = pneg %p55
      $region22: #{transformer_forward.26} parent=15 // pred_check_branch
        %141 = sbr.rel (%p139) target = $region24
      $region23: #{transformer_forward.26} parent=15 // pred_region
        %p142 = scmp.lt.s32.totalorder %s9, 1
        %s143 = scalar_select %p142, %s9, 1
        %s144 = smul.addr %s143, 8
        %s145 = scalar_lea.vmem %s1, %s144
      $region24: #{transformer_forward.26} parent=15 // pred_fallthru
        _
      // Predicated region
      $region25: #{transformer_forward.26} parent=15 // pred_check
        %p146 = pneg %p81
      $region26: #{transformer_forward.26} parent=15 // pred_check_branch
        %148 = sbr.rel (%p146) target = $region28
      $region27: #{transformer_forward.26} parent=15 // pred_region
        %p149 = scmp.lt.s32.totalorder %s9, 1
        %s150 = scalar_select %p149, %s9, 1
        %s151 = scalar_lea.vmem %s2, %s150
      $region28: #{transformer_forward.26} parent=15 // pred_fallthru
        _
    $region16: #{transformer_forward.26} parent=5 // pred_fallthru
      _
    %p152 = scmp.le.s32.totalorder 1, %s9
    %p153 = scmp.lt.s32.totalorder %s9, 3
    %p154 = pnand %p152, %p153
    %p155 = pneg %p154
    // Predicated region
    $region29: #{transformer_forward.26} parent=5 // pred_check
      _
    $region30: #{transformer_forward.26} parent=5 // pred_check_branch
      %157 = sbr.rel (%p154) target = $region32
    $region31: #{transformer_forward.26} parent=5 // pred_region
      %s158 = ssub.s32 %s9, 1
      %p159 = scmp.lt.s32.totalorder %s14, 1
      %s160 = scalar_select %p159, %s14, 1
      %s161 = smul.addr %s160, 4
      %s162 = scalar_lea.vmem %s0, %s161
      %p163 = pneg %p35
      %p164 = pneg %p32
      %p165 = scmp.lt.s32.totalorder %s14, 1
      %s166 = scalar_select %p165, %s14, 1
      %s167 = smul.addr %s166, 8
      %s168 = scalar_lea.vmem %s1, %s167
      %p169 = pneg %p61
      %p170 = pneg %p58
      %p171 = scmp.lt.s32.totalorder %s14, 1
      %s172 = scalar_select %p171, %s14, 1
      %s173 = scalar_lea.vmem %s2, %s172
      %p174 = pneg %p87
      %p175 = pneg %p84
      %p176 = pneg %p113
      %p177 = pneg %p110
      %p178 = scmp.lt.s32.totalorder %s14, 1
      %s179 = scalar_select %p178, %s14, 1
      %s180 = smul.addr %s179, 4
      %s181 = scalar_lea.vmem %s3, %s180
      %p182 = scmp.lt.s32.totalorder %s14, 1
      %s183 = scalar_select %p182, %s14, 1
      %s184 = smul.addr %s183, 4
      %s185 = scalar_lea.vmem %s0, %s184
      %p186 = scmp.lt.s32.totalorder %s14, 1
      %s187 = scalar_select %p186, %s14, 1
      %s188 = smul.addr %s187, 8
      %s189 = scalar_lea.vmem %s1, %s188
      %p190 = scmp.lt.s32.totalorder %s14, 1
      %s191 = scalar_select %p190, %s14, 1
      %s192 = scalar_lea.vmem %s2, %s191
      %p193 = scmp.lt.s32.totalorder %s14, 1
      %s194 = scalar_select %p193, %s14, 1
      %s195 = smul.addr %s194, 4
      %s196 = scalar_lea.vmem %s3, %s195
      %v198 = vld [vmem:[%s185] sm:$0xf]
      %v199 = vld [vmem:[%s189] sm:$0xff]
      %v200 = vld [vmem:[%s192] sm:$0x1]
      %202 = vset.pattern.permute.xlu0 0
      %203 = vperm.xlu0 %202, %v199
      %v204 = vpop.permute.xlu0 %203
      %v207 = vlaneseq
      %v208 = vshrl.u32 %v207, 7
      %v209 = vsub.s32 0, %v208
      %v210 = vrot.slane %v200, %v209
      %v212 = vadd.f32 %v204, %v210
      %v214 = vunpack.c.l.b16 %v198
      %v215 = vpack.c.b16 %v214, %v214
      %216 = vrot.lane.b32.xlu0 %v215, 96
      %v217 = vpop.permute.xlu0 %216
      %vm218 = vcmask 64512
      %v220 = vsel %vm218, %v198, 0
      %v223 = vsel %vm218, %v217, 0
      %225 = vmatprep.subr.bf16.mxu0 0
      %226 = vmatpush1.bf16.xpose.msra.mxu0 0
      %227 = vmatprep.subr.bf16.mxu0 0
      %228 = vmatpush1.bf16.xpose.msra.mxu0 0
      %229 = vmatprep.subr.bf16.mxu0 0
      %230 = vmatpush1.bf16.xpose.msra.mxu0 0
      %231 = vmatprep.subr.bf16.mxu0 0
      %232 = vmatpush1.bf16.xpose.msra.mxu0 0
      %233 = vmatprep.subr.bf16.mxu0 0
      %234 = vmatpush1.bf16.xpose.msra.mxu0 0
      %235 = vmatprep.subr.bf16.mxu0 0
      %236 = vmatpush1.bf16.xpose.msra.mxu0 0
      %237 = vmatprep.subr.bf16.mxu0 0
      %238 = vmatpush1.bf16.xpose.msra.mxu0 0
      %239 = vmatprep.subr.bf16.mxu0 0
      %240 = vmatpush1.bf16.xpose.msra.mxu0 %v223
      %241 = vmatprep.subr.bf16.mxu0 0
      %242 = vmatpush2.bf16.xpose.msra.mxu0 0
      %243 = vmatprep.subr.bf16.mxu0 0
      %244 = vmatpush2.bf16.xpose.msra.mxu0 0
      %245 = vmatprep.subr.bf16.mxu0 0
      %246 = vmatpush2.bf16.xpose.msra.mxu0 0
      %247 = vmatprep.subr.bf16.mxu0 0
      %248 = vmatpush2.bf16.xpose.msra.mxu0 0
      %249 = vmatprep.subr.bf16.mxu0 0
      %250 = vmatpush2.bf16.xpose.msra.mxu0 0
      %251 = vmatprep.subr.bf16.mxu0 0
      %252 = vmatpush2.bf16.xpose.msra.mxu0 0
      %253 = vmatprep.subr.bf16.mxu0 0
      %254 = vmatpush2.bf16.xpose.msra.mxu0 0
      %255 = vmatprep.subr.bf16.mxu0 0
      %256 = vmatpush2.bf16.xpose.msra.mxu0 0
      %257 = vmatprep.mubr.bf16.mxu0 0
      %258 = vmatmul.mubr.bf16.gmra.mxu0 %v220
      %v259 = vpop.f32.mrf.mxu0
      %v260 = vadd.f32 0.0, %v259
      %v261 = vpop.f32.mrf.mxu0
      %v262 = vpop.f32.mrf.mxu0
      %v263 = vpop.f32.mrf.mxu0
      %264 = vdwg.mxu0
      %v265 = vmul.f32 %v260, 0.35355338
      %v266 = vadd.f32 %v265, %v212
      %v267 = vsel %vm218, %v266, -inf
      %268 = vmax.xlane.f32.xlu0 %v267
      %v269 = vpop.xlane.xlu0 %268
      %v270 = vsub.f32 %v266, %v269
      %v271 = vmul.f32 %v270, 1.442695
      %v272 = vpow.pop %v271
      %v273 = vsel %vm218, %v272, 0.0
      %274 = vadd.xlane.f32.xlu0 %v273
      %v275 = vpop.xlane.xlu0 %274
      %v276 = vrcp.pop %v275
      %v277 = vmul.f32 %v272, %v276
      %v278 = vpack.c.bf16 %v277, %v277
      %279 = vrot.lane.b32.xlu0 %v215, 64
      %v280 = vpop.permute.xlu0 %279
      %v282 = vsel %vm218, %v278, 0
      %vm284 = vcmask 1043456
      %v286 = vsel %vm284, %v280, 0
      %288 = vmatprep.subr.bf16.mxu0 0
      %289 = vmatpush1.bf16.msra.mxu0 0
      %290 = vmatprep.subr.bf16.mxu0 0
      %291 = vmatpush1.bf16.msra.mxu0 0
      %292 = vmatprep.subr.bf16.mxu0 0
      %293 = vmatpush1.bf16.msra.mxu0 0
      %294 = vmatprep.subr.bf16.mxu0 0
      %295 = vmatpush1.bf16.msra.mxu0 0
      %296 = vmatprep.subr.bf16.mxu0 0
      %297 = vmatpush1.bf16.msra.mxu0 0
      %298 = vmatprep.subr.bf16.mxu0 0
      %299 = vmatpush1.bf16.msra.mxu0 0
      %300 = vmatprep.subr.bf16.mxu0 0
      %301 = vmatpush1.bf16.msra.mxu0 0
      %302 = vmatprep.subr.bf16.mxu0 0
      %303 = vmatpush1.bf16.msra.mxu0 %v286
      %304 = vmatprep.subr.bf16.mxu0 0
      %305 = vmatpush2.bf16.msra.mxu0 0
      %306 = vmatprep.subr.bf16.mxu0 0
      %307 = vmatpush2.bf16.msra.mxu0 0
      %308 = vmatprep.subr.bf16.mxu0 0
      %309 = vmatpush2.bf16.msra.mxu0 0
      %310 = vmatprep.subr.bf16.mxu0 0
      %311 = vmatpush2.bf16.msra.mxu0 0
      %312 = vmatprep.subr.bf16.mxu0 0
      %313 = vmatpush2.bf16.msra.mxu0 0
      %314 = vmatprep.subr.bf16.mxu0 0
      %315 = vmatpush2.bf16.msra.mxu0 0
      %316 = vmatprep.subr.bf16.mxu0 0
      %317 = vmatpush2.bf16.msra.mxu0 0
      %318 = vmatprep.subr.bf16.mxu0 0
      %319 = vmatpush2.bf16.msra.mxu0 0
      %320 = vmatprep.mubr.bf16.mxu0 0
      %321 = vmatmul.mubr.bf16.gmra.mxu0 %v282
      %v322 = vpop.f32.mrf.mxu0
      %v323 = vadd.f32 0.0, %v322
      %v324 = vpop.f32.mrf.mxu0
      %v325 = vpop.f32.mrf.mxu0
      %v326 = vpop.f32.mrf.mxu0
      %327 = vdwg.mxu0
      %328 = vrot.lane.b32.xlu0 %v215, 120
      %v329 = vpop.permute.xlu0 %328
      %330 = vrot.lane.b32.xlu0 %v215, 88
      %v331 = vpop.permute.xlu0 %330
      %v333 = vsel %vm218, %v329, 0
      %v336 = vsel %vm218, %v331, 0
      %338 = vmatprep.subr.bf16.mxu0 0
      %339 = vmatpush1.bf16.xpose.msra.mxu0 0
      %340 = vmatprep.subr.bf16.mxu0 0
      %341 = vmatpush1.bf16.xpose.msra.mxu0 0
      %342 = vmatprep.subr.bf16.mxu0 0
      %343 = vmatpush1.bf16.xpose.msra.mxu0 0
      %344 = vmatprep.subr.bf16.mxu0 0
      %345 = vmatpush1.bf16.xpose.msra.mxu0 0
      %346 = vmatprep.subr.bf16.mxu0 0
      %347 = vmatpush1.bf16.xpose.msra.mxu0 0
      %348 = vmatprep.subr.bf16.mxu0 0
      %349 = vmatpush1.bf16.xpose.msra.mxu0 0
      %350 = vmatprep.subr.bf16.mxu0 0
      %351 = vmatpush1.bf16.xpose.msra.mxu0 0
      %352 = vmatprep.subr.bf16.mxu0 0
      %353 = vmatpush1.bf16.xpose.msra.mxu0 %v336
      %354 = vmatprep.subr.bf16.mxu0 0
      %355 = vmatpush2.bf16.xpose.msra.mxu0 0
      %356 = vmatprep.subr.bf16.mxu0 0
      %357 = vmatpush2.bf16.xpose.msra.mxu0 0
      %358 = vmatprep.subr.bf16.mxu0 0
      %359 = vmatpush2.bf16.xpose.msra.mxu0 0
      %360 = vmatprep.subr.bf16.mxu0 0
      %361 = vmatpush2.bf16.xpose.msra.mxu0 0
      %362 = vmatprep.subr.bf16.mxu0 0
      %363 = vmatpush2.bf16.xpose.msra.mxu0 0
      %364 = vmatprep.subr.bf16.mxu0 0
      %365 = vmatpush2.bf16.xpose.msra.mxu0 0
      %366 = vmatprep.subr.bf16.mxu0 0
      %367 = vmatpush2.bf16.xpose.msra.mxu0 0
      %368 = vmatprep.subr.bf16.mxu0 0
      %369 = vmatpush2.bf16.xpose.msra.mxu0 0
      %370 = vmatprep.mubr.bf16.mxu0 0
      %371 = vmatmul.mubr.bf16.gmra.mxu0 %v333
      %v372 = vpop.f32.mrf.mxu0
      %v373 = vadd.f32 0.0, %v372
      %v374 = vpop.f32.mrf.mxu0
      %v375 = vpop.f32.mrf.mxu0
      %v376 = vpop.f32.mrf.mxu0
      %377 = vdwg.mxu0
      %v378 = vmul.f32 %v373, 0.35355338
      %v379 = vadd.f32 %v378, %v212
      %v380 = vsel %vm218, %v379, -inf
      %381 = vmax.xlane.f32.xlu0 %v380
      %v382 = vpop.xlane.xlu0 %381
      %v383 = vsub.f32 %v379, %v382
      %v384 = vmul.f32 %v383, 1.442695
      %v385 = vpow.pop %v384
      %v386 = vsel %vm218, %v385, 0.0
      %387 = vadd.xlane.f32.xlu0 %v386
      %v388 = vpop.xlane.xlu0 %387
      %v389 = vrcp.pop %v388
      %v390 = vmul.f32 %v385, %v389
      %v391 = vpack.c.bf16 %v390, %v390
      %392 = vrot.lane.b32.xlu0 %v215, 56
      %v393 = vpop.permute.xlu0 %392
      %v395 = vsel %vm218, %v391, 0
      %v398 = vsel %vm284, %v393, 0
      %400 = vmatprep.subr.bf16.mxu0 0
      %401 = vmatpush1.bf16.msra.mxu0 0
      %402 = vmatprep.subr.bf16.mxu0 0
      %403 = vmatpush1.bf16.msra.mxu0 0
      %404 = vmatprep.subr.bf16.mxu0 0
      %405 = vmatpush1.bf16.msra.mxu0 0
      %406 = vmatprep.subr.bf16.mxu0 0
      %407 = vmatpush1.bf16.msra.mxu0 0
      %408 = vmatprep.subr.bf16.mxu0 0
      %409 = vmatpush1.bf16.msra.mxu0 0
      %410 = vmatprep.subr.bf16.mxu0 0
      %411 = vmatpush1.bf16.msra.mxu0 0
      %412 = vmatprep.subr.bf16.mxu0 0
      %413 = vmatpush1.bf16.msra.mxu0 0
      %414 = vmatprep.subr.bf16.mxu0 0
      %415 = vmatpush1.bf16.msra.mxu0 %v398
      %416 = vmatprep.subr.bf16.mxu0 0
      %417 = vmatpush2.bf16.msra.mxu0 0
      %418 = vmatprep.subr.bf16.mxu0 0
      %419 = vmatpush2.bf16.msra.mxu0 0
      %420 = vmatprep.subr.bf16.mxu0 0
      %421 = vmatpush2.bf16.msra.mxu0 0
      %422 = vmatprep.subr.bf16.mxu0 0
      %423 = vmatpush2.bf16.msra.mxu0 0
      %424 = vmatprep.subr.bf16.mxu0 0
      %425 = vmatpush2.bf16.msra.mxu0 0
      %426 = vmatprep.subr.bf16.mxu0 0
      %427 = vmatpush2.bf16.msra.mxu0 0
      %428 = vmatprep.subr.bf16.mxu0 0
      %429 = vmatpush2.bf16.msra.mxu0 0
      %430 = vmatprep.subr.bf16.mxu0 0
      %431 = vmatpush2.bf16.msra.mxu0 0
      %432 = vmatprep.mubr.bf16.mxu0 0
      %433 = vmatmul.mubr.bf16.gmra.mxu0 %v395
      %v434 = vpop.f32.mrf.mxu0
      %v435 = vadd.f32 0.0, %v434
      %v436 = vpop.f32.mrf.mxu0
      %v437 = vpop.f32.mrf.mxu0
      %v438 = vpop.f32.mrf.mxu0
      %439 = vdwg.mxu0
      %440 = vrot.lane.b32.xlu0 %v215, 112
      %v441 = vpop.permute.xlu0 %440
      %442 = vrot.lane.b32.xlu0 %v215, 80
      %v443 = vpop.permute.xlu0 %442
      %v445 = vsel %vm218, %v441, 0
      %v448 = vsel %vm218, %v443, 0
      %450 = vmatprep.subr.bf16.mxu0 0
      %451 = vmatpush1.bf16.xpose.msra.mxu0 0
      %452 = vmatprep.subr.bf16.mxu0 0
      %453 = vmatpush1.bf16.xpose.msra.mxu0 0
      %454 = vmatprep.subr.bf16.mxu0 0
      %455 = vmatpush1.bf16.xpose.msra.mxu0 0
      %456 = vmatprep.subr.bf16.mxu0 0
      %457 = vmatpush1.bf16.xpose.msra.mxu0 0
      %458 = vmatprep.subr.bf16.mxu0 0
      %459 = vmatpush1.bf16.xpose.msra.mxu0 0
      %460 = vmatprep.subr.bf16.mxu0 0
      %461 = vmatpush1.bf16.xpose.msra.mxu0 0
      %462 = vmatprep.subr.bf16.mxu0 0
      %463 = vmatpush1.bf16.xpose.msra.mxu0 0
      %464 = vmatprep.subr.bf16.mxu0 0
      %465 = vmatpush1.bf16.xpose.msra.mxu0 %v448
      %466 = vmatprep.subr.bf16.mxu0 0
      %467 = vmatpush2.bf16.xpose.msra.mxu0 0
      %468 = vmatprep.subr.bf16.mxu0 0
      %469 = vmatpush2.bf16.xpose.msra.mxu0 0
      %470 = vmatprep.subr.bf16.mxu0 0
      %471 = vmatpush2.bf16.xpose.msra.mxu0 0
      %472 = vmatprep.subr.bf16.mxu0 0
      %473 = vmatpush2.bf16.xpose.msra.mxu0 0
      %474 = vmatprep.subr.bf16.mxu0 0
      %475 = vmatpush2.bf16.xpose.msra.mxu0 0
      %476 = vmatprep.subr.bf16.mxu0 0
      %477 = vmatpush2.bf16.xpose.msra.mxu0 0
      %478 = vmatprep.subr.bf16.mxu0 0
      %479 = vmatpush2.bf16.xpose.msra.mxu0 0
      %480 = vmatprep.subr.bf16.mxu0 0
      %481 = vmatpush2.bf16.xpose.msra.mxu0 0
      %482 = vmatprep.mubr.bf16.mxu0 0
      %483 = vmatmul.mubr.bf16.gmra.mxu0 %v445
      %v484 = vpop.f32.mrf.mxu0
      %v485 = vadd.f32 0.0, %v484
      %v486 = vpop.f32.mrf.mxu0
      %v487 = vpop.f32.mrf.mxu0
      %v488 = vpop.f32.mrf.mxu0
      %489 = vdwg.mxu0
      %v490 = vmul.f32 %v485, 0.35355338
      %v491 = vadd.f32 %v490, %v212
      %v492 = vsel %vm218, %v491, -inf
      %493 = vmax.xlane.f32.xlu0 %v492
      %v494 = vpop.xlane.xlu0 %493
      %v495 = vsub.f32 %v491, %v494
      %v496 = vmul.f32 %v495, 1.442695
      %v497 = vpow.pop %v496
      %v498 = vsel %vm218, %v497, 0.0
      %499 = vadd.xlane.f32.xlu0 %v498
      %v500 = vpop.xlane.xlu0 %499
      %v501 = vrcp.pop %v500
      %v502 = vmul.f32 %v497, %v501
      %v503 = vpack.c.bf16 %v502, %v502
      %504 = vrot.lane.b32.xlu0 %v215, 48
      %v505 = vpop.permute.xlu0 %504
      %v507 = vsel %vm218, %v503, 0
      %v510 = vsel %vm284, %v505, 0
      %512 = vmatprep.subr.bf16.mxu0 0
      %513 = vmatpush1.bf16.msra.mxu0 0
      %514 = vmatprep.subr.bf16.mxu0 0
      %515 = vmatpush1.bf16.msra.mxu0 0
      %516 = vmatprep.subr.bf16.mxu0 0
      %517 = vmatpush1.bf16.msra.mxu0 0
      %518 = vmatprep.subr.bf16.mxu0 0
      %519 = vmatpush1.bf16.msra.mxu0 0
      %520 = vmatprep.subr.bf16.mxu0 0
      %521 = vmatpush1.bf16.msra.mxu0 0
      %522 = vmatprep.subr.bf16.mxu0 0
      %523 = vmatpush1.bf16.msra.mxu0 0
      %524 = vmatprep.subr.bf16.mxu0 0
      %525 = vmatpush1.bf16.msra.mxu0 0
      %526 = vmatprep.subr.bf16.mxu0 0
      %527 = vmatpush1.bf16.msra.mxu0 %v510
      %528 = vmatprep.subr.bf16.mxu0 0
      %529 = vmatpush2.bf16.msra.mxu0 0
      %530 = vmatprep.subr.bf16.mxu0 0
      %531 = vmatpush2.bf16.msra.mxu0 0
      %532 = vmatprep.subr.bf16.mxu0 0
      %533 = vmatpush2.bf16.msra.mxu0 0
      %534 = vmatprep.subr.bf16.mxu0 0
      %535 = vmatpush2.bf16.msra.mxu0 0
      %536 = vmatprep.subr.bf16.mxu0 0
      %537 = vmatpush2.bf16.msra.mxu0 0
      %538 = vmatprep.subr.bf16.mxu0 0
      %539 = vmatpush2.bf16.msra.mxu0 0
      %540 = vmatprep.subr.bf16.mxu0 0
      %541 = vmatpush2.bf16.msra.mxu0 0
      %542 = vmatprep.subr.bf16.mxu0 0
      %543 = vmatpush2.bf16.msra.mxu0 0
      %544 = vmatprep.mubr.bf16.mxu0 0
      %545 = vmatmul.mubr.bf16.gmra.mxu0 %v507
      %v546 = vpop.f32.mrf.mxu0
      %v547 = vadd.f32 0.0, %v546
      %v548 = vpop.f32.mrf.mxu0
      %v549 = vpop.f32.mrf.mxu0
      %v550 = vpop.f32.mrf.mxu0
      %551 = vdwg.mxu0
      %552 = vrot.lane.b32.xlu0 %v215, 104
      %v553 = vpop.permute.xlu0 %552
      %554 = vrot.lane.b32.xlu0 %v215, 72
      %v555 = vpop.permute.xlu0 %554
      %v557 = vsel %vm218, %v553, 0
      %v560 = vsel %vm218, %v555, 0
      %562 = vmatprep.subr.bf16.mxu0 0
      %563 = vmatpush1.bf16.xpose.msra.mxu0 0
      %564 = vmatprep.subr.bf16.mxu0 0
      %565 = vmatpush1.bf16.xpose.msra.mxu0 0
      %566 = vmatprep.subr.bf16.mxu0 0
      %567 = vmatpush1.bf16.xpose.msra.mxu0 0
      %568 = vmatprep.subr.bf16.mxu0 0
      %569 = vmatpush1.bf16.xpose.msra.mxu0 0
      %570 = vmatprep.subr.bf16.mxu0 0
      %571 = vmatpush1.bf16.xpose.msra.mxu0 0
      %572 = vmatprep.subr.bf16.mxu0 0
      %573 = vmatpush1.bf16.xpose.msra.mxu0 0
      %574 = vmatprep.subr.bf16.mxu0 0
      %575 = vmatpush1.bf16.xpose.msra.mxu0 0
      %576 = vmatprep.subr.bf16.mxu0 0
      %577 = vmatpush1.bf16.xpose.msra.mxu0 %v560
      %578 = vmatprep.subr.bf16.mxu0 0
      %579 = vmatpush2.bf16.xpose.msra.mxu0 0
      %580 = vmatprep.subr.bf16.mxu0 0
      %581 = vmatpush2.bf16.xpose.msra.mxu0 0
      %582 = vmatprep.subr.bf16.mxu0 0
      %583 = vmatpush2.bf16.xpose.msra.mxu0 0
      %584 = vmatprep.subr.bf16.mxu0 0
      %585 = vmatpush2.bf16.xpose.msra.mxu0 0
      %586 = vmatprep.subr.bf16.mxu0 0
      %587 = vmatpush2.bf16.xpose.msra.mxu0 0
      %588 = vmatprep.subr.bf16.mxu0 0
      %589 = vmatpush2.bf16.xpose.msra.mxu0 0
      %590 = vmatprep.subr.bf16.mxu0 0
      %591 = vmatpush2.bf16.xpose.msra.mxu0 0
      %592 = vmatprep.subr.bf16.mxu0 0
      %593 = vmatpush2.bf16.xpose.msra.mxu0 0
      %594 = vmatprep.mubr.bf16.mxu0 0
      %595 = vmatmul.mubr.bf16.gmra.mxu0 %v557
      %v596 = vpop.f32.mrf.mxu0
      %v597 = vadd.f32 0.0, %v596
      %v598 = vpop.f32.mrf.mxu0
      %v599 = vpop.f32.mrf.mxu0
      %v600 = vpop.f32.mrf.mxu0
      %601 = vdwg.mxu0
      %v602 = vmul.f32 %v597, 0.35355338
      %v603 = vadd.f32 %v602, %v212
      %v604 = vsel %vm218, %v603, -inf
      %605 = vmax.xlane.f32.xlu0 %v604
      %v606 = vpop.xlane.xlu0 %605
      %v607 = vsub.f32 %v603, %v606
      %v608 = vmul.f32 %v607, 1.442695
      %v609 = vpow.pop %v608
      %v610 = vsel %vm218, %v609, 0.0
      %611 = vadd.xlane.f32.xlu0 %v610
      %v612 = vpop.xlane.xlu0 %611
      %v613 = vrcp.pop %v612
      %v614 = vmul.f32 %v609, %v613
      %v615 = vpack.c.bf16 %v614, %v614
      %616 = vrot.lane.b32.xlu0 %v215, 40
      %v617 = vpop.permute.xlu0 %616
      %v619 = vsel %vm218, %v615, 0
      %v622 = vsel %vm284, %v617, 0
      %624 = vmatprep.subr.bf16.mxu0 0
      %625 = vmatpush1.bf16.msra.mxu0 0
      %626 = vmatprep.subr.bf16.mxu0 0
      %627 = vmatpush1.bf16.msra.mxu0 0
      %628 = vmatprep.subr.bf16.mxu0 0
      %629 = vmatpush1.bf16.msra.mxu0 0
      %630 = vmatprep.subr.bf16.mxu0 0
      %631 = vmatpush1.bf16.msra.mxu0 0
      %632 = vmatprep.subr.bf16.mxu0 0
      %633 = vmatpush1.bf16.msra.mxu0 0
      %634 = vmatprep.subr.bf16.mxu0 0
      %635 = vmatpush1.bf16.msra.mxu0 0
      %636 = vmatprep.subr.bf16.mxu0 0
      %637 = vmatpush1.bf16.msra.mxu0 0
      %638 = vmatprep.subr.bf16.mxu0 0
      %639 = vmatpush1.bf16.msra.mxu0 %v622
      %640 = vmatprep.subr.bf16.mxu0 0
      %641 = vmatpush2.bf16.msra.mxu0 0
      %642 = vmatprep.subr.bf16.mxu0 0
      %643 = vmatpush2.bf16.msra.mxu0 0
      %644 = vmatprep.subr.bf16.mxu0 0
      %645 = vmatpush2.bf16.msra.mxu0 0
      %646 = vmatprep.subr.bf16.mxu0 0
      %647 = vmatpush2.bf16.msra.mxu0 0
      %648 = vmatprep.subr.bf16.mxu0 0
      %649 = vmatpush2.bf16.msra.mxu0 0
      %650 = vmatprep.subr.bf16.mxu0 0
      %651 = vmatpush2.bf16.msra.mxu0 0
      %652 = vmatprep.subr.bf16.mxu0 0
      %653 = vmatpush2.bf16.msra.mxu0 0
      %654 = vmatprep.subr.bf16.mxu0 0
      %655 = vmatpush2.bf16.msra.mxu0 0
      %656 = vmatprep.mubr.bf16.mxu0 0
      %657 = vmatmul.mubr.bf16.gmra.mxu0 %v619
      %v658 = vpop.f32.mrf.mxu0
      %v659 = vadd.f32 0.0, %v658
      %v660 = vpop.f32.mrf.mxu0
      %v661 = vpop.f32.mrf.mxu0
      %v662 = vpop.f32.mrf.mxu0
      %663 = vdwg.mxu0
      %665 = vrot.lane.b32.xlu0 %v435, 8
      %v666 = vpop.permute.xlu0 %665
      %669 = vrot.lane.b32.xlu0 %v547, 16
      %v670 = vpop.permute.xlu0 %669
      %673 = vrot.lane.b32.xlu0 %v659, 24
      %v674 = vpop.permute.xlu0 %673
      %v676 = vsel %vm218, %v323, %v666
      %vm677 = vcmask 130048
      %v678 = vsel %vm677, %v676, %v670
      %vm679 = vcmask 195584
      %v680 = vsel %vm679, %v678, %v674
      %v681 = vpack.c.bf16 %v680, %v680
      %vm682 = vcmask 257024
      %683 = vst.msk [vmem:[%s196] sm:$0xf] %vm682, %v681
      %p684 = scmp.lt.s32.totalorder %s14, 1
      %s685 = scalar_select %p684, %s14, 1
      %s686 = smul.addr %s685, 4
      %s687 = scalar_lea.vmem %s3, %s686
      // Predicated region
      $region33: #{transformer_forward.26} parent=31 // pred_check
        %p688 = pneg %p110
      $region34: #{transformer_forward.26} parent=31 // pred_check_branch
        %690 = sbr.rel (%p688) target = $region36
      $region35: #{transformer_forward.26} parent=31 // pred_region
        _
      $region36: #{transformer_forward.26} parent=31 // pred_fallthru
        _
    $region32: #{transformer_forward.26} parent=5 // pred_fallthru
      _
    %p691 = scmp.le.s32.totalorder 2, %s9
    // Predicated region
    $region37: #{transformer_forward.26} parent=5 // pred_check
      %p692 = pneg %p691
    $region38: #{transformer_forward.26} parent=5 // pred_check_branch
      %694 = sbr.rel (%p692) target = $region40
    $region39: #{transformer_forward.26} parent=5 // pred_region
      %s695 = ssub.s32 %s9, 2
      // Predicated region
      $region41: #{transformer_forward.26} parent=39 // pred_check
        %p696 = pneg %p116
      $region42: #{transformer_forward.26} parent=39 // pred_check_branch
        %698 = sbr.rel (%p696) target = $region44
      $region43: #{transformer_forward.26} parent=39 // pred_region
        %p699 = scmp.lt.s32.totalorder %s15, 1
        %s700 = scalar_select %p699, %s15, 1
        %s701 = smul.addr %s700, 4
        %s702 = scalar_lea.vmem %s3, %s701
      $region44: #{transformer_forward.26} parent=39 // pred_fallthru
        _
    $region40: #{transformer_forward.26} parent=5 // pred_fallthru
      _
  $region6: #{transformer_forward.26} parent=0 // loop_footer
    %s13 = sadd.s32 1, %s9
  $region7: #{transformer_forward.26} parent=0 // loop_footer_branch
    %8 = sbr.rel target = $region3
  $region8: #{transformer_forward.26} parent=0 // loop_exit
    _

// kernel: transformer_forward.28
$region0: #{transformer_forward.28}
  #allocation0 [shape = 'u32[]', space=smem, size = 0x4, offset = 0x4, fixed_abs, tag = 'smem constant byte address 0x4 - core index']
  #allocation1 [shape = 'u32[144,128]{1,0:T(1,128)}', space=vmem, size = 0x12000, scoped, tag = 'internal scratch']
  %s0 = inlined_call_operand.vmem [shape: bf16[16,32], index: 0, kind: input, shape index: {}]
  %s1 = inlined_call_operand.vmem [shape: bf16[32,64], index: 1, kind: input, shape index: {}]
  %s2 = inlined_call_operand.vmem [shape: f32[1,64], index: 2, kind: input, shape index: {}]
  %s3 = inlined_call_operand.vmem [shape: bf16[64,32], index: 3, kind: input, shape index: {}]
  %s4 = inlined_call_operand.vmem [shape: f32[1,32], index: 4, kind: input, shape index: {}]
  %s5 = inlined_call_operand.vmem [shape: f32[1,32], index: 5, kind: input, shape index: {}]
  %s6 = inlined_call_operand.vmem [shape: f32[1,32], index: 6, kind: input, shape index: {}]
  %s7 = inlined_call_operand.vmem [shape: bf16[16,32], index: 7, kind: output, shape index: {}]
  %s8 = sld [smem:[#allocation0]]
  $region38: #{transformer_forward.28} parent=0
    _
  %s10 = ssub.s32 1, %s8
  %s11 = scalar_select 0, %s10, %s8
  // Predicated region
  $region2: #{transformer_forward.28} parent=0 // pred_check
    _
  $region3: #{transformer_forward.28} parent=0 // pred_check_branch
    %13 = sbr.rel (0) target = $region5
  $region4: #{transformer_forward.28} parent=0 // pred_region
    _
  $region5: #{transformer_forward.28} parent=0 // pred_fallthru
    _
  // Predicated region
  $region6: #{transformer_forward.28} parent=0 // pred_check
    _
  $region7: #{transformer_forward.28} parent=0 // pred_check_branch
    %15 = sbr.rel (0) target = $region9
  $region8: #{transformer_forward.28} parent=0 // pred_region
    _
  $region9: #{transformer_forward.28} parent=0 // pred_fallthru
    _
  // Predicated region
  $region10: #{transformer_forward.28} parent=0 // pred_check
    _
  $region11: #{transformer_forward.28} parent=0 // pred_check_branch
    %17 = sbr.rel (0) target = $region13
  $region12: #{transformer_forward.28} parent=0 // pred_region
    _
  $region13: #{transformer_forward.28} parent=0 // pred_fallthru
    _
  // Predicated region
  $region14: #{transformer_forward.28} parent=0 // pred_check
    _
  $region15: #{transformer_forward.28} parent=0 // pred_check_branch
    %19 = sbr.rel (0) target = $region17
  $region16: #{transformer_forward.28} parent=0 // pred_region
    _
  $region17: #{transformer_forward.28} parent=0 // pred_fallthru
    _
  // Predicated region
  $region18: #{transformer_forward.28} parent=0 // pred_check
    _
  $region19: #{transformer_forward.28} parent=0 // pred_check_branch
    %21 = sbr.rel (0) target = $region21
  $region20: #{transformer_forward.28} parent=0 // pred_region
    _
  $region21: #{transformer_forward.28} parent=0 // pred_fallthru
    _
  // Predicated region
  $region22: #{transformer_forward.28} parent=0 // pred_check
    _
  $region23: #{transformer_forward.28} parent=0 // pred_check_branch
    %23 = sbr.rel (0) target = $region25
  $region24: #{transformer_forward.28} parent=0 // pred_region
    _
  $region25: #{transformer_forward.28} parent=0 // pred_fallthru
    _
  // Predicated region
  $region26: #{transformer_forward.28} parent=0 // pred_check
    _
  $region27: #{transformer_forward.28} parent=0 // pred_check_branch
    %25 = sbr.rel (0) target = $region29
  $region28: #{transformer_forward.28} parent=0 // pred_region
    _
  $region29: #{transformer_forward.28} parent=0 // pred_fallthru
    _
  %v27 = vld [vmem:[%s0] sm:$0xf]
  %v28 = vld [vmem:[%s0 + $0x4] sm:$0xf]
  %v29 = vld [vmem:[%s1] sm:$0xf]
  %v30 = vld [vmem:[%s1 + $0x4] sm:$0xf]
  %v31 = vld [vmem:[%s1 + $0x8] sm:$0xf]
  %v32 = vld [vmem:[%s1 + $0xc] sm:$0xf]
  %v33 = vld [vmem:[%s2] sm:$0x1]
  %v35 = vlaneseq
  %v36 = vshrl.u32 %v35, 7
  %v37 = vsub.s32 0, %v36
  %v38 = vrot.slane %v33, %v37
  %v42 = vunpack.c.l.b16 %v27
  %v43 = vunpack.c.l.b16 %v28
  %v44 = vpack.c.b16 %v43, %v42
  %v49 = vunpack.c.l.b16 %v29
  %v50 = vunpack.c.l.b16 %v30
  %v51 = vunpack.c.l.b16 %v31
  %v52 = vunpack.c.l.b16 %v32
  %v53 = vpack.c.b16 %v50, %v49
  %v54 = vpack.c.b16 %v52, %v51
  %vm57 = vcmask 261120
  %v59 = vsel %vm57, %v44, 0
  %61 = vmatprep.subr.bf16.mxu0 0
  %62 = vmatpush1.bf16.msra.mxu0 0
  %63 = vmatprep.subr.bf16.mxu0 0
  %64 = vmatpush1.bf16.msra.mxu0 0
  %65 = vmatprep.subr.bf16.mxu0 0
  %66 = vmatpush1.bf16.msra.mxu0 0
  %67 = vmatprep.subr.bf16.mxu0 0
  %68 = vmatpush1.bf16.msra.mxu0 0
  %69 = vmatprep.subr.bf16.mxu0 0
  %70 = vmatpush1.bf16.msra.mxu0 0
  %71 = vmatprep.subr.bf16.mxu0 0
  %72 = vmatpush1.bf16.msra.mxu0 0
  %73 = vmatprep.subr.bf16.mxu0 0
  %74 = vmatpush1.bf16.msra.mxu0 %v54
  %75 = vmatprep.subr.bf16.mxu0 0
  %76 = vmatpush1.bf16.msra.mxu0 %v53
  %77 = vmatprep.subr.bf16.mxu0 0
  %78 = vmatpush2.bf16.msra.mxu0 0
  %79 = vmatprep.subr.bf16.mxu0 0
  %80 = vmatpush2.bf16.msra.mxu0 0
  %81 = vmatprep.subr.bf16.mxu0 0
  %82 = vmatpush2.bf16.msra.mxu0 0
  %83 = vmatprep.subr.bf16.mxu0 0
  %84 = vmatpush2.bf16.msra.mxu0 0
  %85 = vmatprep.subr.bf16.mxu0 0
  %86 = vmatpush2.bf16.msra.mxu0 0
  %87 = vmatprep.subr.bf16.mxu0 0
  %88 = vmatpush2.bf16.msra.mxu0 0
  %89 = vmatprep.subr.bf16.mxu0 0
  %90 = vmatpush2.bf16.msra.mxu0 0
  %91 = vmatprep.subr.bf16.mxu0 0
  %92 = vmatpush2.bf16.msra.mxu0 0
  %93 = vmatprep.mubr.bf16.mxu0 0
  %94 = vmatmul.mubr.bf16.gmra.mxu0 %v59
  %v95 = vpop.f32.mrf.mxu0
  %v96 = vadd.f32 %v38, %v95
  %v97 = vpop.f32.mrf.mxu0
  %v98 = vpop.f32.mrf.mxu0
  %v99 = vadd.f32 %v38, %v98
  %v100 = vpop.f32.mrf.mxu0
  %101 = vdwg.mxu0
  %v102 = vmax.f32 %v96, 0.0
  %v103 = vmax.f32 %v99, 0.0
  %v104 = vpack.c.bf16 %v103, %v102
  %v105 = vld [vmem:[%s3] sm:$0xf]
  %v106 = vld [vmem:[%s3 + $0x4] sm:$0xf]
  %v107 = vld [vmem:[%s3 + $0x8] sm:$0xf]
  %v108 = vld [vmem:[%s3 + $0xc] sm:$0xf]
  %v109 = vld [vmem:[%s3 + $0x10] sm:$0xf]
  %v110 = vld [vmem:[%s3 + $0x14] sm:$0xf]
  %v111 = vld [vmem:[%s3 + $0x18] sm:$0xf]
  %v112 = vld [vmem:[%s3 + $0x1c] sm:$0xf]
  %v113 = vld [vmem:[%s4] sm:$0x1]
  %v115 = vlaneseq
  %v116 = vshrl.u32 %v115, 7
  %v117 = vsub.s32 0, %v116
  %v118 = vrot.slane %v113, %v117
  %v128 = vunpack.c.l.b16 %v105
  %v129 = vunpack.c.l.b16 %v106
  %v130 = vunpack.c.l.b16 %v107
  %v131 = vunpack.c.l.b16 %v108
  %v132 = vunpack.c.l.b16 %v109
  %v133 = vunpack.c.l.b16 %v110
  %v134 = vunpack.c.l.b16 %v111
  %v135 = vunpack.c.l.b16 %v112
  %v136 = vpack.c.b16 %v129, %v128
  %v137 = vpack.c.b16 %v131, %v130
  %v138 = vpack.c.b16 %v133, %v132
  %v139 = vpack.c.b16 %v135, %v134
  %vm144 = vcmask 523264
  %v146 = vsel %vm144, %v104, 0
  %148 = vmatprep.subr.bf16.mxu0 0
  %149 = vmatpush1.bf16.msra.mxu0 0
  %150 = vmatprep.subr.bf16.mxu0 0
  %151 = vmatpush1.bf16.msra.mxu0 0
  %152 = vmatprep.subr.bf16.mxu0 0
  %153 = vmatpush1.bf16.msra.mxu0 0
  %154 = vmatprep.subr.bf16.mxu0 0
  %155 = vmatpush1.bf16.msra.mxu0 0
  %156 = vmatprep.subr.bf16.mxu0 0
  %157 = vmatpush1.bf16.msra.mxu0 %v139
  %158 = vmatprep.subr.bf16.mxu0 0
  %159 = vmatpush1.bf16.msra.mxu0 %v138
  %160 = vmatprep.subr.bf16.mxu0 0
  %161 = vmatpush1.bf16.msra.mxu0 %v137
  %162 = vmatprep.subr.bf16.mxu0 0
  %163 = vmatpush1.bf16.msra.mxu0 %v136
  %164 = vmatprep.subr.bf16.mxu0 0
  %165 = vmatpush2.bf16.msra.mxu0 0
  %166 = vmatprep.subr.bf16.mxu0 0
  %167 = vmatpush2.bf16.msra.mxu0 0
  %168 = vmatprep.subr.bf16.mxu0 0
  %169 = vmatpush2.bf16.msra.mxu0 0
  %170 = vmatprep.subr.bf16.mxu0 0
  %171 = vmatpush2.bf16.msra.mxu0 0
  %172 = vmatprep.subr.bf16.mxu0 0
  %173 = vmatpush2.bf16.msra.mxu0 0
  %174 = vmatprep.subr.bf16.mxu0 0
  %175 = vmatpush2.bf16.msra.mxu0 0
  %176 = vmatprep.subr.bf16.mxu0 0
  %177 = vmatpush2.bf16.msra.mxu0 0
  %178 = vmatprep.subr.bf16.mxu0 0
  %179 = vmatpush2.bf16.msra.mxu0 0
  %180 = vmatprep.mubr.bf16.mxu0 0
  %181 = vmatmul.mubr.bf16.gmra.mxu0 %v146
  %v182 = vpop.f32.mrf.mxu0
  %v183 = vadd.f32 %v118, %v182
  %v184 = vpop.f32.mrf.mxu0
  %v185 = vpop.f32.mrf.mxu0
  %v186 = vadd.f32 %v118, %v185
  %v187 = vpop.f32.mrf.mxu0
  %188 = vdwg.mxu0
  %v189 = vunpack.c.l.bf16 %v27
  %v190 = vunpack.c.l.bf16 %v28
  %v191 = vadd.f32 %v183, %v189
  %v192 = vadd.f32 %v186, %v190
  %v193 = vsel %vm57, %v191, 0.0
  %194 = vadd.xlane.f32.xlu0 %v193
  %v195 = vpop.xlane.xlu0 %194
  %v196 = vsel %vm57, %v192, 0.0
  %197 = vadd.xlane.f32.xlu0 %v196
  %v198 = vpop.xlane.xlu0 %197
  %v199 = vrcp.pop 32.0
  %v200 = vmul.f32 %v195, %v199
  %v201 = vmul.f32 %v198, %v199
  %v202 = vsub.f32 %v191, %v200
  %v203 = vsub.f32 %v192, %v201
  %v204 = vmul.f32 %v202, %v202
  %v205 = vmul.f32 %v203, %v203
  %v206 = vsel %vm57, %v204, 0.0
  %207 = vadd.xlane.f32.xlu0 %v206
  %v208 = vpop.xlane.xlu0 %207
  %v209 = vsel %vm57, %v205, 0.0
  %210 = vadd.xlane.f32.xlu0 %v209
  %v211 = vpop.xlane.xlu0 %210
  %v212 = vmul.f32 %v208, %v199
  %v213 = vmul.f32 %v211, %v199
  %v214 = vadd.f32 %v212, 1e-05
  %v215 = vadd.f32 %v213, 1e-05
  %v216 = vrsqrt.pop %v214
  %v217 = vrsqrt.pop %v215
  %v218 = vmul.f32 %v202, %v216
  %v219 = vmul.f32 %v203, %v217
  %v220 = vld [vmem:[%s5] sm:$0x1]
  %v222 = vlaneseq
  %v223 = vshrl.u32 %v222, 7
  %v224 = vsub.s32 0, %v223
  %v225 = vrot.slane %v220, %v224
  %v227 = vmul.f32 %v218, %v225
  %v228 = vmul.f32 %v219, %v225
  %v229 = vld [vmem:[%s6] sm:$0x1]
  %v231 = vlaneseq
  %v232 = vshrl.u32 %v231, 7
  %v233 = vsub.s32 0, %v232
  %v234 = vrot.slane %v229, %v233
  %v236 = vadd.f32 %v227, %v234
  %v237 = vadd.f32 %v228, %v234
  %v238 = vpack.c.bf16 %v237, %v236
  %v240 = vunpack.c.l.b16 %v238
  %v241 = vunpack.c.h.b16 %v238
  %v242 = vpack.c.b16 %v240, %v240
  %v243 = vpack.c.b16 %v241, %v241
  %vm246 = vcmask 257024
  %247 = vst.msk [vmem:[%s7] sm:$0xf] %vm246, %v242
  %248 = vst.msk [vmem:[%s7 + $0x4] sm:$0xf] %vm246, %v243
  // Predicated region
  $region30: #{transformer_forward.28} parent=0 // pred_check
    _
  $region31: #{transformer_forward.28} parent=0 // pred_check_branch
    %250 = sbr.rel (0) target = $region33
  $region32: #{transformer_forward.28} parent=0 // pred_region
    _
  $region33: #{transformer_forward.28} parent=0 // pred_fallthru
    _
  // Predicated region
  $region34: #{transformer_forward.28} parent=0 // pred_check
    _
  $region35: #{transformer_forward.28} parent=0 // pred_check_branch
    %252 = sbr.rel (0) target = $region37
  $region36: #{transformer_forward.28} parent=0 // pred_region
    _
  $region37: #{transformer_forward.28} parent=0 // pred_fallthru
    _

// kernel: transformer_forward.36
$region0: #{transformer_forward.36}
  #allocation0 [shape = 'u32[]', space=smem, size = 0x4, offset = 0x4, fixed_abs, tag = 'smem constant byte address 0x4 - core index']
  #allocation1 [shape = 'u32[144,128]{1,0:T(1,128)}', space=vmem, size = 0x12000, scoped, tag = 'internal scratch']
  %s0 = inlined_call_operand.vmem [shape: bf16[16,32], index: 0, kind: input, shape index: {}]
  %s1 = inlined_call_operand.vmem [shape: bf16[32,64], index: 1, kind: input, shape index: {}]
  %s2 = inlined_call_operand.vmem [shape: f32[1,64], index: 2, kind: input, shape index: {}]
  %s3 = inlined_call_operand.vmem [shape: bf16[16,64], index: 3, kind: output, shape index: {}]
  %s4 = sld [smem:[#allocation0]]
  $region22: #{transformer_forward.36} parent=0
    _
  %s6 = ssub.s32 1, %s4
  %s7 = scalar_select 0, %s6, %s4
  // Predicated region
  $region2: #{transformer_forward.36} parent=0 // pred_check
    _
  $region3: #{transformer_forward.36} parent=0 // pred_check_branch
    %9 = sbr.rel (0) target = $region5
  $region4: #{transformer_forward.36} parent=0 // pred_region
    _
  $region5: #{transformer_forward.36} parent=0 // pred_fallthru
    _
  // Predicated region
  $region6: #{transformer_forward.36} parent=0 // pred_check
    _
  $region7: #{transformer_forward.36} parent=0 // pred_check_branch
    %11 = sbr.rel (0) target = $region9
  $region8: #{transformer_forward.36} parent=0 // pred_region
    _
  $region9: #{transformer_forward.36} parent=0 // pred_fallthru
    _
  // Predicated region
  $region10: #{transformer_forward.36} parent=0 // pred_check
    _
  $region11: #{transformer_forward.36} parent=0 // pred_check_branch
    %13 = sbr.rel (0) target = $region13
  $region12: #{transformer_forward.36} parent=0 // pred_region
    _
  $region13: #{transformer_forward.36} parent=0 // pred_fallthru
    _
  %v15 = vld [vmem:[%s0] sm:$0xf]
  %v16 = vld [vmem:[%s0 + $0x4] sm:$0xf]
  %v17 = vld [vmem:[%s1] sm:$0xf]
  %v18 = vld [vmem:[%s1 + $0x4] sm:$0xf]
  %v19 = vld [vmem:[%s1 + $0x8] sm:$0xf]
  %v20 = vld [vmem:[%s1 + $0xc] sm:$0xf]
  %v21 = vld [vmem:[%s2] sm:$0x1]
  %v23 = vlaneseq
  %v24 = vshrl.u32 %v23, 7
  %v25 = vsub.s32 0, %v24
  %v26 = vrot.slane %v21, %v25
  %v30 = vunpack.c.l.b16 %v15
  %v31 = vunpack.c.l.b16 %v16
  %v32 = vpack.c.b16 %v31, %v30
  %v37 = vunpack.c.l.b16 %v17
  %v38 = vunpack.c.l.b16 %v18
  %v39 = vunpack.c.l.b16 %v19
  %v40 = vunpack.c.l.b16 %v20
  %v41 = vpack.c.b16 %v38, %v37
  %v42 = vpack.c.b16 %v40, %v39
  %vm45 = vcmask 261120
  %v47 = vsel %vm45, %v32, 0
  %49 = vmatprep.subr.bf16.mxu0 0
  %50 = vmatpush1.bf16.msra.mxu0 0
  %51 = vmatprep.subr.bf16.mxu0 0
  %52 = vmatpush1.bf16.msra.mxu0 0
  %53 = vmatprep.subr.bf16.mxu0 0
  %54 = vmatpush1.bf16.msra.mxu0 0
  %55 = vmatprep.subr.bf16.mxu0 0
  %56 = vmatpush1.bf16.msra.mxu0 0
  %57 = vmatprep.subr.bf16.mxu0 0
  %58 = vmatpush1.bf16.msra.mxu0 0
  %59 = vmatprep.subr.bf16.mxu0 0
  %60 = vmatpush1.bf16.msra.mxu0 0
  %61 = vmatprep.subr.bf16.mxu0 0
  %62 = vmatpush1.bf16.msra.mxu0 %v42
  %63 = vmatprep.subr.bf16.mxu0 0
  %64 = vmatpush1.bf16.msra.mxu0 %v41
  %65 = vmatprep.subr.bf16.mxu0 0
  %66 = vmatpush2.bf16.msra.mxu0 0
  %67 = vmatprep.subr.bf16.mxu0 0
  %68 = vmatpush2.bf16.msra.mxu0 0
  %69 = vmatprep.subr.bf16.mxu0 0
  %70 = vmatpush2.bf16.msra.mxu0 0
  %71 = vmatprep.subr.bf16.mxu0 0
  %72 = vmatpush2.bf16.msra.mxu0 0
  %73 = vmatprep.subr.bf16.mxu0 0
  %74 = vmatpush2.bf16.msra.mxu0 0
  %75 = vmatprep.subr.bf16.mxu0 0
  %76 = vmatpush2.bf16.msra.mxu0 0
  %77 = vmatprep.subr.bf16.mxu0 0
  %78 = vmatpush2.bf16.msra.mxu0 0
  %79 = vmatprep.subr.bf16.mxu0 0
  %80 = vmatpush2.bf16.msra.mxu0 0
  %81 = vmatprep.mubr.bf16.mxu0 0
  %82 = vmatmul.mubr.bf16.gmra.mxu0 %v47
  %v83 = vpop.f32.mrf.mxu0
  %v84 = vadd.f32 %v26, %v83
  %v85 = vpop.f32.mrf.mxu0
  %v86 = vpop.f32.mrf.mxu0
  %v87 = vadd.f32 %v26, %v86
  %v88 = vpop.f32.mrf.mxu0
  %89 = vdwg.mxu0
  %v90 = vpack.c.bf16 %v87, %v84
  %v92 = vunpack.c.l.b16 %v90
  %v93 = vunpack.c.h.b16 %v90
  %v94 = vpack.c.b16 %v92, %v92
  %v95 = vpack.c.b16 %v93, %v93
  %vm98 = vcmask 519168
  %99 = vst.msk [vmem:[%s3] sm:$0xf] %vm98, %v94
  %100 = vst.msk [vmem:[%s3 + $0x4] sm:$0xf] %vm98, %v95
  // Predicated region
  $region14: #{transformer_forward.36} parent=0 // pred_check
    _
  $region15: #{transformer_forward.36} parent=0 // pred_check_branch
    %102 = sbr.rel (0) target = $region17
  $region16: #{transformer_forward.36} parent=0 // pred_region
    _
  $region17: #{transformer_forward.36} parent=0 // pred_fallthru
    _
  // Predicated region
  $region18: #{transformer_forward.36} parent=0 // pred_check
    _
  $region19: #{transformer_forward.36} parent=0 // pred_check_branch
    %104 = sbr.rel (0) target = $region21
  $region20: #{transformer_forward.36} parent=0 // pred_region
    _
  $region21: #{transformer_forward.36} parent=0 // pred_fallthru
    _

// kernel: transformer_forward.37
$region0: #{transformer_forward.37}
  #allocation0 [shape = 'u32[]', space=smem, size = 0x4, offset = 0x4, fixed_abs, tag = 'smem constant byte address 0x4 - core index']
  #allocation1 [shape = 'u32[144,128]{1,0:T(1,128)}', space=vmem, size = 0x12000, scoped, tag = 'internal scratch']
  %s0 = inlined_call_operand.vmem [shape: bf16[16,32], index: 0, kind: input, shape index: {}]
  %s1 = inlined_call_operand.vmem [shape: bf16[32,32], index: 1, kind: input, shape index: {}]
  %s2 = inlined_call_operand.vmem [shape: f32[1,32], index: 2, kind: input, shape index: {}]
  %s3 = inlined_call_operand.vmem [shape: bf16[16,32], index: 3, kind: output, shape index: {}]
  %s4 = sld [smem:[#allocation0]]
  $region22: #{transformer_forward.37} parent=0
    _
  %s6 = ssub.s32 1, %s4
  %s7 = scalar_select 0, %s6, %s4
  // Predicated region
  $region2: #{transformer_forward.37} parent=0 // pred_check
    _
  $region3: #{transformer_forward.37} parent=0 // pred_check_branch
    %9 = sbr.rel (0) target = $region5
  $region4: #{transformer_forward.37} parent=0 // pred_region
    _
  $region5: #{transformer_forward.37} parent=0 // pred_fallthru
    _
  // Predicated region
  $region6: #{transformer_forward.37} parent=0 // pred_check
    _
  $region7: #{transformer_forward.37} parent=0 // pred_check_branch
    %11 = sbr.rel (0) target = $region9
  $region8: #{transformer_forward.37} parent=0 // pred_region
    _
  $region9: #{transformer_forward.37} parent=0 // pred_fallthru
    _
  // Predicated region
  $region10: #{transformer_forward.37} parent=0 // pred_check
    _
  $region11: #{transformer_forward.37} parent=0 // pred_check_branch
    %13 = sbr.rel (0) target = $region13
  $region12: #{transformer_forward.37} parent=0 // pred_region
    _
  $region13: #{transformer_forward.37} parent=0 // pred_fallthru
    _
  %v15 = vld [vmem:[%s0] sm:$0xf]
  %v16 = vld [vmem:[%s0 + $0x4] sm:$0xf]
  %v17 = vld [vmem:[%s1] sm:$0xf]
  %v18 = vld [vmem:[%s1 + $0x4] sm:$0xf]
  %v19 = vld [vmem:[%s1 + $0x8] sm:$0xf]
  %v20 = vld [vmem:[%s1 + $0xc] sm:$0xf]
  %v21 = vld [vmem:[%s2] sm:$0x1]
  %v23 = vlaneseq
  %v24 = vshrl.u32 %v23, 7
  %v25 = vsub.s32 0, %v24
  %v26 = vrot.slane %v21, %v25
  %v30 = vunpack.c.l.b16 %v15
  %v31 = vunpack.c.l.b16 %v16
  %v32 = vpack.c.b16 %v31, %v30
  %v37 = vunpack.c.l.b16 %v17
  %v38 = vunpack.c.l.b16 %v18
  %v39 = vunpack.c.l.b16 %v19
  %v40 = vunpack.c.l.b16 %v20
  %v41 = vpack.c.b16 %v38, %v37
  %v42 = vpack.c.b16 %v40, %v39
  %vm45 = vcmask 261120
  %v47 = vsel %vm45, %v32, 0
  %49 = vmatprep.subr.bf16.mxu0 0
  %50 = vmatpush1.bf16.msra.mxu0 0
  %51 = vmatprep.subr.bf16.mxu0 0
  %52 = vmatpush1.bf16.msra.mxu0 0
  %53 = vmatprep.subr.bf16.mxu0 0
  %54 = vmatpush1.bf16.msra.mxu0 0
  %55 = vmatprep.subr.bf16.mxu0 0
  %56 = vmatpush1.bf16.msra.mxu0 0
  %57 = vmatprep.subr.bf16.mxu0 0
  %58 = vmatpush1.bf16.msra.mxu0 0
  %59 = vmatprep.subr.bf16.mxu0 0
  %60 = vmatpush1.bf16.msra.mxu0 0
  %61 = vmatprep.subr.bf16.mxu0 0
  %62 = vmatpush1.bf16.msra.mxu0 %v42
  %63 = vmatprep.subr.bf16.mxu0 0
  %64 = vmatpush1.bf16.msra.mxu0 %v41
  %65 = vmatprep.subr.bf16.mxu0 0
  %66 = vmatpush2.bf16.msra.mxu0 0
  %67 = vmatprep.subr.bf16.mxu0 0
  %68 = vmatpush2.bf16.msra.mxu0 0
  %69 = vmatprep.subr.bf16.mxu0 0
  %70 = vmatpush2.bf16.msra.mxu0 0
  %71 = vmatprep.subr.bf16.mxu0 0
  %72 = vmatpush2.bf16.msra.mxu0 0
  %73 = vmatprep.subr.bf16.mxu0 0
  %74 = vmatpush2.bf16.msra.mxu0 0
  %75 = vmatprep.subr.bf16.mxu0 0
  %76 = vmatpush2.bf16.msra.mxu0 0
  %77 = vmatprep.subr.bf16.mxu0 0
  %78 = vmatpush2.bf16.msra.mxu0 0
  %79 = vmatprep.subr.bf16.mxu0 0
  %80 = vmatpush2.bf16.msra.mxu0 0
  %81 = vmatprep.mubr.bf16.mxu0 0
  %82 = vmatmul.mubr.bf16.gmra.mxu0 %v47
  %v83 = vpop.f32.mrf.mxu0
  %v84 = vadd.f32 %v26, %v83
  %v85 = vpop.f32.mrf.mxu0
  %v86 = vpop.f32.mrf.mxu0
  %v87 = vadd.f32 %v26, %v86
  %v88 = vpop.f32.mrf.mxu0
  %89 = vdwg.mxu0
  %v90 = vpack.c.bf16 %v87, %v84
  %v92 = vunpack.c.l.b16 %v90
  %v93 = vunpack.c.h.b16 %v90
  %v94 = vpack.c.b16 %v92, %v92
  %v95 = vpack.c.b16 %v93, %v93
  %vm98 = vcmask 257024
  %99 = vst.msk [vmem:[%s3] sm:$0xf] %vm98, %v94
  %100 = vst.msk [vmem:[%s3 + $0x4] sm:$0xf] %vm98, %v95
  // Predicated region
  $region14: #{transformer_forward.37} parent=0 // pred_check
    _
  $region15: #{transformer_forward.37} parent=0 // pred_check_branch
    %102 = sbr.rel (0) target = $region17
  $region16: #{transformer_forward.37} parent=0 // pred_region
    _
  $region17: #{transformer_forward.37} parent=0 // pred_fallthru
    _
  // Predicated region
  $region18: #{transformer_forward.37} parent=0 // pred_check
    _
  $region19: #{transformer_forward.37} parent=0 // pred_check_branch
    %104 = sbr.rel (0) target = $region21
  $region20: #{transformer_forward.37} parent=0 // pred_region
    _
  $region21: #{transformer_forward.37} parent=0 // pred_fallthru
    _

// kernel: transformer_forward.34
$region0: #{transformer_forward.34}
  #allocation0 [shape = 'u32[]', space=smem, size = 0x4, offset = 0x4, fixed_abs, tag = 'smem constant byte address 0x4 - core index']
  #allocation1 [shape = 'u32[144,128]{1,0:T(1,128)}', space=vmem, size = 0x12000, scoped, tag = 'internal scratch']
  %s0 = inlined_call_operand.vmem [shape: bf16[2,8,96], index: 0, kind: input, shape index: {}]
  %s1 = inlined_call_operand.vmem [shape: f32[2,8,1], index: 1, kind: input, shape index: {}]
  %s2 = inlined_call_operand.vmem [shape: f32[2,1,8], index: 2, kind: input, shape index: {}]
  %s3 = inlined_call_operand.vmem [shape: bf16[2,8,32], index: 3, kind: output, shape index: {}]
  %s4 = sld [smem:[#allocation0]]
  $region45: #{transformer_forward.34} parent=0
    _
  %s6 = ssub.s32 1, %s4
  %s7 = scalar_select 0, %s6, %s4
  loop: start=0, step=1, limit=4
  $region2: #{transformer_forward.34} parent=0 // loop_pre_header
    _
  $region3: #{transformer_forward.34} parent=0 // loop_header
    %s9 = sphi 0, %s13
    %p10 = scmp.ge.s32.totalorder %s9, 4
    %s19 = sphi 0, %s21
    %s22 = sphi 0, %s19
    %s23 = sphi 0, %s22
    %s39 = sphi 0, %s23
    %s45 = sphi 0, %s47
    %s48 = sphi 0, %s45
    %s49 = sphi 0, %s48
    %s65 = sphi 0, %s49
    %s71 = sphi 0, %s73
    %s74 = sphi 0, %s71
    %s75 = sphi 0, %s74
    %s91 = sphi 0, %s75
    %s97 = sphi 0, %s99
    %s100 = sphi 0, %s97
    %s101 = sphi 0, %s100
    %s117 = sphi 0, %s101
  $region4: #{transformer_forward.34} parent=0 // loop_header_branch
    %12 = sbr.rel (%p10) target = $region8
  $region5: #{transformer_forward.34} parent=0 // loop_body
    %s14 = ssub.s32 %s9, 1
    %s15 = ssub.s32 %s9, 2
    %s16 = sadd.s32 %s9, 1
    %s17 = ssub.s32 %s9, %s16
    %p18 = scmp.eq.s32.totalorder %s17, 0
    %s20 = sadd.s32 %s19, 1
    %s21 = scalar_select %p18, %s19, %s20
    %p24 = pneg %p18
    %p25 = scmp.eq.s32.totalorder %s9, 1
    %p26 = por %p24, %p25
    %p27 = scmp.ne.s32.totalorder %s19, %s22
    %p28 = scmp.eq.s32.totalorder %s9, 0
    %p29 = por %p27, %p28
    %p30 = scmp.ne.s32.totalorder %s19, %s22
    %p31 = scmp.eq.s32.totalorder %s14, 1
    %p32 = por %p30, %p31
    %p33 = scmp.ne.s32.totalorder %s22, %s23
    %p34 = scmp.eq.s32.totalorder %s14, 0
    %p35 = por %p33, %p34
    %p36 = scmp.ne.s32.totalorder %s22, %s23
    %p37 = scmp.eq.s32.totalorder %s15, 1
    %p38 = por %p36, %p37
    %p40 = scmp.ne.s32.totalorder %s23, %s39
    %p41 = scmp.eq.s32.totalorder %s15, 0
    %p42 = por %p40, %p41
    %s43 = ssub.s32 %s9, %s16
    %p44 = scmp.eq.s32.totalorder %s43, 0
    %s46 = sadd.s32 %s45, 1
    %s47 = scalar_select %p44, %s45, %s46
    %p50 = pneg %p44
    %p51 = scmp.eq.s32.totalorder %s9, 1
    %p52 = por %p50, %p51
    %p53 = scmp.ne.s32.totalorder %s45, %s48
    %p54 = scmp.eq.s32.totalorder %s9, 0
    %p55 = por %p53, %p54
    %p56 = scmp.ne.s32.totalorder %s45, %s48
    %p57 = scmp.eq.s32.totalorder %s14, 1
    %p58 = por %p56, %p57
    %p59 = scmp.ne.s32.totalorder %s48, %s49
    %p60 = scmp.eq.s32.totalorder %s14, 0
    %p61 = por %p59, %p60
    %p62 = scmp.ne.s32.totalorder %s48, %s49
    %p63 = scmp.eq.s32.totalorder %s15, 1
    %p64 = por %p62, %p63
    %p66 = scmp.ne.s32.totalorder %s49, %s65
    %p67 = scmp.eq.s32.totalorder %s15, 0
    %p68 = por %p66, %p67
    %s69 = ssub.s32 %s9, %s16
    %p70 = scmp.eq.s32.totalorder %s69, 0
    %s72 = sadd.s32 %s71, 1
    %s73 = scalar_select %p70, %s71, %s72
    %p76 = pneg %p70
    %p77 = scmp.eq.s32.totalorder %s9, 1
    %p78 = por %p76, %p77
    %p79 = scmp.ne.s32.totalorder %s71, %s74
    %p80 = scmp.eq.s32.totalorder %s9, 0
    %p81 = por %p79, %p80
    %p82 = scmp.ne.s32.totalorder %s71, %s74
    %p83 = scmp.eq.s32.totalorder %s14, 1
    %p84 = por %p82, %p83
    %p85 = scmp.ne.s32.totalorder %s74, %s75
    %p86 = scmp.eq.s32.totalorder %s14, 0
    %p87 = por %p85, %p86
    %p88 = scmp.ne.s32.totalorder %s74, %s75
    %p89 = scmp.eq.s32.totalorder %s15, 1
    %p90 = por %p88, %p89
    %p92 = scmp.ne.s32.totalorder %s75, %s91
    %p93 = scmp.eq.s32.totalorder %s15, 0
    %p94 = por %p92, %p93
    %s95 = ssub.s32 %s9, %s16
    %p96 = scmp.eq.s32.totalorder %s95, 0
    %s98 = sadd.s32 %s97, 1
    %s99 = scalar_select %p96, %s97, %s98
    %p102 = pneg %p96
    %p103 = scmp.eq.s32.totalorder %s9, 1
    %p104 = por %p102, %p103
    %p105 = scmp.ne.s32.totalorder %s97, %s100
    %p106 = scmp.eq.s32.totalorder %s9, 0
    %p107 = por %p105, %p106
    %p108 = scmp.ne.s32.totalorder %s97, %s100
    %p109 = scmp.eq.s32.totalorder %s14, 1
    %p110 = por %p108, %p109
    %p111 = scmp.ne.s32.totalorder %s100, %s101
    %p112 = scmp.eq.s32.totalorder %s14, 0
    %p113 = por %p111, %p112
    %p114 = scmp.ne.s32.totalorder %s100, %s101
    %p115 = scmp.eq.s32.totalorder %s15, 1
    %p116 = por %p114, %p115
    %p118 = scmp.ne.s32.totalorder %s101, %s117
    %p119 = scmp.eq.s32.totalorder %s15, 0
    %p120 = por %p118, %p119
    %p121 = scmp.le.s32.totalorder 1, %s9
    %p122 = scmp.lt.s32.totalorder %s9, 3
    %p123 = pnand %p121, %p122
    %p124 = pneg %p123
    // Predicated region
    $region9: #{transformer_forward.34} parent=5 // pred_check
      _
    $region10: #{transformer_forward.34} parent=5 // pred_check_branch
      %126 = sbr.rel (%p123) target = $region12
    $region11: #{transformer_forward.34} parent=5 // pred_region
      %s127 = ssub.s32 %s9, 1
    $region12: #{transformer_forward.34} parent=5 // pred_fallthru
      _
    %p128 = scmp.lt.s32.totalorder %s9, 2
    // Predicated region
    $region13: #{transformer_forward.34} parent=5 // pred_check
      %p129 = pneg %p128
    $region14: #{transformer_forward.34} parent=5 // pred_check_branch
      %131 = sbr.rel (%p129) target = $region16
    $region15: #{transformer_forward.34} parent=5 // pred_region
      // Predicated region
      $region17: #{transformer_forward.34} parent=15 // pred_check
        %p132 = pneg %p29
      $region18: #{transformer_forward.34} parent=15 // pred_check_branch
        %134 = sbr.rel (%p132) target = $region20
      $region19: #{transformer_forward.34} parent=15 // pred_region
        %p135 = scmp.lt.s32.totalorder %s9, 1
        %s136 = scalar_select %p135, %s9, 1
        %s137 = smul.addr %s136, 4
        %s138 = scalar_lea.vmem %s0, %s137
      $region20: #{transformer_forward.34} parent=15 // pred_fallthru
        _
      // Predicated region
      $region21: #{transformer_forward.34} parent=15 // pred_check
        %p139 = pneg %p55
      $region22: #{transformer_forward.34} parent=15 // pred_check_branch
        %141 = sbr.rel (%p139) target = $region24
      $region23: #{transformer_forward.34} parent=15 // pred_region
        %p142 = scmp.lt.s32.totalorder %s9, 1
        %s143 = scalar_select %p142, %s9, 1
        %s144 = smul.addr %s143, 8
        %s145 = scalar_lea.vmem %s1, %s144
      $region24: #{transformer_forward.34} parent=15 // pred_fallthru
        _
      // Predicated region
      $region25: #{transformer_forward.34} parent=15 // pred_check
        %p146 = pneg %p81
      $region26: #{transformer_forward.34} parent=15 // pred_check_branch
        %148 = sbr.rel (%p146) target = $region28
      $region27: #{transformer_forward.34} parent=15 // pred_region
        %p149 = scmp.lt.s32.totalorder %s9, 1
        %s150 = scalar_select %p149, %s9, 1
        %s151 = scalar_lea.vmem %s2, %s150
      $region28: #{transformer_forward.34} parent=15 // pred_fallthru
        _
    $region16: #{transformer_forward.34} parent=5 // pred_fallthru
      _
    %p152 = scmp.le.s32.totalorder 1, %s9
    %p153 = scmp.lt.s32.totalorder %s9, 3
    %p154 = pnand %p152, %p153
    %p155 = pneg %p154
    // Predicated region
    $region29: #{transformer_forward.34} parent=5 // pred_check
      _
    $region30: #{transformer_forward.34} parent=5 // pred_check_branch
      %157 = sbr.rel (%p154) target = $region32
    $region31: #{transformer_forward.34} parent=5 // pred_region
      %s158 = ssub.s32 %s9, 1
      %p159 = scmp.lt.s32.totalorder %s14, 1
      %s160 = scalar_select %p159, %s14, 1
      %s161 = smul.addr %s160, 4
      %s162 = scalar_lea.vmem %s0, %s161
      %p163 = pneg %p35
      %p164 = pneg %p32
      %p165 = scmp.lt.s32.totalorder %s14, 1
      %s166 = scalar_select %p165, %s14, 1
      %s167 = smul.addr %s166, 8
      %s168 = scalar_lea.vmem %s1, %s167
      %p169 = pneg %p61
      %p170 = pneg %p58
      %p171 = scmp.lt.s32.totalorder %s14, 1
      %s172 = scalar_select %p171, %s14, 1
      %s173 = scalar_lea.vmem %s2, %s172
      %p174 = pneg %p87
      %p175 = pneg %p84
      %p176 = pneg %p113
      %p177 = pneg %p110
      %p178 = scmp.lt.s32.totalorder %s14, 1
      %s179 = scalar_select %p178, %s14, 1
      %s180 = smul.addr %s179, 4
      %s181 = scalar_lea.vmem %s3, %s180
      %p182 = scmp.lt.s32.totalorder %s14, 1
      %s183 = scalar_select %p182, %s14, 1
      %s184 = smul.addr %s183, 4
      %s185 = scalar_lea.vmem %s0, %s184
      %p186 = scmp.lt.s32.totalorder %s14, 1
      %s187 = scalar_select %p186, %s14, 1
      %s188 = smul.addr %s187, 8
      %s189 = scalar_lea.vmem %s1, %s188
      %p190 = scmp.lt.s32.totalorder %s14, 1
      %s191 = scalar_select %p190, %s14, 1
      %s192 = scalar_lea.vmem %s2, %s191
      %p193 = scmp.lt.s32.totalorder %s14, 1
      %s194 = scalar_select %p193, %s14, 1
      %s195 = smul.addr %s194, 4
      %s196 = scalar_lea.vmem %s3, %s195
      %v198 = vld [vmem:[%s185] sm:$0xf]
      %v199 = vld [vmem:[%s189] sm:$0xff]
      %v200 = vld [vmem:[%s192] sm:$0x1]
      %202 = vset.pattern.permute.xlu0 0
      %203 = vperm.xlu0 %202, %v199
      %v204 = vpop.permute.xlu0 %203
      %v207 = vlaneseq
      %v208 = vshrl.u32 %v207, 7
      %v209 = vsub.s32 0, %v208
      %v210 = vrot.slane %v200, %v209
      %v212 = vadd.f32 %v204, %v210
      %v213 = vlaneseq
      %v214 = vshrl.u32 %v213, 7
      %v215 = vlaneseq
      %v216 = vand.u32 %v215, 127
      %vm217 = vcmp.gt.s32.totalorder %v216, %v214
      %v218 = vsel %vm217, -1e+09, 0.0
      %v219 = vadd.f32 %v212, %v218
      %v221 = vunpack.c.l.b16 %v198
      %v222 = vpack.c.b16 %v221, %v221
      %223 = vrot.lane.b32.xlu0 %v222, 96
      %v224 = vpop.permute.xlu0 %223
      %vm225 = vcmask 64512
      %v227 = vsel %vm225, %v198, 0
      %v230 = vsel %vm225, %v224, 0
      %232 = vmatprep.subr.bf16.mxu0 0
      %233 = vmatpush1.bf16.xpose.msra.mxu0 0
      %234 = vmatprep.subr.bf16.mxu0 0
      %235 = vmatpush1.bf16.xpose.msra.mxu0 0
      %236 = vmatprep.subr.bf16.mxu0 0
      %237 = vmatpush1.bf16.xpose.msra.mxu0 0
      %238 = vmatprep.subr.bf16.mxu0 0
      %239 = vmatpush1.bf16.xpose.msra.mxu0 0
      %240 = vmatprep.subr.bf16.mxu0 0
      %241 = vmatpush1.bf16.xpose.msra.mxu0 0
      %242 = vmatprep.subr.bf16.mxu0 0
      %243 = vmatpush1.bf16.xpose.msra.mxu0 0
      %244 = vmatprep.subr.bf16.mxu0 0
      %245 = vmatpush1.bf16.xpose.msra.mxu0 0
      %246 = vmatprep.subr.bf16.mxu0 0
      %247 = vmatpush1.bf16.xpose.msra.mxu0 %v230
      %248 = vmatprep.subr.bf16.mxu0 0
      %249 = vmatpush2.bf16.xpose.msra.mxu0 0
      %250 = vmatprep.subr.bf16.mxu0 0
      %251 = vmatpush2.bf16.xpose.msra.mxu0 0
      %252 = vmatprep.subr.bf16.mxu0 0
      %253 = vmatpush2.bf16.xpose.msra.mxu0 0
      %254 = vmatprep.subr.bf16.mxu0 0
      %255 = vmatpush2.bf16.xpose.msra.mxu0 0
      %256 = vmatprep.subr.bf16.mxu0 0
      %257 = vmatpush2.bf16.xpose.msra.mxu0 0
      %258 = vmatprep.subr.bf16.mxu0 0
      %259 = vmatpush2.bf16.xpose.msra.mxu0 0
      %260 = vmatprep.subr.bf16.mxu0 0
      %261 = vmatpush2.bf16.xpose.msra.mxu0 0
      %262 = vmatprep.subr.bf16.mxu0 0
      %263 = vmatpush2.bf16.xpose.msra.mxu0 0
      %264 = vmatprep.mubr.bf16.mxu0 0
      %265 = vmatmul.mubr.bf16.gmra.mxu0 %v227
      %v266 = vpop.f32.mrf.mxu0
      %v267 = vadd.f32 0.0, %v266
      %v268 = vpop.f32.mrf.mxu0
      %v269 = vpop.f32.mrf.mxu0
      %v270 = vpop.f32.mrf.mxu0
      %271 = vdwg.mxu0
      %v272 = vmul.f32 %v267, 0.35355338
      %v273 = vadd.f32 %v272, %v219
      %v274 = vsel %vm225, %v273, -inf
      %275 = vmax.xlane.f32.xlu0 %v274
      %v276 = vpop.xlane.xlu0 %275
      %v277 = vsub.f32 %v273, %v276
      %v278 = vmul.f32 %v277, 1.442695
      %v279 = vpow.pop %v278
      %v280 = vsel %vm225, %v279, 0.0
      %281 = vadd.xlane.f32.xlu0 %v280
      %v282 = vpop.xlane.xlu0 %281
      %v283 = vrcp.pop %v282
      %v284 = vmul.f32 %v279, %v283
      %v285 = vpack.c.bf16 %v284, %v284
      %286 = vrot.lane.b32.xlu0 %v222, 64
      %v287 = vpop.permute.xlu0 %286
      %v289 = vsel %vm225, %v285, 0
      %vm291 = vcmask 1043456
      %v293 = vsel %vm291, %v287, 0
      %295 = vmatprep.subr.bf16.mxu0 0
      %296 = vmatpush1.bf16.msra.mxu0 0
      %297 = vmatprep.subr.bf16.mxu0 0
      %298 = vmatpush1.bf16.msra.mxu0 0
      %299 = vmatprep.subr.bf16.mxu0 0
      %300 = vmatpush1.bf16.msra.mxu0 0
      %301 = vmatprep.subr.bf16.mxu0 0
      %302 = vmatpush1.bf16.msra.mxu0 0
      %303 = vmatprep.subr.bf16.mxu0 0
      %304 = vmatpush1.bf16.msra.mxu0 0
      %305 = vmatprep.subr.bf16.mxu0 0
      %306 = vmatpush1.bf16.msra.mxu0 0
      %307 = vmatprep.subr.bf16.mxu0 0
      %308 = vmatpush1.bf16.msra.mxu0 0
      %309 = vmatprep.subr.bf16.mxu0 0
      %310 = vmatpush1.bf16.msra.mxu0 %v293
      %311 = vmatprep.subr.bf16.mxu0 0
      %312 = vmatpush2.bf16.msra.mxu0 0
      %313 = vmatprep.subr.bf16.mxu0 0
      %314 = vmatpush2.bf16.msra.mxu0 0
      %315 = vmatprep.subr.bf16.mxu0 0
      %316 = vmatpush2.bf16.msra.mxu0 0
      %317 = vmatprep.subr.bf16.mxu0 0
      %318 = vmatpush2.bf16.msra.mxu0 0
      %319 = vmatprep.subr.bf16.mxu0 0
      %320 = vmatpush2.bf16.msra.mxu0 0
      %321 = vmatprep.subr.bf16.mxu0 0
      %322 = vmatpush2.bf16.msra.mxu0 0
      %323 = vmatprep.subr.bf16.mxu0 0
      %324 = vmatpush2.bf16.msra.mxu0 0
      %325 = vmatprep.subr.bf16.mxu0 0
      %326 = vmatpush2.bf16.msra.mxu0 0
      %327 = vmatprep.mubr.bf16.mxu0 0
      %328 = vmatmul.mubr.bf16.gmra.mxu0 %v289
      %v329 = vpop.f32.mrf.mxu0
      %v330 = vadd.f32 0.0, %v329
      %v331 = vpop.f32.mrf.mxu0
      %v332 = vpop.f32.mrf.mxu0
      %v333 = vpop.f32.mrf.mxu0
      %334 = vdwg.mxu0
      %335 = vrot.lane.b32.xlu0 %v222, 120
      %v336 = vpop.permute.xlu0 %335
      %337 = vrot.lane.b32.xlu0 %v222, 88
      %v338 = vpop.permute.xlu0 %337
      %v340 = vsel %vm225, %v336, 0
      %v343 = vsel %vm225, %v338, 0
      %345 = vmatprep.subr.bf16.mxu0 0
      %346 = vmatpush1.bf16.xpose.msra.mxu0 0
      %347 = vmatprep.subr.bf16.mxu0 0
      %348 = vmatpush1.bf16.xpose.msra.mxu0 0
      %349 = vmatprep.subr.bf16.mxu0 0
      %350 = vmatpush1.bf16.xpose.msra.mxu0 0
      %351 = vmatprep.subr.bf16.mxu0 0
      %352 = vmatpush1.bf16.xpose.msra.mxu0 0
      %353 = vmatprep.subr.bf16.mxu0 0
      %354 = vmatpush1.bf16.xpose.msra.mxu0 0
      %355 = vmatprep.subr.bf16.mxu0 0
      %356 = vmatpush1.bf16.xpose.msra.mxu0 0
      %357 = vmatprep.subr.bf16.mxu0 0
      %358 = vmatpush1.bf16.xpose.msra.mxu0 0
      %359 = vmatprep.subr.bf16.mxu0 0
      %360 = vmatpush1.bf16.xpose.msra.mxu0 %v343
      %361 = vmatprep.subr.bf16.mxu0 0
      %362 = vmatpush2.bf16.xpose.msra.mxu0 0
      %363 = vmatprep.subr.bf16.mxu0 0
      %364 = vmatpush2.bf16.xpose.msra.mxu0 0
      %365 = vmatprep.subr.bf16.mxu0 0
      %366 = vmatpush2.bf16.xpose.msra.mxu0 0
      %367 = vmatprep.subr.bf16.mxu0 0
      %368 = vmatpush2.bf16.xpose.msra.mxu0 0
      %369 = vmatprep.subr.bf16.mxu0 0
      %370 = vmatpush2.bf16.xpose.msra.mxu0 0
      %371 = vmatprep.subr.bf16.mxu0 0
      %372 = vmatpush2.bf16.xpose.msra.mxu0 0
      %373 = vmatprep.subr.bf16.mxu0 0
      %374 = vmatpush2.bf16.xpose.msra.mxu0 0
      %375 = vmatprep.subr.bf16.mxu0 0
      %376 = vmatpush2.bf16.xpose.msra.mxu0 0
      %377 = vmatprep.mubr.bf16.mxu0 0
      %378 = vmatmul.mubr.bf16.gmra.mxu0 %v340
      %v379 = vpop.f32.mrf.mxu0
      %v380 = vadd.f32 0.0, %v379
      %v381 = vpop.f32.mrf.mxu0
      %v382 = vpop.f32.mrf.mxu0
      %v383 = vpop.f32.mrf.mxu0
      %384 = vdwg.mxu0
      %v385 = vmul.f32 %v380, 0.35355338
      %v386 = vadd.f32 %v385, %v219
      %v387 = vsel %vm225, %v386, -inf
      %388 = vmax.xlane.f32.xlu0 %v387
      %v389 = vpop.xlane.xlu0 %388
      %v390 = vsub.f32 %v386, %v389
      %v391 = vmul.f32 %v390, 1.442695
      %v392 = vpow.pop %v391
      %v393 = vsel %vm225, %v392, 0.0
      %394 = vadd.xlane.f32.xlu0 %v393
      %v395 = vpop.xlane.xlu0 %394
      %v396 = vrcp.pop %v395
      %v397 = vmul.f32 %v392, %v396
      %v398 = vpack.c.bf16 %v397, %v397
      %399 = vrot.lane.b32.xlu0 %v222, 56
      %v400 = vpop.permute.xlu0 %399
      %v402 = vsel %vm225, %v398, 0
      %v405 = vsel %vm291, %v400, 0
      %407 = vmatprep.subr.bf16.mxu0 0
      %408 = vmatpush1.bf16.msra.mxu0 0
      %409 = vmatprep.subr.bf16.mxu0 0
      %410 = vmatpush1.bf16.msra.mxu0 0
      %411 = vmatprep.subr.bf16.mxu0 0
      %412 = vmatpush1.bf16.msra.mxu0 0
      %413 = vmatprep.subr.bf16.mxu0 0
      %414 = vmatpush1.bf16.msra.mxu0 0
      %415 = vmatprep.subr.bf16.mxu0 0
      %416 = vmatpush1.bf16.msra.mxu0 0
      %417 = vmatprep.subr.bf16.mxu0 0
      %418 = vmatpush1.bf16.msra.mxu0 0
      %419 = vmatprep.subr.bf16.mxu0 0
      %420 = vmatpush1.bf16.msra.mxu0 0
      %421 = vmatprep.subr.bf16.mxu0 0
      %422 = vmatpush1.bf16.msra.mxu0 %v405
      %423 = vmatprep.subr.bf16.mxu0 0
      %424 = vmatpush2.bf16.msra.mxu0 0
      %425 = vmatprep.subr.bf16.mxu0 0
      %426 = vmatpush2.bf16.msra.mxu0 0
      %427 = vmatprep.subr.bf16.mxu0 0
      %428 = vmatpush2.bf16.msra.mxu0 0
      %429 = vmatprep.subr.bf16.mxu0 0
      %430 = vmatpush2.bf16.msra.mxu0 0
      %431 = vmatprep.subr.bf16.mxu0 0
      %432 = vmatpush2.bf16.msra.mxu0 0
      %433 = vmatprep.subr.bf16.mxu0 0
      %434 = vmatpush2.bf16.msra.mxu0 0
      %435 = vmatprep.subr.bf16.mxu0 0
      %436 = vmatpush2.bf16.msra.mxu0 0
      %437 = vmatprep.subr.bf16.mxu0 0
      %438 = vmatpush2.bf16.msra.mxu0 0
      %439 = vmatprep.mubr.bf16.mxu0 0
      %440 = vmatmul.mubr.bf16.gmra.mxu0 %v402
      %v441 = vpop.f32.mrf.mxu0
      %v442 = vadd.f32 0.0, %v441
      %v443 = vpop.f32.mrf.mxu0
      %v444 = vpop.f32.mrf.mxu0
      %v445 = vpop.f32.mrf.mxu0
      %446 = vdwg.mxu0
      %447 = vrot.lane.b32.xlu0 %v222, 112
      %v448 = vpop.permute.xlu0 %447
      %449 = vrot.lane.b32.xlu0 %v222, 80
      %v450 = vpop.permute.xlu0 %449
      %v452 = vsel %vm225, %v448, 0
      %v455 = vsel %vm225, %v450, 0
      %457 = vmatprep.subr.bf16.mxu0 0
      %458 = vmatpush1.bf16.xpose.msra.mxu0 0
      %459 = vmatprep.subr.bf16.mxu0 0
      %460 = vmatpush1.bf16.xpose.msra.mxu0 0
      %461 = vmatprep.subr.bf16.mxu0 0
      %462 = vmatpush1.bf16.xpose.msra.mxu0 0
      %463 = vmatprep.subr.bf16.mxu0 0
      %464 = vmatpush1.bf16.xpose.msra.mxu0 0
      %465 = vmatprep.subr.bf16.mxu0 0
      %466 = vmatpush1.bf16.xpose.msra.mxu0 0
      %467 = vmatprep.subr.bf16.mxu0 0
      %468 = vmatpush1.bf16.xpose.msra.mxu0 0
      %469 = vmatprep.subr.bf16.mxu0 0
      %470 = vmatpush1.bf16.xpose.msra.mxu0 0
      %471 = vmatprep.subr.bf16.mxu0 0
      %472 = vmatpush1.bf16.xpose.msra.mxu0 %v455
      %473 = vmatprep.subr.bf16.mxu0 0
      %474 = vmatpush2.bf16.xpose.msra.mxu0 0
      %475 = vmatprep.subr.bf16.mxu0 0
      %476 = vmatpush2.bf16.xpose.msra.mxu0 0
      %477 = vmatprep.subr.bf16.mxu0 0
      %478 = vmatpush2.bf16.xpose.msra.mxu0 0
      %479 = vmatprep.subr.bf16.mxu0 0
      %480 = vmatpush2.bf16.xpose.msra.mxu0 0
      %481 = vmatprep.subr.bf16.mxu0 0
      %482 = vmatpush2.bf16.xpose.msra.mxu0 0
      %483 = vmatprep.subr.bf16.mxu0 0
      %484 = vmatpush2.bf16.xpose.msra.mxu0 0
      %485 = vmatprep.subr.bf16.mxu0 0
      %486 = vmatpush2.bf16.xpose.msra.mxu0 0
      %487 = vmatprep.subr.bf16.mxu0 0
      %488 = vmatpush2.bf16.xpose.msra.mxu0 0
      %489 = vmatprep.mubr.bf16.mxu0 0
      %490 = vmatmul.mubr.bf16.gmra.mxu0 %v452
      %v491 = vpop.f32.mrf.mxu0
      %v492 = vadd.f32 0.0, %v491
      %v493 = vpop.f32.mrf.mxu0
      %v494 = vpop.f32.mrf.mxu0
      %v495 = vpop.f32.mrf.mxu0
      %496 = vdwg.mxu0
      %v497 = vmul.f32 %v492, 0.35355338
      %v498 = vadd.f32 %v497, %v219
      %v499 = vsel %vm225, %v498, -inf
      %500 = vmax.xlane.f32.xlu0 %v499
      %v501 = vpop.xlane.xlu0 %500
      %v502 = vsub.f32 %v498, %v501
      %v503 = vmul.f32 %v502, 1.442695
      %v504 = vpow.pop %v503
      %v505 = vsel %vm225, %v504, 0.0
      %506 = vadd.xlane.f32.xlu0 %v505
      %v507 = vpop.xlane.xlu0 %506
      %v508 = vrcp.pop %v507
      %v509 = vmul.f32 %v504, %v508
      %v510 = vpack.c.bf16 %v509, %v509
      %511 = vrot.lane.b32.xlu0 %v222, 48
      %v512 = vpop.permute.xlu0 %511
      %v514 = vsel %vm225, %v510, 0
      %v517 = vsel %vm291, %v512, 0
      %519 = vmatprep.subr.bf16.mxu0 0
      %520 = vmatpush1.bf16.msra.mxu0 0
      %521 = vmatprep.subr.bf16.mxu0 0
      %522 = vmatpush1.bf16.msra.mxu0 0
      %523 = vmatprep.subr.bf16.mxu0 0
      %524 = vmatpush1.bf16.msra.mxu0 0
      %525 = vmatprep.subr.bf16.mxu0 0
      %526 = vmatpush1.bf16.msra.mxu0 0
      %527 = vmatprep.subr.bf16.mxu0 0
      %528 = vmatpush1.bf16.msra.mxu0 0
      %529 = vmatprep.subr.bf16.mxu0 0
      %530 = vmatpush1.bf16.msra.mxu0 0
      %531 = vmatprep.subr.bf16.mxu0 0
      %532 = vmatpush1.bf16.msra.mxu0 0
      %533 = vmatprep.subr.bf16.mxu0 0
      %534 = vmatpush1.bf16.msra.mxu0 %v517
      %535 = vmatprep.subr.bf16.mxu0 0
      %536 = vmatpush2.bf16.msra.mxu0 0
      %537 = vmatprep.subr.bf16.mxu0 0
      %538 = vmatpush2.bf16.msra.mxu0 0
      %539 = vmatprep.subr.bf16.mxu0 0
      %540 = vmatpush2.bf16.msra.mxu0 0
      %541 = vmatprep.subr.bf16.mxu0 0
      %542 = vmatpush2.bf16.msra.mxu0 0
      %543 = vmatprep.subr.bf16.mxu0 0
      %544 = vmatpush2.bf16.msra.mxu0 0
      %545 = vmatprep.subr.bf16.mxu0 0
      %546 = vmatpush2.bf16.msra.mxu0 0
      %547 = vmatprep.subr.bf16.mxu0 0
      %548 = vmatpush2.bf16.msra.mxu0 0
      %549 = vmatprep.subr.bf16.mxu0 0
      %550 = vmatpush2.bf16.msra.mxu0 0
      %551 = vmatprep.mubr.bf16.mxu0 0
      %552 = vmatmul.mubr.bf16.gmra.mxu0 %v514
      %v553 = vpop.f32.mrf.mxu0
      %v554 = vadd.f32 0.0, %v553
      %v555 = vpop.f32.mrf.mxu0
      %v556 = vpop.f32.mrf.mxu0
      %v557 = vpop.f32.mrf.mxu0
      %558 = vdwg.mxu0
      %559 = vrot.lane.b32.xlu0 %v222, 104
      %v560 = vpop.permute.xlu0 %559
      %561 = vrot.lane.b32.xlu0 %v222, 72
      %v562 = vpop.permute.xlu0 %561
      %v564 = vsel %vm225, %v560, 0
      %v567 = vsel %vm225, %v562, 0
      %569 = vmatprep.subr.bf16.mxu0 0
      %570 = vmatpush1.bf16.xpose.msra.mxu0 0
      %571 = vmatprep.subr.bf16.mxu0 0
      %572 = vmatpush1.bf16.xpose.msra.mxu0 0
      %573 = vmatprep.subr.bf16.mxu0 0
      %574 = vmatpush1.bf16.xpose.msra.mxu0 0
      %575 = vmatprep.subr.bf16.mxu0 0
      %576 = vmatpush1.bf16.xpose.msra.mxu0 0
      %577 = vmatprep.subr.bf16.mxu0 0
      %578 = vmatpush1.bf16.xpose.msra.mxu0 0
      %579 = vmatprep.subr.bf16.mxu0 0
      %580 = vmatpush1.bf16.xpose.msra.mxu0 0
      %581 = vmatprep.subr.bf16.mxu0 0
      %582 = vmatpush1.bf16.xpose.msra.mxu0 0
      %583 = vmatprep.subr.bf16.mxu0 0
      %584 = vmatpush1.bf16.xpose.msra.mxu0 %v567
      %585 = vmatprep.subr.bf16.mxu0 0
      %586 = vmatpush2.bf16.xpose.msra.mxu0 0
      %587 = vmatprep.subr.bf16.mxu0 0
      %588 = vmatpush2.bf16.xpose.msra.mxu0 0
      %589 = vmatprep.subr.bf16.mxu0 0
      %590 = vmatpush2.bf16.xpose.msra.mxu0 0
      %591 = vmatprep.subr.bf16.mxu0 0
      %592 = vmatpush2.bf16.xpose.msra.mxu0 0
      %593 = vmatprep.subr.bf16.mxu0 0
      %594 = vmatpush2.bf16.xpose.msra.mxu0 0
      %595 = vmatprep.subr.bf16.mxu0 0
      %596 = vmatpush2.bf16.xpose.msra.mxu0 0
      %597 = vmatprep.subr.bf16.mxu0 0
      %598 = vmatpush2.bf16.xpose.msra.mxu0 0
      %599 = vmatprep.subr.bf16.mxu0 0
      %600 = vmatpush2.bf16.xpose.msra.mxu0 0
      %601 = vmatprep.mubr.bf16.mxu0 0
      %602 = vmatmul.mubr.bf16.gmra.mxu0 %v564
      %v603 = vpop.f32.mrf.mxu0
      %v604 = vadd.f32 0.0, %v603
      %v605 = vpop.f32.mrf.mxu0
      %v606 = vpop.f32.mrf.mxu0
      %v607 = vpop.f32.mrf.mxu0
      %608 = vdwg.mxu0
      %v609 = vmul.f32 %v604, 0.35355338
      %v610 = vadd.f32 %v609, %v219
      %v611 = vsel %vm225, %v610, -inf
      %612 = vmax.xlane.f32.xlu0 %v611
      %v613 = vpop.xlane.xlu0 %612
      %v614 = vsub.f32 %v610, %v613
      %v615 = vmul.f32 %v614, 1.442695
      %v616 = vpow.pop %v615
      %v617 = vsel %vm225, %v616, 0.0
      %618 = vadd.xlane.f32.xlu0 %v617
      %v619 = vpop.xlane.xlu0 %618
      %v620 = vrcp.pop %v619
      %v621 = vmul.f32 %v616, %v620
      %v622 = vpack.c.bf16 %v621, %v621
      %623 = vrot.lane.b32.xlu0 %v222, 40
      %v624 = vpop.permute.xlu0 %623
      %v626 = vsel %vm225, %v622, 0
      %v629 = vsel %vm291, %v624, 0
      %631 = vmatprep.subr.bf16.mxu0 0
      %632 = vmatpush1.bf16.msra.mxu0 0
      %633 = vmatprep.subr.bf16.mxu0 0
      %634 = vmatpush1.bf16.msra.mxu0 0
      %635 = vmatprep.subr.bf16.mxu0 0
      %636 = vmatpush1.bf16.msra.mxu0 0
      %637 = vmatprep.subr.bf16.mxu0 0
      %638 = vmatpush1.bf16.msra.mxu0 0
      %639 = vmatprep.subr.bf16.mxu0 0
      %640 = vmatpush1.bf16.msra.mxu0 0
      %641 = vmatprep.subr.bf16.mxu0 0
      %642 = vmatpush1.bf16.msra.mxu0 0
      %643 = vmatprep.subr.bf16.mxu0 0
      %644 = vmatpush1.bf16.msra.mxu0 0
      %645 = vmatprep.subr.bf16.mxu0 0
      %646 = vmatpush1.bf16.msra.mxu0 %v629
      %647 = vmatprep.subr.bf16.mxu0 0
      %648 = vmatpush2.bf16.msra.mxu0 0
      %649 = vmatprep.subr.bf16.mxu0 0
      %650 = vmatpush2.bf16.msra.mxu0 0
      %651 = vmatprep.subr.bf16.mxu0 0
      %652 = vmatpush2.bf16.msra.mxu0 0
      %653 = vmatprep.subr.bf16.mxu0 0
      %654 = vmatpush2.bf16.msra.mxu0 0
      %655 = vmatprep.subr.bf16.mxu0 0
      %656 = vmatpush2.bf16.msra.mxu0 0
      %657 = vmatprep.subr.bf16.mxu0 0
      %658 = vmatpush2.bf16.msra.mxu0 0
      %659 = vmatprep.subr.bf16.mxu0 0
      %660 = vmatpush2.bf16.msra.mxu0 0
      %661 = vmatprep.subr.bf16.mxu0 0
      %662 = vmatpush2.bf16.msra.mxu0 0
      %663 = vmatprep.mubr.bf16.mxu0 0
      %664 = vmatmul.mubr.bf16.gmra.mxu0 %v626
      %v665 = vpop.f32.mrf.mxu0
      %v666 = vadd.f32 0.0, %v665
      %v667 = vpop.f32.mrf.mxu0
      %v668 = vpop.f32.mrf.mxu0
      %v669 = vpop.f32.mrf.mxu0
      %670 = vdwg.mxu0
      %672 = vrot.lane.b32.xlu0 %v442, 8
      %v673 = vpop.permute.xlu0 %672
      %676 = vrot.lane.b32.xlu0 %v554, 16
      %v677 = vpop.permute.xlu0 %676
      %680 = vrot.lane.b32.xlu0 %v666, 24
      %v681 = vpop.permute.xlu0 %680
      %v683 = vsel %vm225, %v330, %v673
      %vm684 = vcmask 130048
      %v685 = vsel %vm684, %v683, %v677
      %vm686 = vcmask 195584
      %v687 = vsel %vm686, %v685, %v681
      %v688 = vpack.c.bf16 %v687, %v687
      %vm689 = vcmask 257024
      %690 = vst.msk [vmem:[%s196] sm:$0xf] %vm689, %v688
      %p691 = scmp.lt.s32.totalorder %s14, 1
      %s692 = scalar_select %p691, %s14, 1
      %s693 = smul.addr %s692, 4
      %s694 = scalar_lea.vmem %s3, %s693
      // Predicated region
      $region33: #{transformer_forward.34} parent=31 // pred_check
        %p695 = pneg %p110
      $region34: #{transformer_forward.34} parent=31 // pred_check_branch
        %697 = sbr.rel (%p695) target = $region36
      $region35: #{transformer_forward.34} parent=31 // pred_region
        _
      $region36: #{transformer_forward.34} parent=31 // pred_fallthru
        _
    $region32: #{transformer_forward.34} parent=5 // pred_fallthru
      _
    %p698 = scmp.le.s32.totalorder 2, %s9
    // Predicated region
    $region37: #{transformer_forward.34} parent=5 // pred_check
      %p699 = pneg %p698
    $region38: #{transformer_forward.34} parent=5 // pred_check_branch
      %701 = sbr.rel (%p699) target = $region40
    $region39: #{transformer_forward.34} parent=5 // pred_region
      %s702 = ssub.s32 %s9, 2
      // Predicated region
      $region41: #{transformer_forward.34} parent=39 // pred_check
        %p703 = pneg %p116
      $region42: #{transformer_forward.34} parent=39 // pred_check_branch
        %705 = sbr.rel (%p703) target = $region44
      $region43: #{transformer_forward.34} parent=39 // pred_region
        %p706 = scmp.lt.s32.totalorder %s15, 1
        %s707 = scalar_select %p706, %s15, 1
        %s708 = smul.addr %s707, 4
        %s709 = scalar_lea.vmem %s3, %s708
      $region44: #{transformer_forward.34} parent=39 // pred_fallthru
        _
    $region40: #{transformer_forward.34} parent=5 // pred_fallthru
      _
  $region6: #{transformer_forward.34} parent=0 // loop_footer
    %s13 = sadd.s32 1, %s9
  $region7: #{transformer_forward.34} parent=0 // loop_footer_branch
    %8 = sbr.rel target = $region3
  $region8: #{transformer_forward.34} parent=0 // loop_exit
    _

// kernel: transformer_forward.49
$region0: #{transformer_forward.49}
  #allocation0 [shape = 'u32[]', space=smem, size = 0x4, offset = 0x4, fixed_abs, tag = 'smem constant byte address 0x4 - core index']
  #allocation1 [shape = 'u32[144,128]{1,0:T(1,128)}', space=vmem, size = 0x12000, scoped, tag = 'internal scratch']
  %s0 = inlined_call_operand.vmem [shape: bf16[16,32], index: 0, kind: input, shape index: {}]
  %s1 = inlined_call_operand.vmem [shape: bf16[32,128], index: 1, kind: input, shape index: {}]
  %s2 = inlined_call_operand.vmem [shape: f32[1,128], index: 2, kind: input, shape index: {}]
  %s3 = inlined_call_operand.hbm [shape: f32[16,128], index: 3, kind: output, shape index: {}]
  %s4 = sld [smem:[#allocation0]]
  $region22: #{transformer_forward.49} parent=0
    _
  %s6 = ssub.s32 1, %s4
  %s7 = scalar_select 0, %s6, %s4
  $region1: #{transformer_forward.49} parent=0
    #allocation2 [shape = 'u8[8192]{0}', space=vmem, size = 0x2000, scoped, tag = 'output window, operand 0, single buffered']
    #allocation3 [shape = 's32[1]{0}', space=sflag, size = 0x4, scoped, tag = 'scoped memory for transformer_forward.49']
    %8 = vsyncpa [#allocation3], 0
    // Predicated region
    $region2: #{transformer_forward.49} parent=1 // pred_check
      _
    $region3: #{transformer_forward.49} parent=1 // pred_check_branch
      %10 = sbr.rel (0) target = $region5
    $region4: #{transformer_forward.49} parent=1 // pred_region
      _
    $region5: #{transformer_forward.49} parent=1 // pred_fallthru
      _
    // Predicated region
    $region6: #{transformer_forward.49} parent=1 // pred_check
      _
    $region7: #{transformer_forward.49} parent=1 // pred_check_branch
      %12 = sbr.rel (0) target = $region9
    $region8: #{transformer_forward.49} parent=1 // pred_region
      _
    $region9: #{transformer_forward.49} parent=1 // pred_fallthru
      _
    // Predicated region
    $region10: #{transformer_forward.49} parent=1 // pred_check
      _
    $region11: #{transformer_forward.49} parent=1 // pred_check_branch
      %14 = sbr.rel (0) target = $region13
    $region12: #{transformer_forward.49} parent=1 // pred_region
      _
    $region13: #{transformer_forward.49} parent=1 // pred_fallthru
      _
    %v16 = vld [vmem:[%s0] sm:$0xf]
    %v17 = vld [vmem:[%s0 + $0x4] sm:$0xf]
    %v18 = vld [vmem:[%s1] sm:$0xf]
    %v19 = vld [vmem:[%s1 + $0x4] sm:$0xf]
    %v20 = vld [vmem:[%s1 + $0x8] sm:$0xf]
    %v21 = vld [vmem:[%s1 + $0xc] sm:$0xf]
    %v22 = vld [vmem:[%s2] sm:$0x1]
    %v24 = vlaneseq
    %v25 = vshrl.u32 %v24, 7
    %v26 = vsub.s32 0, %v25
    %v27 = vrot.slane %v22, %v26
    %v31 = vunpack.c.l.b16 %v16
    %v32 = vunpack.c.l.b16 %v17
    %v33 = vpack.c.b16 %v32, %v31
    %v38 = vunpack.c.l.b16 %v18
    %v39 = vunpack.c.l.b16 %v19
    %v40 = vunpack.c.l.b16 %v20
    %v41 = vunpack.c.l.b16 %v21
    %v42 = vpack.c.b16 %v39, %v38
    %v43 = vpack.c.b16 %v41, %v40
    %vm46 = vcmask 261120
    %v48 = vsel %vm46, %v33, 0
    %50 = vmatprep.subr.bf16.mxu0 0
    %51 = vmatpush1.bf16.msra.mxu0 0
    %52 = vmatprep.subr.bf16.mxu0 0
    %53 = vmatpush1.bf16.msra.mxu0 0
    %54 = vmatprep.subr.bf16.mxu0 0
    %55 = vmatpush1.bf16.msra.mxu0 0
    %56 = vmatprep.subr.bf16.mxu0 0
    %57 = vmatpush1.bf16.msra.mxu0 0
    %58 = vmatprep.subr.bf16.mxu0 0
    %59 = vmatpush1.bf16.msra.mxu0 0
    %60 = vmatprep.subr.bf16.mxu0 0
    %61 = vmatpush1.bf16.msra.mxu0 0
    %62 = vmatprep.subr.bf16.mxu0 0
    %63 = vmatpush1.bf16.msra.mxu0 %v43
    %64 = vmatprep.subr.bf16.mxu0 0
    %65 = vmatpush1.bf16.msra.mxu0 %v42
    %66 = vmatprep.subr.bf16.mxu0 0
    %67 = vmatpush2.bf16.msra.mxu0 0
    %68 = vmatprep.subr.bf16.mxu0 0
    %69 = vmatpush2.bf16.msra.mxu0 0
    %70 = vmatprep.subr.bf16.mxu0 0
    %71 = vmatpush2.bf16.msra.mxu0 0
    %72 = vmatprep.subr.bf16.mxu0 0
    %73 = vmatpush2.bf16.msra.mxu0 0
    %74 = vmatprep.subr.bf16.mxu0 0
    %75 = vmatpush2.bf16.msra.mxu0 0
    %76 = vmatprep.subr.bf16.mxu0 0
    %77 = vmatpush2.bf16.msra.mxu0 0
    %78 = vmatprep.subr.bf16.mxu0 0
    %79 = vmatpush2.bf16.msra.mxu0 0
    %80 = vmatprep.subr.bf16.mxu0 0
    %81 = vmatpush2.bf16.msra.mxu0 0
    %82 = vmatprep.mubr.bf16.mxu0 0
    %83 = vmatmul.mubr.bf16.gmra.mxu0 %v48
    %v84 = vpop.f32.mrf.mxu0
    %v85 = vadd.f32 %v27, %v84
    %v86 = vpop.f32.mrf.mxu0
    %v87 = vpop.f32.mrf.mxu0
    %v88 = vadd.f32 %v27, %v87
    %v89 = vpop.f32.mrf.mxu0
    %90 = vdwg.mxu0
    %91 = vst [vmem:[#allocation2] sm:$0xff] %v85
    %92 = vst [vmem:[#allocation2 + $0x8] sm:$0xff] %v88
    // Predicated region
    $region14: #{transformer_forward.49} parent=1 // pred_check
      _
    $region15: #{transformer_forward.49} parent=1 // pred_check_branch
      %94 = sbr.rel (0) target = $region17
    $region16: #{transformer_forward.49} parent=1 // pred_region
      %s96 = ssub.s32 256, 256
      %97 = vsyncadd [#allocation3], %s96
      %s98 = sshll.u32 [#allocation2], 4
      %s99 = int_to_ptr.vmem [resolvable:$true] %s98
      %104 = dma.vmem_to_hbm [thread:$0]  %s99, 256, %s3, [#allocation3], 128, 128, 8
    $region17: #{transformer_forward.49} parent=1 // pred_fallthru
      _
    // Predicated region
    $region18: #{transformer_forward.49} parent=1 // pred_check
      _
    $region19: #{transformer_forward.49} parent=1 // pred_check_branch
      %106 = sbr.rel (0) target = $region21
    $region20: #{transformer_forward.49} parent=1 // pred_region
      %107 = dma.done [#allocation3], 256
    $region21: #{transformer_forward.49} parent=1 // pred_fallthru
      _
    %108 = vsyncpa [#allocation3], 1

// kernel: transformer_forward.38
$region0: #{transformer_forward.38}
  #allocation0 [shape = 'u32[]', space=smem, size = 0x4, offset = 0x4, fixed_abs, tag = 'smem constant byte address 0x4 - core index']
  #allocation1 [shape = 'u32[144,128]{1,0:T(1,128)}', space=vmem, size = 0x12000, scoped, tag = 'internal scratch']
  %s0 = inlined_call_operand.vmem [shape: bf16[2,8,32], index: 0, kind: input, shape index: {}]
  %s1 = inlined_call_operand.vmem [shape: bf16[2,8,64], index: 1, kind: input, shape index: {}]
  %s2 = inlined_call_operand.vmem [shape: f32[2,1,8], index: 2, kind: input, shape index: {}]
  %s3 = inlined_call_operand.vmem [shape: bf16[2,8,32], index: 3, kind: output, shape index: {}]
  %s4 = sld [smem:[#allocation0]]
  $region45: #{transformer_forward.38} parent=0
    _
  %s6 = ssub.s32 1, %s4
  %s7 = scalar_select 0, %s6, %s4
  loop: start=0, step=1, limit=4
  $region2: #{transformer_forward.38} parent=0 // loop_pre_header
    _
  $region3: #{transformer_forward.38} parent=0 // loop_header
    %s9 = sphi 0, %s13
    %p10 = scmp.ge.s32.totalorder %s9, 4
    %s19 = sphi 0, %s21
    %s22 = sphi 0, %s19
    %s23 = sphi 0, %s22
    %s39 = sphi 0, %s23
    %s45 = sphi 0, %s47
    %s48 = sphi 0, %s45
    %s49 = sphi 0, %s48
    %s65 = sphi 0, %s49
    %s71 = sphi 0, %s73
    %s74 = sphi 0, %s71
    %s75 = sphi 0, %s74
    %s91 = sphi 0, %s75
    %s97 = sphi 0, %s99
    %s100 = sphi 0, %s97
    %s101 = sphi 0, %s100
    %s117 = sphi 0, %s101
  $region4: #{transformer_forward.38} parent=0 // loop_header_branch
    %12 = sbr.rel (%p10) target = $region8
  $region5: #{transformer_forward.38} parent=0 // loop_body
    %s14 = ssub.s32 %s9, 1
    %s15 = ssub.s32 %s9, 2
    %s16 = sadd.s32 %s9, 1
    %s17 = ssub.s32 %s9, %s16
    %p18 = scmp.eq.s32.totalorder %s17, 0
    %s20 = sadd.s32 %s19, 1
    %s21 = scalar_select %p18, %s19, %s20
    %p24 = pneg %p18
    %p25 = scmp.eq.s32.totalorder %s9, 1
    %p26 = por %p24, %p25
    %p27 = scmp.ne.s32.totalorder %s19, %s22
    %p28 = scmp.eq.s32.totalorder %s9, 0
    %p29 = por %p27, %p28
    %p30 = scmp.ne.s32.totalorder %s19, %s22
    %p31 = scmp.eq.s32.totalorder %s14, 1
    %p32 = por %p30, %p31
    %p33 = scmp.ne.s32.totalorder %s22, %s23
    %p34 = scmp.eq.s32.totalorder %s14, 0
    %p35 = por %p33, %p34
    %p36 = scmp.ne.s32.totalorder %s22, %s23
    %p37 = scmp.eq.s32.totalorder %s15, 1
    %p38 = por %p36, %p37
    %p40 = scmp.ne.s32.totalorder %s23, %s39
    %p41 = scmp.eq.s32.totalorder %s15, 0
    %p42 = por %p40, %p41
    %s43 = ssub.s32 %s9, %s16
    %p44 = scmp.eq.s32.totalorder %s43, 0
    %s46 = sadd.s32 %s45, 1
    %s47 = scalar_select %p44, %s45, %s46
    %p50 = pneg %p44
    %p51 = scmp.eq.s32.totalorder %s9, 1
    %p52 = por %p50, %p51
    %p53 = scmp.ne.s32.totalorder %s45, %s48
    %p54 = scmp.eq.s32.totalorder %s9, 0
    %p55 = por %p53, %p54
    %p56 = scmp.ne.s32.totalorder %s45, %s48
    %p57 = scmp.eq.s32.totalorder %s14, 1
    %p58 = por %p56, %p57
    %p59 = scmp.ne.s32.totalorder %s48, %s49
    %p60 = scmp.eq.s32.totalorder %s14, 0
    %p61 = por %p59, %p60
    %p62 = scmp.ne.s32.totalorder %s48, %s49
    %p63 = scmp.eq.s32.totalorder %s15, 1
    %p64 = por %p62, %p63
    %p66 = scmp.ne.s32.totalorder %s49, %s65
    %p67 = scmp.eq.s32.totalorder %s15, 0
    %p68 = por %p66, %p67
    %s69 = ssub.s32 %s9, %s16
    %p70 = scmp.eq.s32.totalorder %s69, 0
    %s72 = sadd.s32 %s71, 1
    %s73 = scalar_select %p70, %s71, %s72
    %p76 = pneg %p70
    %p77 = scmp.eq.s32.totalorder %s9, 1
    %p78 = por %p76, %p77
    %p79 = scmp.ne.s32.totalorder %s71, %s74
    %p80 = scmp.eq.s32.totalorder %s9, 0
    %p81 = por %p79, %p80
    %p82 = scmp.ne.s32.totalorder %s71, %s74
    %p83 = scmp.eq.s32.totalorder %s14, 1
    %p84 = por %p82, %p83
    %p85 = scmp.ne.s32.totalorder %s74, %s75
    %p86 = scmp.eq.s32.totalorder %s14, 0
    %p87 = por %p85, %p86
    %p88 = scmp.ne.s32.totalorder %s74, %s75
    %p89 = scmp.eq.s32.totalorder %s15, 1
    %p90 = por %p88, %p89
    %p92 = scmp.ne.s32.totalorder %s75, %s91
    %p93 = scmp.eq.s32.totalorder %s15, 0
    %p94 = por %p92, %p93
    %s95 = ssub.s32 %s9, %s16
    %p96 = scmp.eq.s32.totalorder %s95, 0
    %s98 = sadd.s32 %s97, 1
    %s99 = scalar_select %p96, %s97, %s98
    %p102 = pneg %p96
    %p103 = scmp.eq.s32.totalorder %s9, 1
    %p104 = por %p102, %p103
    %p105 = scmp.ne.s32.totalorder %s97, %s100
    %p106 = scmp.eq.s32.totalorder %s9, 0
    %p107 = por %p105, %p106
    %p108 = scmp.ne.s32.totalorder %s97, %s100
    %p109 = scmp.eq.s32.totalorder %s14, 1
    %p110 = por %p108, %p109
    %p111 = scmp.ne.s32.totalorder %s100, %s101
    %p112 = scmp.eq.s32.totalorder %s14, 0
    %p113 = por %p111, %p112
    %p114 = scmp.ne.s32.totalorder %s100, %s101
    %p115 = scmp.eq.s32.totalorder %s15, 1
    %p116 = por %p114, %p115
    %p118 = scmp.ne.s32.totalorder %s101, %s117
    %p119 = scmp.eq.s32.totalorder %s15, 0
    %p120 = por %p118, %p119
    %p121 = scmp.le.s32.totalorder 1, %s9
    %p122 = scmp.lt.s32.totalorder %s9, 3
    %p123 = pnand %p121, %p122
    %p124 = pneg %p123
    // Predicated region
    $region9: #{transformer_forward.38} parent=5 // pred_check
      _
    $region10: #{transformer_forward.38} parent=5 // pred_check_branch
      %126 = sbr.rel (%p123) target = $region12
    $region11: #{transformer_forward.38} parent=5 // pred_region
      %s127 = ssub.s32 %s9, 1
    $region12: #{transformer_forward.38} parent=5 // pred_fallthru
      _
    %p128 = scmp.lt.s32.totalorder %s9, 2
    // Predicated region
    $region13: #{transformer_forward.38} parent=5 // pred_check
      %p129 = pneg %p128
    $region14: #{transformer_forward.38} parent=5 // pred_check_branch
      %131 = sbr.rel (%p129) target = $region16
    $region15: #{transformer_forward.38} parent=5 // pred_region
      // Predicated region
      $region17: #{transformer_forward.38} parent=15 // pred_check
        %p132 = pneg %p29
      $region18: #{transformer_forward.38} parent=15 // pred_check_branch
        %134 = sbr.rel (%p132) target = $region20
      $region19: #{transformer_forward.38} parent=15 // pred_region
        %p135 = scmp.lt.s32.totalorder %s9, 1
        %s136 = scalar_select %p135, %s9, 1
        %s137 = smul.addr %s136, 4
        %s138 = scalar_lea.vmem %s0, %s137
      $region20: #{transformer_forward.38} parent=15 // pred_fallthru
        _
      // Predicated region
      $region21: #{transformer_forward.38} parent=15 // pred_check
        %p139 = pneg %p55
      $region22: #{transformer_forward.38} parent=15 // pred_check_branch
        %141 = sbr.rel (%p139) target = $region24
      $region23: #{transformer_forward.38} parent=15 // pred_region
        %p142 = scmp.lt.s32.totalorder %s9, 1
        %s143 = scalar_select %p142, %s9, 1
        %s144 = smul.addr %s143, 4
        %s145 = scalar_lea.vmem %s1, %s144
      $region24: #{transformer_forward.38} parent=15 // pred_fallthru
        _
      // Predicated region
      $region25: #{transformer_forward.38} parent=15 // pred_check
        %p146 = pneg %p81
      $region26: #{transformer_forward.38} parent=15 // pred_check_branch
        %148 = sbr.rel (%p146) target = $region28
      $region27: #{transformer_forward.38} parent=15 // pred_region
        %p149 = scmp.lt.s32.totalorder %s9, 1
        %s150 = scalar_select %p149, %s9, 1
        %s151 = scalar_lea.vmem %s2, %s150
      $region28: #{transformer_forward.38} parent=15 // pred_fallthru
        _
    $region16: #{transformer_forward.38} parent=5 // pred_fallthru
      _
    %p152 = scmp.le.s32.totalorder 1, %s9
    %p153 = scmp.lt.s32.totalorder %s9, 3
    %p154 = pnand %p152, %p153
    %p155 = pneg %p154
    // Predicated region
    $region29: #{transformer_forward.38} parent=5 // pred_check
      _
    $region30: #{transformer_forward.38} parent=5 // pred_check_branch
      %157 = sbr.rel (%p154) target = $region32
    $region31: #{transformer_forward.38} parent=5 // pred_region
      %s158 = ssub.s32 %s9, 1
      %p159 = scmp.lt.s32.totalorder %s14, 1
      %s160 = scalar_select %p159, %s14, 1
      %s161 = smul.addr %s160, 4
      %s162 = scalar_lea.vmem %s0, %s161
      %p163 = pneg %p35
      %p164 = pneg %p32
      %p165 = scmp.lt.s32.totalorder %s14, 1
      %s166 = scalar_select %p165, %s14, 1
      %s167 = smul.addr %s166, 4
      %s168 = scalar_lea.vmem %s1, %s167
      %p169 = pneg %p61
      %p170 = pneg %p58
      %p171 = scmp.lt.s32.totalorder %s14, 1
      %s172 = scalar_select %p171, %s14, 1
      %s173 = scalar_lea.vmem %s2, %s172
      %p174 = pneg %p87
      %p175 = pneg %p84
      %p176 = pneg %p113
      %p177 = pneg %p110
      %p178 = scmp.lt.s32.totalorder %s14, 1
      %s179 = scalar_select %p178, %s14, 1
      %s180 = smul.addr %s179, 4
      %s181 = scalar_lea.vmem %s3, %s180
      %p182 = scmp.lt.s32.totalorder %s14, 1
      %s183 = scalar_select %p182, %s14, 1
      %s184 = smul.addr %s183, 4
      %s185 = scalar_lea.vmem %s0, %s184
      %p186 = scmp.lt.s32.totalorder %s14, 1
      %s187 = scalar_select %p186, %s14, 1
      %s188 = smul.addr %s187, 4
      %s189 = scalar_lea.vmem %s1, %s188
      %p190 = scmp.lt.s32.totalorder %s14, 1
      %s191 = scalar_select %p190, %s14, 1
      %s192 = scalar_lea.vmem %s2, %s191
      %p193 = scmp.lt.s32.totalorder %s14, 1
      %s194 = scalar_select %p193, %s14, 1
      %s195 = smul.addr %s194, 4
      %s196 = scalar_lea.vmem %s3, %s195
      %v198 = vld [vmem:[%s185] sm:$0xf]
      %v199 = vld [vmem:[%s189] sm:$0xf]
      %v200 = vld [vmem:[%s192] sm:$0x1]
      %vm201 = vcmask 64512
      %v203 = vsel %vm201, %v198, 0
      %v206 = vsel %vm201, %v199, 0
      %208 = vmatprep.subr.bf16.mxu0 0
      %209 = vmatpush1.bf16.xpose.msra.mxu0 0
      %210 = vmatprep.subr.bf16.mxu0 0
      %211 = vmatpush1.bf16.xpose.msra.mxu0 0
      %212 = vmatprep.subr.bf16.mxu0 0
      %213 = vmatpush1.bf16.xpose.msra.mxu0 0
      %214 = vmatprep.subr.bf16.mxu0 0
      %215 = vmatpush1.bf16.xpose.msra.mxu0 0
      %216 = vmatprep.subr.bf16.mxu0 0
      %217 = vmatpush1.bf16.xpose.msra.mxu0 0
      %218 = vmatprep.subr.bf16.mxu0 0
      %219 = vmatpush1.bf16.xpose.msra.mxu0 0
      %220 = vmatprep.subr.bf16.mxu0 0
      %221 = vmatpush1.bf16.xpose.msra.mxu0 0
      %222 = vmatprep.subr.bf16.mxu0 0
      %223 = vmatpush1.bf16.xpose.msra.mxu0 %v206
      %224 = vmatprep.subr.bf16.mxu0 0
      %225 = vmatpush2.bf16.xpose.msra.mxu0 0
      %226 = vmatprep.subr.bf16.mxu0 0
      %227 = vmatpush2.bf16.xpose.msra.mxu0 0
      %228 = vmatprep.subr.bf16.mxu0 0
      %229 = vmatpush2.bf16.xpose.msra.mxu0 0
      %230 = vmatprep.subr.bf16.mxu0 0
      %231 = vmatpush2.bf16.xpose.msra.mxu0 0
      %232 = vmatprep.subr.bf16.mxu0 0
      %233 = vmatpush2.bf16.xpose.msra.mxu0 0
      %234 = vmatprep.subr.bf16.mxu0 0
      %235 = vmatpush2.bf16.xpose.msra.mxu0 0
      %236 = vmatprep.subr.bf16.mxu0 0
      %237 = vmatpush2.bf16.xpose.msra.mxu0 0
      %238 = vmatprep.subr.bf16.mxu0 0
      %239 = vmatpush2.bf16.xpose.msra.mxu0 0
      %240 = vmatprep.mubr.bf16.mxu0 0
      %241 = vmatmul.mubr.bf16.gmra.mxu0 %v203
      %v242 = vpop.f32.mrf.mxu0
      %v243 = vadd.f32 0.0, %v242
      %v244 = vpop.f32.mrf.mxu0
      %v245 = vpop.f32.mrf.mxu0
      %v246 = vpop.f32.mrf.mxu0
      %247 = vdwg.mxu0
      %v248 = vmul.f32 %v243, 0.35355338
      %v250 = vlaneseq
      %v251 = vshrl.u32 %v250, 7
      %v252 = vsub.s32 0, %v251
      %v253 = vrot.slane %v200, %v252
      %v255 = vadd.f32 %v248, %v253
      %v256 = vsel %vm201, %v255, -inf
      %257 = vmax.xlane.f32.xlu0 %v256
      %v258 = vpop.xlane.xlu0 %257
      %v259 = vsub.f32 %v255, %v258
      %v260 = vmul.f32 %v259, 1.442695
      %v261 = vpow.pop %v260
      %v262 = vsel %vm201, %v261, 0.0
      %263 = vadd.xlane.f32.xlu0 %v262
      %v264 = vpop.xlane.xlu0 %263
      %v265 = vrcp.pop %v264
      %v266 = vmul.f32 %v261, %v265
      %v267 = vpack.c.bf16 %v266, %v266
      %v269 = vunpack.c.l.b16 %v199
      %v270 = vpack.c.b16 %v269, %v269
      %271 = vrot.lane.b32.xlu0 %v270, 96
      %v272 = vpop.permute.xlu0 %271
      %v274 = vsel %vm201, %v267, 0
      %vm276 = vcmask 1043456
      %v278 = vsel %vm276, %v272, 0
      %280 = vmatprep.subr.bf16.mxu0 0
      %281 = vmatpush1.bf16.msra.mxu0 0
      %282 = vmatprep.subr.bf16.mxu0 0
      %283 = vmatpush1.bf16.msra.mxu0 0
      %284 = vmatprep.subr.bf16.mxu0 0
      %285 = vmatpush1.bf16.msra.mxu0 0
      %286 = vmatprep.subr.bf16.mxu0 0
      %287 = vmatpush1.bf16.msra.mxu0 0
      %288 = vmatprep.subr.bf16.mxu0 0
      %289 = vmatpush1.bf16.msra.mxu0 0
      %290 = vmatprep.subr.bf16.mxu0 0
      %291 = vmatpush1.bf16.msra.mxu0 0
      %292 = vmatprep.subr.bf16.mxu0 0
      %293 = vmatpush1.bf16.msra.mxu0 0
      %294 = vmatprep.subr.bf16.mxu0 0
      %295 = vmatpush1.bf16.msra.mxu0 %v278
      %296 = vmatprep.subr.bf16.mxu0 0
      %297 = vmatpush2.bf16.msra.mxu0 0
      %298 = vmatprep.subr.bf16.mxu0 0
      %299 = vmatpush2.bf16.msra.mxu0 0
      %300 = vmatprep.subr.bf16.mxu0 0
      %301 = vmatpush2.bf16.msra.mxu0 0
      %302 = vmatprep.subr.bf16.mxu0 0
      %303 = vmatpush2.bf16.msra.mxu0 0
      %304 = vmatprep.subr.bf16.mxu0 0
      %305 = vmatpush2.bf16.msra.mxu0 0
      %306 = vmatprep.subr.bf16.mxu0 0
      %307 = vmatpush2.bf16.msra.mxu0 0
      %308 = vmatprep.subr.bf16.mxu0 0
      %309 = vmatpush2.bf16.msra.mxu0 0
      %310 = vmatprep.subr.bf16.mxu0 0
      %311 = vmatpush2.bf16.msra.mxu0 0
      %312 = vmatprep.mubr.bf16.mxu0 0
      %313 = vmatmul.mubr.bf16.gmra.mxu0 %v274
      %v314 = vpop.f32.mrf.mxu0
      %v315 = vadd.f32 0.0, %v314
      %v316 = vpop.f32.mrf.mxu0
      %v317 = vpop.f32.mrf.mxu0
      %v318 = vpop.f32.mrf.mxu0
      %319 = vdwg.mxu0
      %v321 = vunpack.c.l.b16 %v198
      %v322 = vpack.c.b16 %v321, %v321
      %323 = vrot.lane.b32.xlu0 %v322, 120
      %v324 = vpop.permute.xlu0 %323
      %325 = vrot.lane.b32.xlu0 %v270, 120
      %v326 = vpop.permute.xlu0 %325
      %v328 = vsel %vm201, %v324, 0
      %v331 = vsel %vm201, %v326, 0
      %333 = vmatprep.subr.bf16.mxu0 0
      %334 = vmatpush1.bf16.xpose.msra.mxu0 0
      %335 = vmatprep.subr.bf16.mxu0 0
      %336 = vmatpush1.bf16.xpose.msra.mxu0 0
      %337 = vmatprep.subr.bf16.mxu0 0
      %338 = vmatpush1.bf16.xpose.msra.mxu0 0
      %339 = vmatprep.subr.bf16.mxu0 0
      %340 = vmatpush1.bf16.xpose.msra.mxu0 0
      %341 = vmatprep.subr.bf16.mxu0 0
      %342 = vmatpush1.bf16.xpose.msra.mxu0 0
      %343 = vmatprep.subr.bf16.mxu0 0
      %344 = vmatpush1.bf16.xpose.msra.mxu0 0
      %345 = vmatprep.subr.bf16.mxu0 0
      %346 = vmatpush1.bf16.xpose.msra.mxu0 0
      %347 = vmatprep.subr.bf16.mxu0 0
      %348 = vmatpush1.bf16.xpose.msra.mxu0 %v331
      %349 = vmatprep.subr.bf16.mxu0 0
      %350 = vmatpush2.bf16.xpose.msra.mxu0 0
      %351 = vmatprep.subr.bf16.mxu0 0
      %352 = vmatpush2.bf16.xpose.msra.mxu0 0
      %353 = vmatprep.subr.bf16.mxu0 0
      %354 = vmatpush2.bf16.xpose.msra.mxu0 0
      %355 = vmatprep.subr.bf16.mxu0 0
      %356 = vmatpush2.bf16.xpose.msra.mxu0 0
      %357 = vmatprep.subr.bf16.mxu0 0
      %358 = vmatpush2.bf16.xpose.msra.mxu0 0
      %359 = vmatprep.subr.bf16.mxu0 0
      %360 = vmatpush2.bf16.xpose.msra.mxu0 0
      %361 = vmatprep.subr.bf16.mxu0 0
      %362 = vmatpush2.bf16.xpose.msra.mxu0 0
      %363 = vmatprep.subr.bf16.mxu0 0
      %364 = vmatpush2.bf16.xpose.msra.mxu0 0
      %365 = vmatprep.mubr.bf16.mxu0 0
      %366 = vmatmul.mubr.bf16.gmra.mxu0 %v328
      %v367 = vpop.f32.mrf.mxu0
      %v368 = vadd.f32 0.0, %v367
      %v369 = vpop.f32.mrf.mxu0
      %v370 = vpop.f32.mrf.mxu0
      %v371 = vpop.f32.mrf.mxu0
      %372 = vdwg.mxu0
      %v373 = vmul.f32 %v368, 0.35355338
      %v374 = vadd.f32 %v373, %v253
      %v375 = vsel %vm201, %v374, -inf
      %376 = vmax.xlane.f32.xlu0 %v375
      %v377 = vpop.xlane.xlu0 %376
      %v378 = vsub.f32 %v374, %v377
      %v379 = vmul.f32 %v378, 1.442695
      %v380 = vpow.pop %v379
      %v381 = vsel %vm201, %v380, 0.0
      %382 = vadd.xlane.f32.xlu0 %v381
      %v383 = vpop.xlane.xlu0 %382
      %v384 = vrcp.pop %v383
      %v385 = vmul.f32 %v380, %v384
      %v386 = vpack.c.bf16 %v385, %v385
      %387 = vrot.lane.b32.xlu0 %v270, 88
      %v388 = vpop.permute.xlu0 %387
      %v390 = vsel %vm201, %v386, 0
      %v393 = vsel %vm276, %v388, 0
      %395 = vmatprep.subr.bf16.mxu0 0
      %396 = vmatpush1.bf16.msra.mxu0 0
      %397 = vmatprep.subr.bf16.mxu0 0
      %398 = vmatpush1.bf16.msra.mxu0 0
      %399 = vmatprep.subr.bf16.mxu0 0
      %400 = vmatpush1.bf16.msra.mxu0 0
      %401 = vmatprep.subr.bf16.mxu0 0
      %402 = vmatpush1.bf16.msra.mxu0 0
      %403 = vmatprep.subr.bf16.mxu0 0
      %404 = vmatpush1.bf16.msra.mxu0 0
      %405 = vmatprep.subr.bf16.mxu0 0
      %406 = vmatpush1.bf16.msra.mxu0 0
      %407 = vmatprep.subr.bf16.mxu0 0
      %408 = vmatpush1.bf16.msra.mxu0 0
      %409 = vmatprep.subr.bf16.mxu0 0
      %410 = vmatpush1.bf16.msra.mxu0 %v393
      %411 = vmatprep.subr.bf16.mxu0 0
      %412 = vmatpush2.bf16.msra.mxu0 0
      %413 = vmatprep.subr.bf16.mxu0 0
      %414 = vmatpush2.bf16.msra.mxu0 0
      %415 = vmatprep.subr.bf16.mxu0 0
      %416 = vmatpush2.bf16.msra.mxu0 0
      %417 = vmatprep.subr.bf16.mxu0 0
      %418 = vmatpush2.bf16.msra.mxu0 0
      %419 = vmatprep.subr.bf16.mxu0 0
      %420 = vmatpush2.bf16.msra.mxu0 0
      %421 = vmatprep.subr.bf16.mxu0 0
      %422 = vmatpush2.bf16.msra.mxu0 0
      %423 = vmatprep.subr.bf16.mxu0 0
      %424 = vmatpush2.bf16.msra.mxu0 0
      %425 = vmatprep.subr.bf16.mxu0 0
      %426 = vmatpush2.bf16.msra.mxu0 0
      %427 = vmatprep.mubr.bf16.mxu0 0
      %428 = vmatmul.mubr.bf16.gmra.mxu0 %v390
      %v429 = vpop.f32.mrf.mxu0
      %v430 = vadd.f32 0.0, %v429
      %v431 = vpop.f32.mrf.mxu0
      %v432 = vpop.f32.mrf.mxu0
      %v433 = vpop.f32.mrf.mxu0
      %434 = vdwg.mxu0
      %435 = vrot.lane.b32.xlu0 %v322, 112
      %v436 = vpop.permute.xlu0 %435
      %437 = vrot.lane.b32.xlu0 %v270, 112
      %v438 = vpop.permute.xlu0 %437
      %v440 = vsel %vm201, %v436, 0
      %v443 = vsel %vm201, %v438, 0
      %445 = vmatprep.subr.bf16.mxu0 0
      %446 = vmatpush1.bf16.xpose.msra.mxu0 0
      %447 = vmatprep.subr.bf16.mxu0 0
      %448 = vmatpush1.bf16.xpose.msra.mxu0 0
      %449 = vmatprep.subr.bf16.mxu0 0
      %450 = vmatpush1.bf16.xpose.msra.mxu0 0
      %451 = vmatprep.subr.bf16.mxu0 0
      %452 = vmatpush1.bf16.xpose.msra.mxu0 0
      %453 = vmatprep.subr.bf16.mxu0 0
      %454 = vmatpush1.bf16.xpose.msra.mxu0 0
      %455 = vmatprep.subr.bf16.mxu0 0
      %456 = vmatpush1.bf16.xpose.msra.mxu0 0
      %457 = vmatprep.subr.bf16.mxu0 0
      %458 = vmatpush1.bf16.xpose.msra.mxu0 0
      %459 = vmatprep.subr.bf16.mxu0 0
      %460 = vmatpush1.bf16.xpose.msra.mxu0 %v443
      %461 = vmatprep.subr.bf16.mxu0 0
      %462 = vmatpush2.bf16.xpose.msra.mxu0 0
      %463 = vmatprep.subr.bf16.mxu0 0
      %464 = vmatpush2.bf16.xpose.msra.mxu0 0
      %465 = vmatprep.subr.bf16.mxu0 0
      %466 = vmatpush2.bf16.xpose.msra.mxu0 0
      %467 = vmatprep.subr.bf16.mxu0 0
      %468 = vmatpush2.bf16.xpose.msra.mxu0 0
      %469 = vmatprep.subr.bf16.mxu0 0
      %470 = vmatpush2.bf16.xpose.msra.mxu0 0
      %471 = vmatprep.subr.bf16.mxu0 0
      %472 = vmatpush2.bf16.xpose.msra.mxu0 0
      %473 = vmatprep.subr.bf16.mxu0 0
      %474 = vmatpush2.bf16.xpose.msra.mxu0 0
      %475 = vmatprep.subr.bf16.mxu0 0
      %476 = vmatpush2.bf16.xpose.msra.mxu0 0
      %477 = vmatprep.mubr.bf16.mxu0 0
      %478 = vmatmul.mubr.bf16.gmra.mxu0 %v440
      %v479 = vpop.f32.mrf.mxu0
      %v480 = vadd.f32 0.0, %v479
      %v481 = vpop.f32.mrf.mxu0
      %v482 = vpop.f32.mrf.mxu0
      %v483 = vpop.f32.mrf.mxu0
      %484 = vdwg.mxu0
      %v485 = vmul.f32 %v480, 0.35355338
      %v486 = vadd.f32 %v485, %v253
      %v487 = vsel %vm201, %v486, -inf
      %488 = vmax.xlane.f32.xlu0 %v487
      %v489 = vpop.xlane.xlu0 %488
      %v490 = vsub.f32 %v486, %v489
      %v491 = vmul.f32 %v490, 1.442695
      %v492 = vpow.pop %v491
      %v493 = vsel %vm201, %v492, 0.0
      %494 = vadd.xlane.f32.xlu0 %v493
      %v495 = vpop.xlane.xlu0 %494
      %v496 = vrcp.pop %v495
      %v497 = vmul.f32 %v492, %v496
      %v498 = vpack.c.bf16 %v497, %v497
      %499 = vrot.lane.b32.xlu0 %v270, 80
      %v500 = vpop.permute.xlu0 %499
      %v502 = vsel %vm201, %v498, 0
      %v505 = vsel %vm276, %v500, 0
      %507 = vmatprep.subr.bf16.mxu0 0
      %508 = vmatpush1.bf16.msra.mxu0 0
      %509 = vmatprep.subr.bf16.mxu0 0
      %510 = vmatpush1.bf16.msra.mxu0 0
      %511 = vmatprep.subr.bf16.mxu0 0
      %512 = vmatpush1.bf16.msra.mxu0 0
      %513 = vmatprep.subr.bf16.mxu0 0
      %514 = vmatpush1.bf16.msra.mxu0 0
      %515 = vmatprep.subr.bf16.mxu0 0
      %516 = vmatpush1.bf16.msra.mxu0 0
      %517 = vmatprep.subr.bf16.mxu0 0
      %518 = vmatpush1.bf16.msra.mxu0 0
      %519 = vmatprep.subr.bf16.mxu0 0
      %520 = vmatpush1.bf16.msra.mxu0 0
      %521 = vmatprep.subr.bf16.mxu0 0
      %522 = vmatpush1.bf16.msra.mxu0 %v505
      %523 = vmatprep.subr.bf16.mxu0 0
      %524 = vmatpush2.bf16.msra.mxu0 0
      %525 = vmatprep.subr.bf16.mxu0 0
      %526 = vmatpush2.bf16.msra.mxu0 0
      %527 = vmatprep.subr.bf16.mxu0 0
      %528 = vmatpush2.bf16.msra.mxu0 0
      %529 = vmatprep.subr.bf16.mxu0 0
      %530 = vmatpush2.bf16.msra.mxu0 0
      %531 = vmatprep.subr.bf16.mxu0 0
      %532 = vmatpush2.bf16.msra.mxu0 0
      %533 = vmatprep.subr.bf16.mxu0 0
      %534 = vmatpush2.bf16.msra.mxu0 0
      %535 = vmatprep.subr.bf16.mxu0 0
      %536 = vmatpush2.bf16.msra.mxu0 0
      %537 = vmatprep.subr.bf16.mxu0 0
      %538 = vmatpush2.bf16.msra.mxu0 0
      %539 = vmatprep.mubr.bf16.mxu0 0
      %540 = vmatmul.mubr.bf16.gmra.mxu0 %v502
      %v541 = vpop.f32.mrf.mxu0
      %v542 = vadd.f32 0.0, %v541
      %v543 = vpop.f32.mrf.mxu0
      %v544 = vpop.f32.mrf.mxu0
      %v545 = vpop.f32.mrf.mxu0
      %546 = vdwg.mxu0
      %547 = vrot.lane.b32.xlu0 %v322, 104
      %v548 = vpop.permute.xlu0 %547
      %549 = vrot.lane.b32.xlu0 %v270, 104
      %v550 = vpop.permute.xlu0 %549
      %v552 = vsel %vm201, %v548, 0
      %v555 = vsel %vm201, %v550, 0
      %557 = vmatprep.subr.bf16.mxu0 0
      %558 = vmatpush1.bf16.xpose.msra.mxu0 0
      %559 = vmatprep.subr.bf16.mxu0 0
      %560 = vmatpush1.bf16.xpose.msra.mxu0 0
      %561 = vmatprep.subr.bf16.mxu0 0
      %562 = vmatpush1.bf16.xpose.msra.mxu0 0
      %563 = vmatprep.subr.bf16.mxu0 0
      %564 = vmatpush1.bf16.xpose.msra.mxu0 0
      %565 = vmatprep.subr.bf16.mxu0 0
      %566 = vmatpush1.bf16.xpose.msra.mxu0 0
      %567 = vmatprep.subr.bf16.mxu0 0
      %568 = vmatpush1.bf16.xpose.msra.mxu0 0
      %569 = vmatprep.subr.bf16.mxu0 0
      %570 = vmatpush1.bf16.xpose.msra.mxu0 0
      %571 = vmatprep.subr.bf16.mxu0 0
      %572 = vmatpush1.bf16.xpose.msra.mxu0 %v555
      %573 = vmatprep.subr.bf16.mxu0 0
      %574 = vmatpush2.bf16.xpose.msra.mxu0 0
      %575 = vmatprep.subr.bf16.mxu0 0
      %576 = vmatpush2.bf16.xpose.msra.mxu0 0
      %577 = vmatprep.subr.bf16.mxu0 0
      %578 = vmatpush2.bf16.xpose.msra.mxu0 0
      %579 = vmatprep.subr.bf16.mxu0 0
      %580 = vmatpush2.bf16.xpose.msra.mxu0 0
      %581 = vmatprep.subr.bf16.mxu0 0
      %582 = vmatpush2.bf16.xpose.msra.mxu0 0
      %583 = vmatprep.subr.bf16.mxu0 0
      %584 = vmatpush2.bf16.xpose.msra.mxu0 0
      %585 = vmatprep.subr.bf16.mxu0 0
      %586 = vmatpush2.bf16.xpose.msra.mxu0 0
      %587 = vmatprep.subr.bf16.mxu0 0
      %588 = vmatpush2.bf16.xpose.msra.mxu0 0
      %589 = vmatprep.mubr.bf16.mxu0 0
      %590 = vmatmul.mubr.bf16.gmra.mxu0 %v552
      %v591 = vpop.f32.mrf.mxu0
      %v592 = vadd.f32 0.0, %v591
      %v593 = vpop.f32.mrf.mxu0
      %v594 = vpop.f32.mrf.mxu0
      %v595 = vpop.f32.mrf.mxu0
      %596 = vdwg.mxu0
      %v597 = vmul.f32 %v592, 0.35355338
      %v598 = vadd.f32 %v597, %v253
      %v599 = vsel %vm201, %v598, -inf
      %600 = vmax.xlane.f32.xlu0 %v599
      %v601 = vpop.xlane.xlu0 %600
      %v602 = vsub.f32 %v598, %v601
      %v603 = vmul.f32 %v602, 1.442695
      %v604 = vpow.pop %v603
      %v605 = vsel %vm201, %v604, 0.0
      %606 = vadd.xlane.f32.xlu0 %v605
      %v607 = vpop.xlane.xlu0 %606
      %v608 = vrcp.pop %v607
      %v609 = vmul.f32 %v604, %v608
      %v610 = vpack.c.bf16 %v609, %v609
      %611 = vrot.lane.b32.xlu0 %v270, 72
      %v612 = vpop.permute.xlu0 %611
      %v614 = vsel %vm201, %v610, 0
      %v617 = vsel %vm276, %v612, 0
      %619 = vmatprep.subr.bf16.mxu0 0
      %620 = vmatpush1.bf16.msra.mxu0 0
      %621 = vmatprep.subr.bf16.mxu0 0
      %622 = vmatpush1.bf16.msra.mxu0 0
      %623 = vmatprep.subr.bf16.mxu0 0
      %624 = vmatpush1.bf16.msra.mxu0 0
      %625 = vmatprep.subr.bf16.mxu0 0
      %626 = vmatpush1.bf16.msra.mxu0 0
      %627 = vmatprep.subr.bf16.mxu0 0
      %628 = vmatpush1.bf16.msra.mxu0 0
      %629 = vmatprep.subr.bf16.mxu0 0
      %630 = vmatpush1.bf16.msra.mxu0 0
      %631 = vmatprep.subr.bf16.mxu0 0
      %632 = vmatpush1.bf16.msra.mxu0 0
      %633 = vmatprep.subr.bf16.mxu0 0
      %634 = vmatpush1.bf16.msra.mxu0 %v617
      %635 = vmatprep.subr.bf16.mxu0 0
      %636 = vmatpush2.bf16.msra.mxu0 0
      %637 = vmatprep.subr.bf16.mxu0 0
      %638 = vmatpush2.bf16.msra.mxu0 0
      %639 = vmatprep.subr.bf16.mxu0 0
      %640 = vmatpush2.bf16.msra.mxu0 0
      %641 = vmatprep.subr.bf16.mxu0 0
      %642 = vmatpush2.bf16.msra.mxu0 0
      %643 = vmatprep.subr.bf16.mxu0 0
      %644 = vmatpush2.bf16.msra.mxu0 0
      %645 = vmatprep.subr.bf16.mxu0 0
      %646 = vmatpush2.bf16.msra.mxu0 0
      %647 = vmatprep.subr.bf16.mxu0 0
      %648 = vmatpush2.bf16.msra.mxu0 0
      %649 = vmatprep.subr.bf16.mxu0 0
      %650 = vmatpush2.bf16.msra.mxu0 0
      %651 = vmatprep.mubr.bf16.mxu0 0
      %652 = vmatmul.mubr.bf16.gmra.mxu0 %v614
      %v653 = vpop.f32.mrf.mxu0
      %v654 = vadd.f32 0.0, %v653
      %v655 = vpop.f32.mrf.mxu0
      %v656 = vpop.f32.mrf.mxu0
      %v657 = vpop.f32.mrf.mxu0
      %658 = vdwg.mxu0
      %660 = vrot.lane.b32.xlu0 %v430, 8
      %v661 = vpop.permute.xlu0 %660
      %664 = vrot.lane.b32.xlu0 %v542, 16
      %v665 = vpop.permute.xlu0 %664
      %668 = vrot.lane.b32.xlu0 %v654, 24
      %v669 = vpop.permute.xlu0 %668
      %v671 = vsel %vm201, %v315, %v661
      %vm672 = vcmask 130048
      %v673 = vsel %vm672, %v671, %v665
      %vm674 = vcmask 195584
      %v675 = vsel %vm674, %v673, %v669
      %v676 = vpack.c.bf16 %v675, %v675
      %vm677 = vcmask 257024
      %678 = vst.msk [vmem:[%s196] sm:$0xf] %vm677, %v676
      %p679 = scmp.lt.s32.totalorder %s14, 1
      %s680 = scalar_select %p679, %s14, 1
      %s681 = smul.addr %s680, 4
      %s682 = scalar_lea.vmem %s3, %s681
      // Predicated region
      $region33: #{transformer_forward.38} parent=31 // pred_check
        %p683 = pneg %p110
      $region34: #{transformer_forward.38} parent=31 // pred_check_branch
        %685 = sbr.rel (%p683) target = $region36
      $region35: #{transformer_forward.38} parent=31 // pred_region
        _
      $region36: #{transformer_forward.38} parent=31 // pred_fallthru
        _
    $region32: #{transformer_forward.38} parent=5 // pred_fallthru
      _
    %p686 = scmp.le.s32.totalorder 2, %s9
    // Predicated region
    $region37: #{transformer_forward.38} parent=5 // pred_check
      %p687 = pneg %p686
    $region38: #{transformer_forward.38} parent=5 // pred_check_branch
      %689 = sbr.rel (%p687) target = $region40
    $region39: #{transformer_forward.38} parent=5 // pred_region
      %s690 = ssub.s32 %s9, 2
      // Predicated region
      $region41: #{transformer_forward.38} parent=39 // pred_check
        %p691 = pneg %p116
      $region42: #{transformer_forward.38} parent=39 // pred_check_branch
        %693 = sbr.rel (%p691) target = $region44
      $region43: #{transformer_forward.38} parent=39 // pred_region
        %p694 = scmp.lt.s32.totalorder %s15, 1
        %s695 = scalar_select %p694, %s15, 1
        %s696 = smul.addr %s695, 4
        %s697 = scalar_lea.vmem %s3, %s696
      $region44: #{transformer_forward.38} parent=39 // pred_fallthru
        _
    $region40: #{transformer_forward.38} parent=5 // pred_fallthru
      _
  $region6: #{transformer_forward.38} parent=0 // loop_footer
    %s13 = sadd.s32 1, %s9
  $region7: #{transformer_forward.38} parent=0 // loop_footer_branch
    %8 = sbr.rel target = $region3
  $region8: #{transformer_forward.38} parent=0 // loop_exit
    _

</llo_original>
